<compile_context>
chip_gen: v6e
topology: v6e:2x2x1
jax: 0.10.0
libtpu: 0.0.40
codegen_flags: <defaults>
</compile_context>

<pallas_src>
import functools
import math

import jax
import jax.numpy as jnp
from jax.experimental import pallas as pl
from jax.experimental.pallas import tpu as pltpu

NEG_INF = -1e9                      # bounded mask value (avoids -inf + -inf -> NaN)
COMPUTE_DTYPE = jnp.bfloat16        # MXU input dtype (f32 accumulation everywhere)
VMEM_LIMIT = 32 * 1024 * 1024       # safe on v5e/v6e (128 MiB) and v7x (64 MiB)


def _mosaic_params(n_parallel_axes):
    return pltpu.CompilerParams(
        dimension_semantics=("parallel",) * n_parallel_axes,
        vmem_limit_bytes=VMEM_LIMIT,
    )


def _row_tile(m, cap=256):
    """Largest row-tile that divides m (keeps full rows; grid over M is 'parallel')."""
    for t in (cap, 128, 64, 32, 16, 8):
        if m % t == 0:
            return t
    return m


# ----------------------------- Pallas kernels ------------------------------ #

def _norm_linear_kernel(x_ref, g_ref, w_ref, b_ref, o_ref, *, eps, activation):
    """o = act(RMSNorm(x) @ W + b)."""
    x = x_ref[...].astype(jnp.float32)
    var = jnp.mean(x * x, axis=-1, keepdims=True)
    xn = x * jax.lax.rsqrt(var + eps) * g_ref[...].astype(jnp.float32)
    y = jnp.dot(xn.astype(COMPUTE_DTYPE), w_ref[...].astype(COMPUTE_DTYPE),
                preferred_element_type=jnp.float32) + b_ref[...]
    if activation == "relu":
        y = jnp.maximum(y, 0.0)
    o_ref[...] = y.astype(o_ref.dtype)


def _linear_kernel(x_ref, w_ref, b_ref, o_ref):
    """o = x @ W + b."""
    y = jnp.dot(x_ref[...].astype(COMPUTE_DTYPE), w_ref[...].astype(COMPUTE_DTYPE),
                preferred_element_type=jnp.float32) + b_ref[...]
    o_ref[...] = y.astype(o_ref.dtype)


def _linear_residual_kernel(x_ref, w_ref, b_ref, r_ref, o_ref):
    """o = residual + x @ W + b  (residual add fused into the epilogue)."""
    y = jnp.dot(x_ref[...].astype(COMPUTE_DTYPE), w_ref[...].astype(COMPUTE_DTYPE),
                preferred_element_type=jnp.float32) + b_ref[...]
    o_ref[...] = (r_ref[...].astype(jnp.float32) + y).astype(o_ref.dtype)


def _norm_ffn_kernel(x_ref, g_ref, w1_ref, b1_ref, w2_ref, b2_ref, o_ref, *, eps):
    """o = x + (relu(RMSNorm(x) @ W1 + b1) @ W2 + b2)   — whole FFN sub-layer."""
    x = x_ref[...].astype(jnp.float32)
    var = jnp.mean(x * x, axis=-1, keepdims=True)
    xn = x * jax.lax.rsqrt(var + eps) * g_ref[...].astype(jnp.float32)
    h = jnp.dot(xn.astype(COMPUTE_DTYPE), w1_ref[...].astype(COMPUTE_DTYPE),
                preferred_element_type=jnp.float32) + b1_ref[...]
    h = jnp.maximum(h, 0.0)
    y = jnp.dot(h.astype(COMPUTE_DTYPE), w2_ref[...].astype(COMPUTE_DTYPE),
                preferred_element_type=jnp.float32) + b2_ref[...]
    o_ref[...] = (x + y).astype(o_ref.dtype)


def _rmsnorm_kernel(x_ref, g_ref, o_ref, *, eps):
    x = x_ref[...].astype(jnp.float32)
    var = jnp.mean(x * x, axis=-1, keepdims=True)
    o_ref[...] = (x * jax.lax.rsqrt(var + eps) * g_ref[...]).astype(o_ref.dtype)


def _attention_kernel(q_ref, k_ref, v_ref, m_ref, o_ref, *, scale, causal, n_heads):
    """All heads for one batch element; mask built in-kernel; output [Sq, H*Dh]."""
    q = q_ref[0].astype(jnp.float32)      # [H, Sq, Dh]
    k = k_ref[0].astype(jnp.float32)      # [H, Sk, Dh]
    v = v_ref[0].astype(jnp.float32)      # [H, Sk, Dh]
    km = m_ref[0].astype(jnp.float32)     # [1, Sk]   key-padding mask (1 keep / 0 pad)
    sq, sk = q.shape[1], k.shape[1]

    bias = (1.0 - km) * NEG_INF           # [1, Sk] -> broadcast over queries
    if causal:
        row = jax.lax.broadcasted_iota(jnp.int32, (sq, sk), 0)
        col = jax.lax.broadcasted_iota(jnp.int32, (sq, sk), 1)
        bias = bias + jnp.where(col <= row, 0.0, NEG_INF)

    outs = []
    for h in range(n_heads):              # static unroll; each dot is a 2-D MXU matmul
        s = jax.lax.dot_general(
            q[h].astype(COMPUTE_DTYPE), k[h].astype(COMPUTE_DTYPE),
            dimension_numbers=(((1,), (1,)), ((), ())),
            preferred_element_type=jnp.float32)
        s = s * scale + bias
        s = s - jnp.max(s, axis=-1, keepdims=True)
        p = jnp.exp(s)
        denom = jnp.sum(p, axis=-1, keepdims=True)
        p = p * pl.reciprocal(denom, approx=True)      # EUP slot, free-ish
        outs.append(jnp.dot(p.astype(COMPUTE_DTYPE), v[h].astype(COMPUTE_DTYPE),
                            preferred_element_type=jnp.float32))
    o_ref[0] = jnp.concatenate(outs, axis=-1).astype(o_ref.dtype)   # [Sq, H*Dh]


def _lm_head_kernel(x_ref, e_ref, o_ref):
    """logits tile = hidden @ emb_tile^T  (contract dim 1 of both; no transpose, no bias)."""
    o_ref[...] = jax.lax.dot_general(
        x_ref[...].astype(COMPUTE_DTYPE), e_ref[...].astype(COMPUTE_DTYPE),
        dimension_numbers=(((1,), (1,)), ((), ())),
        preferred_element_type=jnp.float32).astype(o_ref.dtype)


# ----------------------------- Pallas wrappers ------------------------------ #

def pallas_norm_linear(x2d, gamma, w, b, activation=None, eps=1e-6):
    M, K = x2d.shape
    N = w.shape[1]
    tm = _row_tile(M)
    kernel = functools.partial(_norm_linear_kernel, eps=eps, activation=activation)
    return pl.pallas_call(
        kernel,
        out_shape=jax.ShapeDtypeStruct((M, N), x2d.dtype),
        grid=(M // tm,),
        in_specs=[
            pl.BlockSpec((tm, K), lambda i: (i, 0)),
            pl.BlockSpec((1, K), lambda i: (0, 0)),
            pl.BlockSpec((K, N), lambda i: (0, 0)),
            pl.BlockSpec((1, N), lambda i: (0, 0)),
        ],
        out_specs=pl.BlockSpec((tm, N), lambda i: (i, 0)),
        compiler_params=_mosaic_params(1),
    )(x2d, gamma.reshape(1, K), w, b.reshape(1, N))


def pallas_linear(x2d, w, b):
    M, K = x2d.shape
    N = w.shape[1]
    tm = _row_tile(M)
    return pl.pallas_call(
        _linear_kernel,
        out_shape=jax.ShapeDtypeStruct((M, N), x2d.dtype),
        grid=(M // tm,),
        in_specs=[
            pl.BlockSpec((tm, K), lambda i: (i, 0)),
            pl.BlockSpec((K, N), lambda i: (0, 0)),
            pl.BlockSpec((1, N), lambda i: (0, 0)),
        ],
        out_specs=pl.BlockSpec((tm, N), lambda i: (i, 0)),
        compiler_params=_mosaic_params(1),
    )(x2d, w, b.reshape(1, N))


def pallas_linear_residual(x2d, w, b, res2d):
    M, K = x2d.shape
    N = w.shape[1]
    tm = _row_tile(M)
    return pl.pallas_call(
        _linear_residual_kernel,
        out_shape=jax.ShapeDtypeStruct((M, N), x2d.dtype),
        grid=(M // tm,),
        in_specs=[
            pl.BlockSpec((tm, K), lambda i: (i, 0)),
            pl.BlockSpec((K, N), lambda i: (0, 0)),
            pl.BlockSpec((1, N), lambda i: (0, 0)),
            pl.BlockSpec((tm, N), lambda i: (i, 0)),
        ],
        out_specs=pl.BlockSpec((tm, N), lambda i: (i, 0)),
        compiler_params=_mosaic_params(1),
    )(x2d, w, b.reshape(1, N), res2d)


def pallas_norm_ffn(x2d, gamma, w1, b1, w2, b2, eps=1e-6):
    M, D = x2d.shape
    Dff = w1.shape[1]
    tm = _row_tile(M)
    kernel = functools.partial(_norm_ffn_kernel, eps=eps)
    return pl.pallas_call(
        kernel,
        out_shape=jax.ShapeDtypeStruct((M, D), x2d.dtype),
        grid=(M // tm,),
        in_specs=[
            pl.BlockSpec((tm, D), lambda i: (i, 0)),
            pl.BlockSpec((1, D), lambda i: (0, 0)),
            pl.BlockSpec((D, Dff), lambda i: (0, 0)),
            pl.BlockSpec((1, Dff), lambda i: (0, 0)),
            pl.BlockSpec((Dff, D), lambda i: (0, 0)),
            pl.BlockSpec((1, D), lambda i: (0, 0)),
        ],
        out_specs=pl.BlockSpec((tm, D), lambda i: (i, 0)),
        compiler_params=_mosaic_params(1),
    )(x2d, gamma.reshape(1, D), w1, b1.reshape(1, Dff), w2, b2.reshape(1, D))


def pallas_rmsnorm(x, weight, eps=1e-6):
    shape = x.shape
    D = shape[-1]
    x2d = x.reshape(-1, D)
    M = x2d.shape[0]
    tm = _row_tile(M)
    out = pl.pallas_call(
        functools.partial(_rmsnorm_kernel, eps=eps),
        out_shape=jax.ShapeDtypeStruct((M, D), x.dtype),
        grid=(M // tm,),
        in_specs=[pl.BlockSpec((tm, D), lambda i: (i, 0)),
                  pl.BlockSpec((1, D), lambda i: (0, 0))],
        out_specs=pl.BlockSpec((tm, D), lambda i: (i, 0)),
        compiler_params=_mosaic_params(1),
    )(x2d, weight.reshape(1, D))
    return out.reshape(shape)


def pallas_attention(q, k, v, kv_mask, causal):
    """q/k/v: [B,H,S,Dh]; kv_mask: [B,1,Sk] (1 keep / 0 pad). Returns [B,Sq,H*Dh]."""
    B, H, Sq, Dh = q.shape
    Sk = k.shape[2]
    scale = 1.0 / math.sqrt(Dh)
    kernel = functools.partial(_attention_kernel, scale=scale, causal=causal, n_heads=H)
    return pl.pallas_call(
        kernel,
        out_shape=jax.ShapeDtypeStruct((B, Sq, H * Dh), q.dtype),
        grid=(B,),
        in_specs=[
            pl.BlockSpec((1, H, Sq, Dh), lambda b: (b, 0, 0, 0)),
            pl.BlockSpec((1, H, Sk, Dh), lambda b: (b, 0, 0, 0)),
            pl.BlockSpec((1, H, Sk, Dh), lambda b: (b, 0, 0, 0)),
            pl.BlockSpec((1, 1, Sk), lambda b: (b, 0, 0)),
        ],
        out_specs=pl.BlockSpec((1, Sq, H * Dh), lambda b: (b, 0, 0)),
        compiler_params=_mosaic_params(1),
    )(q, k, v, kv_mask)


def pallas_lm_head(x2d, emb):
    """Tied lm_head: logits = hidden @ emb^T, tiled over the vocab axis."""
    M, D = x2d.shape
    V = emb.shape[0]
    tn = 128 if V % 128 == 0 else V
    # TODO(synk): for real T5 sizes also tile over D with an f32 VMEM accumulator.
    return pl.pallas_call(
        _lm_head_kernel,
        out_shape=jax.ShapeDtypeStruct((M, V), x2d.dtype),
        grid=(V // tn,),
        in_specs=[
            pl.BlockSpec((M, D), lambda j: (0, 0)),
            pl.BlockSpec((tn, D), lambda j: (j, 0)),
        ],
        out_specs=pl.BlockSpec((M, tn), lambda j: (0, j)),
        compiler_params=_mosaic_params(1),
    )(x2d, emb)


# ----------------------------- Model (glue) -------------------------------- #

def self_attention_block(h, p, kv_mask, n_heads, causal):
    B, S, D = h.shape
    dh = D // n_heads
    h2d = h.reshape(B * S, D)
    qkv = pallas_norm_linear(h2d, p["ln"], p["wqkv"], p["bqkv"])        # [B*S, 3D]
    qkv = qkv.reshape(B, S, 3, n_heads, dh)
    q = qkv[:, :, 0].transpose(0, 2, 1, 3)                              # [B,H,S,dh]
    k = qkv[:, :, 1].transpose(0, 2, 1, 3)
    v = qkv[:, :, 2].transpose(0, 2, 1, 3)
    attn = pallas_attention(q, k, v, kv_mask, causal=causal)            # [B,S,D]
    out = pallas_linear_residual(attn.reshape(B * S, D), p["wo"], p["bo"], h2d)
    return out.reshape(B, S, D)


def cross_attention_block(h, enc, p, kv_mask, n_heads):
    B, Sq, D = h.shape
    Sk = enc.shape[1]
    dh = D // n_heads
    h2d = h.reshape(B * Sq, D)
    q = pallas_norm_linear(h2d, p["ln"], p["wq"], p["bq"])              # [B*Sq, D]
    kv = pallas_linear(enc.reshape(B * Sk, D), p["wkv"], p["bkv"])      # [B*Sk, 2D]
    q = q.reshape(B, Sq, n_heads, dh).transpose(0, 2, 1, 3)
    kv = kv.reshape(B, Sk, 2, n_heads, dh)
    k = kv[:, :, 0].transpose(0, 2, 1, 3)
    v = kv[:, :, 1].transpose(0, 2, 1, 3)
    attn = pallas_attention(q, k, v, kv_mask, causal=False)
    out = pallas_linear_residual(attn.reshape(B * Sq, D), p["wo"], p["bo"], h2d)
    return out.reshape(B, Sq, D)


def ffn_block(h, p):
    B, S, D = h.shape
    out = pallas_norm_ffn(h.reshape(B * S, D), p["ln"],
                          p["w1"], p["b1"], p["w2"], p["b2"])
    return out.reshape(B, S, D)


def t5_forward(params, config, input_ids, decoder_input_ids,
               attention_mask=None, decoder_attention_mask=None):
    n_heads = config["num_heads"]
    if attention_mask is None:
        attention_mask = jnp.ones_like(input_ids)
    if decoder_attention_mask is None:
        decoder_attention_mask = jnp.ones_like(decoder_input_ids)

    emb = params["embedding"]                                   # [V, D]
    enc_h = jnp.take(emb, input_ids, axis=0)                    # [B, Ssrc, D]
    dec_h = jnp.take(emb, decoder_input_ids, axis=0)            # [B, Stgt, D]

    B = input_ids.shape[0]
    enc_kv_mask = attention_mask.astype(jnp.float32).reshape(B, 1, -1)          # [B,1,Ssrc]
    dec_kv_mask = decoder_attention_mask.astype(jnp.float32).reshape(B, 1, -1)  # [B,1,Stgt]

    for lp in params["encoder_layers"]:
        enc_h = self_attention_block(enc_h, lp["attn"], enc_kv_mask, n_heads, causal=False)
        enc_h = ffn_block(enc_h, lp["ffn"])

    for lp in params["decoder_layers"]:
        dec_h = self_attention_block(dec_h, lp["self_attn"], dec_kv_mask, n_heads, causal=True)
        dec_h = cross_attention_block(dec_h, enc_h, lp["cross_attn"], enc_kv_mask, n_heads)
        dec_h = ffn_block(dec_h, lp["ffn"])

    dec_h = pallas_rmsnorm(dec_h, params["final_ln"])

    B, T, D = dec_h.shape
    logits = pallas_lm_head(dec_h.reshape(B * T, D), emb).reshape(B, T, -1)
    return {"logits": logits,
            "encoder_last_hidden_state": enc_h,
            "last_hidden_state": dec_h}


# ----------------------------- Parameter init ------------------------------ #

def init_params(key, config):
    D = config["d_model"]
    Dff = config["d_ff"]
    V = config["vocab_size"]
    L = config["num_layers"]
    std = D ** (-0.5)

    def dense(k, din, dout):
        return jax.random.normal(k, (din, dout), jnp.float32) * std

    def zeros(n):
        return jnp.zeros((n,), jnp.float32)

    def ones(n):
        return jnp.ones((n,), jnp.float32)

    def self_attn_params(k):
        k1, k2 = jax.random.split(k)
        return {"wqkv": dense(k1, D, 3 * D), "bqkv": zeros(3 * D),
                "wo": dense(k2, D, D), "bo": zeros(D), "ln": ones(D)}

    def cross_attn_params(k):
        k1, k2, k3 = jax.random.split(k, 3)
        return {"wq": dense(k1, D, D), "bq": zeros(D),
                "wkv": dense(k2, D, 2 * D), "bkv": zeros(2 * D),
                "wo": dense(k3, D, D), "bo": zeros(D), "ln": ones(D)}

    def ffn_params(k):
        k1, k2 = jax.random.split(k)
        return {"w1": dense(k1, D, Dff), "b1": zeros(Dff),
                "w2": dense(k2, Dff, D), "b2": zeros(D), "ln": ones(D)}

    n_keys = 1 + 2 * L + 3 * L            # embedding + enc(attn,ffn) + dec(self,cross,ffn)
    keys = iter(jax.random.split(key, n_keys))

    params = {
        "embedding": jax.random.normal(next(keys), (V, D), jnp.float32),  # std = 1.0
        "final_ln": ones(D),
        "encoder_layers": [],
        "decoder_layers": [],
    }
    for _ in range(L):
        params["encoder_layers"].append({
            "attn": self_attn_params(next(keys)),
            "ffn": ffn_params(next(keys)),
        })
    for _ in range(L):
        params["decoder_layers"].append({
            "self_attn": self_attn_params(next(keys)),
            "cross_attn": cross_attn_params(next(keys)),
            "ffn": ffn_params(next(keys)),
        })
    return params


# --------------------------------- Main ------------------------------------ #

if __name__ == "__main__":
    config = {
        "vocab_size": 256,
        "d_model": 32,
        "num_layers": 2,
        "num_heads": 4,
        "d_ff": 64,
        "dropout_rate": 0.0,   # eval mode: dropout is a no-op
    }

    key = jax.random.PRNGKey(0)
    k_params, k_src, k_tgt = jax.random.split(key, 3)
    params = init_params(k_params, config)

    batch, src_len, tgt_len = 2, 8, 8
    input_ids = jax.random.randint(k_src, (batch, src_len), 0, config["vocab_size"], jnp.int32)
    decoder_input_ids = jax.random.randint(k_tgt, (batch, tgt_len), 0, config["vocab_size"], jnp.int32)

    @jax.jit
    def run(p, src, tgt):
        return t5_forward(p, config, src, tgt)

    outputs = run(params, input_ids, decoder_input_ids)
    logits = jax.block_until_ready(outputs["logits"])

    assert logits.shape == (batch, tgt_len, config["vocab_size"])
    assert bool(jnp.all(jnp.isfinite(logits)))
    print("KERNEL_OK")
</pallas_src>

<mosaic_0001>
module attributes {stable_mosaic.version = 11 : i64} {
  func.func @_norm_linear_kernel(%arg0: i32, %arg1: memref<16x32xf32, #tpu.memory_space<vmem>>, %arg2: memref<1x32xf32, #tpu.memory_space<vmem>>, %arg3: memref<32x96xf32, #tpu.memory_space<vmem>>, %arg4: memref<1x96xf32, #tpu.memory_space<vmem>>, %arg5: memref<16x96xf32, #tpu.memory_space<vmem>>) attributes {dimension_semantics = [#tpu.dimension_semantics<parallel>], iteration_bounds = array<i64: 1>, scalar_prefetch = 0 : i64, scratch_operands = 0 : i64, tpu.core_type = #tpu.core_type<tc>, window_params = [{transform_indices = @transform_0, window_bounds = array<i64: 16, 32>}, {pipeline_mode = #tpu.pipeline_mode<synchronous>, transform_indices = @transform_1, window_bounds = array<i64: 1, 32>}, {pipeline_mode = #tpu.pipeline_mode<synchronous>, transform_indices = @transform_2, window_bounds = array<i64: 32, 96>}, {pipeline_mode = #tpu.pipeline_mode<synchronous>, transform_indices = @transform_3, window_bounds = array<i64: 1, 96>}, {transform_indices = @transform_4, window_bounds = array<i64: 16, 96>}]} {
    %c0 = arith.constant 0 : index
    %c0_0 = arith.constant 0 : index
    %0 = vector.load %arg1[%c0, %c0_0] : memref<16x32xf32, #tpu.memory_space<vmem>>, vector<16x32xf32>
    %1 = arith.mulf %0, %0 : vector<16x32xf32>
    %cst = arith.constant dense<0.000000e+00> : vector<16xf32>
    %2 = vector.multi_reduction <add>, %1, %cst [1] : vector<16x32xf32> to vector<16xf32>
    %3 = vector.shape_cast %2 : vector<16xf32> to vector<16x1xf32>
    %cst_1 = arith.constant 3.200000e+01 : f32
    %4 = vector.broadcast %cst_1 : f32 to vector<16x1xf32>
    %5 = arith.divf %3, %4 : vector<16x1xf32>
    %cst_2 = arith.constant 9.99999997E-7 : f32
    %6 = vector.broadcast %cst_2 : f32 to vector<16x1xf32>
    %7 = arith.addf %5, %6 : vector<16x1xf32>
    %8 = math.rsqrt %7 : vector<16x1xf32>
    %9 = vector.broadcast %8 : vector<16x1xf32> to vector<16x32xf32>
    %10 = arith.mulf %0, %9 : vector<16x32xf32>
    %c0_3 = arith.constant 0 : index
    %c0_4 = arith.constant 0 : index
    %11 = vector.load %arg2[%c0_3, %c0_4] : memref<1x32xf32, #tpu.memory_space<vmem>>, vector<1x32xf32>
    %12 = vector.broadcast %11 : vector<1x32xf32> to vector<16x32xf32>
    %13 = arith.mulf %10, %12 : vector<16x32xf32>
    %14 = arith.truncf %13 : vector<16x32xf32> to vector<16x32xbf16>
    %c0_5 = arith.constant 0 : index
    %c0_6 = arith.constant 0 : index
    %15 = vector.load %arg3[%c0_5, %c0_6] : memref<32x96xf32, #tpu.memory_space<vmem>>, vector<32x96xf32>
    %16 = arith.truncf %15 : vector<32x96xf32> to vector<32x96xbf16>
    %cst_7 = arith.constant dense<0.000000e+00> : vector<16x96xf32>
    %17 = tpu.matmul %14, %16, %cst_7 {dimension_numbers = #tpu.dot_dimension_numbers<[1], [0], [0], [1], [0, 0, 1, 1], [], []>} : vector<16x32xbf16>, vector<32x96xbf16>, vector<16x96xf32> -> vector<16x96xf32>
    %c0_8 = arith.constant 0 : index
    %c0_9 = arith.constant 0 : index
    %18 = vector.load %arg4[%c0_8, %c0_9] : memref<1x96xf32, #tpu.memory_space<vmem>>, vector<1x96xf32>
    %19 = vector.broadcast %18 : vector<1x96xf32> to vector<16x96xf32>
    %20 = arith.addf %17, %19 : vector<16x96xf32>
    %c0_10 = arith.constant 0 : index
    %c0_11 = arith.constant 0 : index
    %21 = vector.load %arg5[%c0_10, %c0_11] : memref<16x96xf32, #tpu.memory_space<vmem>>, vector<16x96xf32>
    tpu.vector_store %arg5[%c0_10, %c0_11], %20 {strides = array<i32>} : memref<16x96xf32, #tpu.memory_space<vmem>>, vector<16x96xf32>,
    return
  }
  func.func @transform_0(%arg0: i32) -> (i32, i32) {
    %c0_i32 = arith.constant 0 : i32
    %c0_i32_0 = arith.constant 0 : i32
    return %arg0, %c0_i32 : i32, i32
  }
  func.func @transform_1(%arg0: i32) -> (i32, i32) {
    %c0_i32 = arith.constant 0 : i32
    %c0_i32_0 = arith.constant 0 : i32
    %c0_i32_1 = arith.constant 0 : i32
    return %c0_i32, %c0_i32_0 : i32, i32
  }
  func.func @transform_2(%arg0: i32) -> (i32, i32) {
    %c0_i32 = arith.constant 0 : i32
    %c0_i32_0 = arith.constant 0 : i32
    %c0_i32_1 = arith.constant 0 : i32
    return %c0_i32, %c0_i32_0 : i32, i32
  }
  func.func @transform_3(%arg0: i32) -> (i32, i32) {
    %c0_i32 = arith.constant 0 : i32
    %c0_i32_0 = arith.constant 0 : i32
    %c0_i32_1 = arith.constant 0 : i32
    return %c0_i32, %c0_i32_0 : i32, i32
  }
  func.func @transform_4(%arg0: i32) -> (i32, i32) {
    %c0_i32 = arith.constant 0 : i32
    %c0_i32_0 = arith.constant 0 : i32
    return %arg0, %c0_i32 : i32, i32
  }
}

module attributes {stable_mosaic.version = 11 : i64} {
  func.func @_attention_kernel(%arg0: i32, %arg1: memref<1x4x8x8xf32, #tpu.memory_space<vmem>>, %arg2: memref<1x4x8x8xf32, #tpu.memory_space<vmem>>, %arg3: memref<1x4x8x8xf32, #tpu.memory_space<vmem>>, %arg4: memref<1x1x8xf32, #tpu.memory_space<vmem>>, %arg5: memref<1x8x32xf32, #tpu.memory_space<vmem>>) attributes {dimension_semantics = [#tpu.dimension_semantics<parallel>], iteration_bounds = array<i64: 2>, scalar_prefetch = 0 : i64, scratch_operands = 0 : i64, tpu.core_type = #tpu.core_type<tc>, window_params = [{transform_indices = @transform_0, window_bounds = array<i64: 1, 4, 8, 8>}, {transform_indices = @transform_1, window_bounds = array<i64: 1, 4, 8, 8>}, {transform_indices = @transform_2, window_bounds = array<i64: 1, 4, 8, 8>}, {transform_indices = @transform_3, window_bounds = array<i64: 1, 1, 8>}, {transform_indices = @transform_4, window_bounds = array<i64: 1, 8, 32>}]} {
    %c0 = arith.constant 0 : index
    %c0_0 = arith.constant 0 : index
    %c0_1 = arith.constant 0 : index
    %c0_2 = arith.constant 0 : index
    %0 = vector.load %arg1[%c0, %c0_0, %c0_1, %c0_2] : memref<1x4x8x8xf32, #tpu.memory_space<vmem>>, vector<1x4x8x8xf32>
    %1 = vector.shape_cast %0 : vector<1x4x8x8xf32> to vector<4x8x8xf32>
    %c0_3 = arith.constant 0 : index
    %c0_4 = arith.constant 0 : index
    %c0_5 = arith.constant 0 : index
    %c0_6 = arith.constant 0 : index
    %2 = vector.load %arg2[%c0_3, %c0_4, %c0_5, %c0_6] : memref<1x4x8x8xf32, #tpu.memory_space<vmem>>, vector<1x4x8x8xf32>
    %3 = vector.shape_cast %2 : vector<1x4x8x8xf32> to vector<4x8x8xf32>
    %c0_7 = arith.constant 0 : index
    %c0_8 = arith.constant 0 : index
    %c0_9 = arith.constant 0 : index
    %c0_10 = arith.constant 0 : index
    %4 = vector.load %arg3[%c0_7, %c0_8, %c0_9, %c0_10] : memref<1x4x8x8xf32, #tpu.memory_space<vmem>>, vector<1x4x8x8xf32>
    %5 = vector.shape_cast %4 : vector<1x4x8x8xf32> to vector<4x8x8xf32>
    %c0_11 = arith.constant 0 : index
    %c0_12 = arith.constant 0 : index
    %c0_13 = arith.constant 0 : index
    %6 = vector.load %arg4[%c0_11, %c0_12, %c0_13] : memref<1x1x8xf32, #tpu.memory_space<vmem>>, vector<1x1x8xf32>
    %7 = vector.shape_cast %6 : vector<1x1x8xf32> to vector<1x8xf32>
    %cst = arith.constant 1.000000e+00 : f32
    %8 = vector.broadcast %cst : f32 to vector<1x8xf32>
    %9 = arith.subf %8, %7 : vector<1x8xf32>
    %cst_14 = arith.constant -1.000000e+09 : f32
    %10 = vector.broadcast %cst_14 : f32 to vector<1x8xf32>
    %11 = arith.mulf %9, %10 : vector<1x8xf32>
    %12 = vector.extract_strided_slice %1 {offsets = [0, 0, 0], sizes = [1, 8, 8], strides = [1, 1, 1]} : vector<4x8x8xf32> to vector<1x8x8xf32>
    %13 = vector.shape_cast %12 : vector<1x8x8xf32> to vector<8x8xf32>
    %14 = arith.truncf %13 : vector<8x8xf32> to vector<8x8xbf16>
    %15 = vector.extract_strided_slice %3 {offsets = [0, 0, 0], sizes = [1, 8, 8], strides = [1, 1, 1]} : vector<4x8x8xf32> to vector<1x8x8xf32>
    %16 = vector.shape_cast %15 : vector<1x8x8xf32> to vector<8x8xf32>
    %17 = arith.truncf %16 : vector<8x8xf32> to vector<8x8xbf16>
    %cst_15 = arith.constant dense<0.000000e+00> : vector<8x8xf32>
    %18 = tpu.matmul %14, %17, %cst_15 {dimension_numbers = #tpu.dot_dimension_numbers<[1], [1], [0], [0], [0, 0, 1, 0], [], []>} : vector<8x8xbf16>, vector<8x8xbf16>, vector<8x8xf32> -> vector<8x8xf32>
    %cst_16 = arith.constant 0.353553385 : f32
    %19 = vector.broadcast %cst_16 : f32 to vector<8x8xf32>
    %20 = arith.mulf %18, %19 : vector<8x8xf32>
    %21 = vector.broadcast %11 : vector<1x8xf32> to vector<8x8xf32>
    %22 = arith.addf %20, %21 : vector<8x8xf32>
    %cst_17 = arith.constant dense<0xFF800000> : vector<8xf32>
    %23 = vector.multi_reduction <maximumf>, %22, %cst_17 [1] : vector<8x8xf32> to vector<8xf32>
    %24 = vector.shape_cast %23 : vector<8xf32> to vector<8x1xf32>
    %25 = vector.broadcast %24 : vector<8x1xf32> to vector<8x8xf32>
    %26 = arith.subf %22, %25 : vector<8x8xf32>
    %27 = math.exp %26 : vector<8x8xf32>
    %cst_18 = arith.constant dense<0.000000e+00> : vector<8xf32>
    %28 = vector.multi_reduction <add>, %27, %cst_18 [1] : vector<8x8xf32> to vector<8xf32>
    %29 = vector.shape_cast %28 : vector<8xf32> to vector<8x1xf32>
    %30 = tpu.reciprocal %29 {approx = true} : vector<8x1xf32> -> vector<8x1xf32>
    %31 = vector.broadcast %30 : vector<8x1xf32> to vector<8x8xf32>
    %32 = arith.mulf %27, %31 : vector<8x8xf32>
    %33 = arith.truncf %32 : vector<8x8xf32> to vector<8x8xbf16>
    %34 = vector.extract_strided_slice %5 {offsets = [0, 0, 0], sizes = [1, 8, 8], strides = [1, 1, 1]} : vector<4x8x8xf32> to vector<1x8x8xf32>
    %35 = vector.shape_cast %34 : vector<1x8x8xf32> to vector<8x8xf32>
    %36 = arith.truncf %35 : vector<8x8xf32> to vector<8x8xbf16>
    %cst_19 = arith.constant dense<0.000000e+00> : vector<8x8xf32>
    %37 = tpu.matmul %33, %36, %cst_19 {dimension_numbers = #tpu.dot_dimension_numbers<[1], [0], [0], [1], [0, 0, 1, 1], [], []>} : vector<8x8xbf16>, vector<8x8xbf16>, vector<8x8xf32> -> vector<8x8xf32>
    %38 = vector.extract_strided_slice %1 {offsets = [1, 0, 0], sizes = [1, 8, 8], strides = [1, 1, 1]} : vector<4x8x8xf32> to vector<1x8x8xf32>
    %39 = vector.shape_cast %38 : vector<1x8x8xf32> to vector<8x8xf32>
    %40 = arith.truncf %39 : vector<8x8xf32> to vector<8x8xbf16>
    %41 = vector.extract_strided_slice %3 {offsets = [1, 0, 0], sizes = [1, 8, 8], strides = [1, 1, 1]} : vector<4x8x8xf32> to vector<1x8x8xf32>
    %42 = vector.shape_cast %41 : vector<1x8x8xf32> to vector<8x8xf32>
    %43 = arith.truncf %42 : vector<8x8xf32> to vector<8x8xbf16>
    %cst_20 = arith.constant dense<0.000000e+00> : vector<8x8xf32>
    %44 = tpu.matmul %40, %43, %cst_20 {dimension_numbers = #tpu.dot_dimension_numbers<[1], [1], [0], [0], [0, 0, 1, 0], [], []>} : vector<8x8xbf16>, vector<8x8xbf16>, vector<8x8xf32> -> vector<8x8xf32>
    %cst_21 = arith.constant 0.353553385 : f32
    %45 = vector.broadcast %cst_21 : f32 to vector<8x8xf32>
    %46 = arith.mulf %44, %45 : vector<8x8xf32>
    %47 = vector.broadcast %11 : vector<1x8xf32> to vector<8x8xf32>
    %48 = arith.addf %46, %47 : vector<8x8xf32>
    %cst_22 = arith.constant dense<0xFF800000> : vector<8xf32>
    %49 = vector.multi_reduction <maximumf>, %48, %cst_22 [1] : vector<8x8xf32> to vector<8xf32>
    %50 = vector.shape_cast %49 : vector<8xf32> to vector<8x1xf32>
    %51 = vector.broadcast %50 : vector<8x1xf32> to vector<8x8xf32>
    %52 = arith.subf %48, %51 : vector<8x8xf32>
    %53 = math.exp %52 : vector<8x8xf32>
    %cst_23 = arith.constant dense<0.000000e+00> : vector<8xf32>
    %54 = vector.multi_reduction <add>, %53, %cst_23 [1] : vector<8x8xf32> to vector<8xf32>
    %55 = vector.shape_cast %54 : vector<8xf32> to vector<8x1xf32>
    %56 = tpu.reciprocal %55 {approx = true} : vector<8x1xf32> -> vector<8x1xf32>
    %57 = vector.broadcast %56 : vector<8x1xf32> to vector<8x8xf32>
    %58 = arith.mulf %53, %57 : vector<8x8xf32>
    %59 = arith.truncf %58 : vector<8x8xf32> to vector<8x8xbf16>
    %60 = vector.extract_strided_slice %5 {offsets = [1, 0, 0], sizes = [1, 8, 8], strides = [1, 1, 1]} : vector<4x8x8xf32> to vector<1x8x8xf32>
    %61 = vector.shape_cast %60 : vector<1x8x8xf32> to vector<8x8xf32>
    %62 = arith.truncf %61 : vector<8x8xf32> to vector<8x8xbf16>
    %cst_24 = arith.constant dense<0.000000e+00> : vector<8x8xf32>
    %63 = tpu.matmul %59, %62, %cst_24 {dimension_numbers = #tpu.dot_dimension_numbers<[1], [0], [0], [1], [0, 0, 1, 1], [], []>} : vector<8x8xbf16>, vector<8x8xbf16>, vector<8x8xf32> -> vector<8x8xf32>
    %64 = vector.extract_strided_slice %1 {offsets = [2, 0, 0], sizes = [1, 8, 8], strides = [1, 1, 1]} : vector<4x8x8xf32> to vector<1x8x8xf32>
    %65 = vector.shape_cast %64 : vector<1x8x8xf32> to vector<8x8xf32>
    %66 = arith.truncf %65 : vector<8x8xf32> to vector<8x8xbf16>
    %67 = vector.extract_strided_slice %3 {offsets = [2, 0, 0], sizes = [1, 8, 8], strides = [1, 1, 1]} : vector<4x8x8xf32> to vector<1x8x8xf32>
    %68 = vector.shape_cast %67 : vector<1x8x8xf32> to vector<8x8xf32>
    %69 = arith.truncf %68 : vector<8x8xf32> to vector<8x8xbf16>
    %cst_25 = arith.constant dense<0.000000e+00> : vector<8x8xf32>
    %70 = tpu.matmul %66, %69, %cst_25 {dimension_numbers = #tpu.dot_dimension_numbers<[1], [1], [0], [0], [0, 0, 1, 0], [], []>} : vector<8x8xbf16>, vector<8x8xbf16>, vector<8x8xf32> -> vector<8x8xf32>
    %cst_26 = arith.constant 0.353553385 : f32
    %71 = vector.broadcast %cst_26 : f32 to vector<8x8xf32>
    %72 = arith.mulf %70, %71 : vector<8x8xf32>
    %73 = vector.broadcast %11 : vector<1x8xf32> to vector<8x8xf32>
    %74 = arith.addf %72, %73 : vector<8x8xf32>
    %cst_27 = arith.constant dense<0xFF800000> : vector<8xf32>
    %75 = vector.multi_reduction <maximumf>, %74, %cst_27 [1] : vector<8x8xf32> to vector<8xf32>
    %76 = vector.shape_cast %75 : vector<8xf32> to vector<8x1xf32>
    %77 = vector.broadcast %76 : vector<8x1xf32> to vector<8x8xf32>
    %78 = arith.subf %74, %77 : vector<8x8xf32>
    %79 = math.exp %78 : vector<8x8xf32>
    %cst_28 = arith.constant dense<0.000000e+00> : vector<8xf32>
    %80 = vector.multi_reduction <add>, %79, %cst_28 [1] : vector<8x8xf32> to vector<8xf32>
    %81 = vector.shape_cast %80 : vector<8xf32> to vector<8x1xf32>
    %82 = tpu.reciprocal %81 {approx = true} : vector<8x1xf32> -> vector<8x1xf32>
    %83 = vector.broadcast %82 : vector<8x1xf32> to vector<8x8xf32>
    %84 = arith.mulf %79, %83 : vector<8x8xf32>
    %85 = arith.truncf %84 : vector<8x8xf32> to vector<8x8xbf16>
    %86 = vector.extract_strided_slice %5 {offsets = [2, 0, 0], sizes = [1, 8, 8], strides = [1, 1, 1]} : vector<4x8x8xf32> to vector<1x8x8xf32>
    %87 = vector.shape_cast %86 : vector<1x8x8xf32> to vector<8x8xf32>
    %88 = arith.truncf %87 : vector<8x8xf32> to vector<8x8xbf16>
    %cst_29 = arith.constant dense<0.000000e+00> : vector<8x8xf32>
    %89 = tpu.matmul %85, %88, %cst_29 {dimension_numbers = #tpu.dot_dimension_numbers<[1], [0], [0], [1], [0, 0, 1, 1], [], []>} : vector<8x8xbf16>, vector<8x8xbf16>, vector<8x8xf32> -> vector<8x8xf32>
    %90 = vector.extract_strided_slice %1 {offsets = [3, 0, 0], sizes = [1, 8, 8], strides = [1, 1, 1]} : vector<4x8x8xf32> to vector<1x8x8xf32>
    %91 = vector.shape_cast %90 : vector<1x8x8xf32> to vector<8x8xf32>
    %92 = arith.truncf %91 : vector<8x8xf32> to vector<8x8xbf16>
    %93 = vector.extract_strided_slice %3 {offsets = [3, 0, 0], sizes = [1, 8, 8], strides = [1, 1, 1]} : vector<4x8x8xf32> to vector<1x8x8xf32>
    %94 = vector.shape_cast %93 : vector<1x8x8xf32> to vector<8x8xf32>
    %95 = arith.truncf %94 : vector<8x8xf32> to vector<8x8xbf16>
    %cst_30 = arith.constant dense<0.000000e+00> : vector<8x8xf32>
    %96 = tpu.matmul %92, %95, %cst_30 {dimension_numbers = #tpu.dot_dimension_numbers<[1], [1], [0], [0], [0, 0, 1, 0], [], []>} : vector<8x8xbf16>, vector<8x8xbf16>, vector<8x8xf32> -> vector<8x8xf32>
    %cst_31 = arith.constant 0.353553385 : f32
    %97 = vector.broadcast %cst_31 : f32 to vector<8x8xf32>
    %98 = arith.mulf %96, %97 : vector<8x8xf32>
    %99 = vector.broadcast %11 : vector<1x8xf32> to vector<8x8xf32>
    %100 = arith.addf %98, %99 : vector<8x8xf32>
    %cst_32 = arith.constant dense<0xFF800000> : vector<8xf32>
    %101 = vector.multi_reduction <maximumf>, %100, %cst_32 [1] : vector<8x8xf32> to vector<8xf32>
    %102 = vector.shape_cast %101 : vector<8xf32> to vector<8x1xf32>
    %103 = vector.broadcast %102 : vector<8x1xf32> to vector<8x8xf32>
    %104 = arith.subf %100, %103 : vector<8x8xf32>
    %105 = math.exp %104 : vector<8x8xf32>
    %cst_33 = arith.constant dense<0.000000e+00> : vector<8xf32>
    %106 = vector.multi_reduction <add>, %105, %cst_33 [1] : vector<8x8xf32> to vector<8xf32>
    %107 = vector.shape_cast %106 : vector<8xf32> to vector<8x1xf32>
    %108 = tpu.reciprocal %107 {approx = true} : vector<8x1xf32> -> vector<8x1xf32>
    %109 = vector.broadcast %108 : vector<8x1xf32> to vector<8x8xf32>
    %110 = arith.mulf %105, %109 : vector<8x8xf32>
    %111 = arith.truncf %110 : vector<8x8xf32> to vector<8x8xbf16>
    %112 = vector.extract_strided_slice %5 {offsets = [3, 0, 0], sizes = [1, 8, 8], strides = [1, 1, 1]} : vector<4x8x8xf32> to vector<1x8x8xf32>
    %113 = vector.shape_cast %112 : vector<1x8x8xf32> to vector<8x8xf32>
    %114 = arith.truncf %113 : vector<8x8xf32> to vector<8x8xbf16>
    %cst_34 = arith.constant dense<0.000000e+00> : vector<8x8xf32>
    %115 = tpu.matmul %111, %114, %cst_34 {dimension_numbers = #tpu.dot_dimension_numbers<[1], [0], [0], [1], [0, 0, 1, 1], [], []>} : vector<8x8xbf16>, vector<8x8xbf16>, vector<8x8xf32> -> vector<8x8xf32>
    %116 = tpu.concatenate %37, %63, %89, %115 in 1 : vector<8x8xf32>, vector<8x8xf32>, vector<8x8xf32>, vector<8x8xf32> -> vector<8x32xf32>
    %c0_35 = arith.constant 0 : index
    %c0_36 = arith.constant 0 : index
    %c0_37 = arith.constant 0 : index
    %117 = vector.load %arg5[%c0_35, %c0_36, %c0_37] : memref<1x8x32xf32, #tpu.memory_space<vmem>>, vector<1x8x32xf32>
    %118 = vector.shape_cast %117 : vector<1x8x32xf32> to vector<8x32xf32>
    %119 = vector.shape_cast %116 : vector<8x32xf32> to vector<1x8x32xf32>
    tpu.vector_store %arg5[%c0_35, %c0_36, %c0_37], %119 {strides = array<i32>} : memref<1x8x32xf32, #tpu.memory_space<vmem>>, vector<1x8x32xf32>,
    return
  }
  func.func @transform_0(%arg0: i32) -> (i32, i32, i32, i32) {
    %c0_i32 = arith.constant 0 : i32
    %c0_i32_0 = arith.constant 0 : i32
    %c0_i32_1 = arith.constant 0 : i32
    %c0_i32_2 = arith.constant 0 : i32
    return %arg0, %c0_i32, %c0_i32_0, %c0_i32_1 : i32, i32, i32, i32
  }
  func.func @transform_1(%arg0: i32) -> (i32, i32, i32, i32) {
    %c0_i32 = arith.constant 0 : i32
    %c0_i32_0 = arith.constant 0 : i32
    %c0_i32_1 = arith.constant 0 : i32
    %c0_i32_2 = arith.constant 0 : i32
    return %arg0, %c0_i32, %c0_i32_0, %c0_i32_1 : i32, i32, i32, i32
  }
  func.func @transform_2(%arg0: i32) -> (i32, i32, i32, i32) {
    %c0_i32 = arith.constant 0 : i32
    %c0_i32_0 = arith.constant 0 : i32
    %c0_i32_1 = arith.constant 0 : i32
    %c0_i32_2 = arith.constant 0 : i32
    return %arg0, %c0_i32, %c0_i32_0, %c0_i32_1 : i32, i32, i32, i32
  }
  func.func @transform_3(%arg0: i32) -> (i32, i32, i32) {
    %c0_i32 = arith.constant 0 : i32
    %c0_i32_0 = arith.constant 0 : i32
    %c0_i32_1 = arith.constant 0 : i32
    return %arg0, %c0_i32, %c0_i32_0 : i32, i32, i32
  }
  func.func @transform_4(%arg0: i32) -> (i32, i32, i32) {
    %c0_i32 = arith.constant 0 : i32
    %c0_i32_0 = arith.constant 0 : i32
    %c0_i32_1 = arith.constant 0 : i32
    return %arg0, %c0_i32, %c0_i32_0 : i32, i32, i32
  }
}

module attributes {stable_mosaic.version = 11 : i64} {
  func.func @_linear_residual_kernel(%arg0: i32, %arg1: memref<16x32xf32, #tpu.memory_space<vmem>>, %arg2: memref<32x32xf32, #tpu.memory_space<vmem>>, %arg3: memref<1x32xf32, #tpu.memory_space<vmem>>, %arg4: memref<16x32xf32, #tpu.memory_space<vmem>>, %arg5: memref<16x32xf32, #tpu.memory_space<vmem>>) attributes {dimension_semantics = [#tpu.dimension_semantics<parallel>], iteration_bounds = array<i64: 1>, scalar_prefetch = 0 : i64, scratch_operands = 0 : i64, tpu.core_type = #tpu.core_type<tc>, window_params = [{transform_indices = @transform_0, window_bounds = array<i64: 16, 32>}, {pipeline_mode = #tpu.pipeline_mode<synchronous>, transform_indices = @transform_1, window_bounds = array<i64: 32, 32>}, {pipeline_mode = #tpu.pipeline_mode<synchronous>, transform_indices = @transform_2, window_bounds = array<i64: 1, 32>}, {transform_indices = @transform_3, window_bounds = array<i64: 16, 32>}, {transform_indices = @transform_4, window_bounds = array<i64: 16, 32>}]} {
    %c0 = arith.constant 0 : index
    %c0_0 = arith.constant 0 : index
    %0 = vector.load %arg1[%c0, %c0_0] : memref<16x32xf32, #tpu.memory_space<vmem>>, vector<16x32xf32>
    %1 = arith.truncf %0 : vector<16x32xf32> to vector<16x32xbf16>
    %c0_1 = arith.constant 0 : index
    %c0_2 = arith.constant 0 : index
    %2 = vector.load %arg2[%c0_1, %c0_2] : memref<32x32xf32, #tpu.memory_space<vmem>>, vector<32x32xf32>
    %3 = arith.truncf %2 : vector<32x32xf32> to vector<32x32xbf16>
    %cst = arith.constant dense<0.000000e+00> : vector<16x32xf32>
    %4 = tpu.matmul %1, %3, %cst {dimension_numbers = #tpu.dot_dimension_numbers<[1], [0], [0], [1], [0, 0, 1, 1], [], []>} : vector<16x32xbf16>, vector<32x32xbf16>, vector<16x32xf32> -> vector<16x32xf32>
    %c0_3 = arith.constant 0 : index
    %c0_4 = arith.constant 0 : index
    %5 = vector.load %arg3[%c0_3, %c0_4] : memref<1x32xf32, #tpu.memory_space<vmem>>, vector<1x32xf32>
    %6 = vector.broadcast %5 : vector<1x32xf32> to vector<16x32xf32>
    %7 = arith.addf %4, %6 : vector<16x32xf32>
    %c0_5 = arith.constant 0 : index
    %c0_6 = arith.constant 0 : index
    %8 = vector.load %arg4[%c0_5, %c0_6] : memref<16x32xf32, #tpu.memory_space<vmem>>, vector<16x32xf32>
    %9 = arith.addf %8, %7 : vector<16x32xf32>
    %c0_7 = arith.constant 0 : index
    %c0_8 = arith.constant 0 : index
    %10 = vector.load %arg5[%c0_7, %c0_8] : memref<16x32xf32, #tpu.memory_space<vmem>>, vector<16x32xf32>
    tpu.vector_store %arg5[%c0_7, %c0_8], %9 {strides = array<i32>} : memref<16x32xf32, #tpu.memory_space<vmem>>, vector<16x32xf32>,
    return
  }
  func.func @transform_0(%arg0: i32) -> (i32, i32) {
    %c0_i32 = arith.constant 0 : i32
    %c0_i32_0 = arith.constant 0 : i32
    return %arg0, %c0_i32 : i32, i32
  }
  func.func @transform_1(%arg0: i32) -> (i32, i32) {
    %c0_i32 = arith.constant 0 : i32
    %c0_i32_0 = arith.constant 0 : i32
    %c0_i32_1 = arith.constant 0 : i32
    return %c0_i32, %c0_i32_0 : i32, i32
  }
  func.func @transform_2(%arg0: i32) -> (i32, i32) {
    %c0_i32 = arith.constant 0 : i32
    %c0_i32_0 = arith.constant 0 : i32
    %c0_i32_1 = arith.constant 0 : i32
    return %c0_i32, %c0_i32_0 : i32, i32
  }
  func.func @transform_3(%arg0: i32) -> (i32, i32) {
    %c0_i32 = arith.constant 0 : i32
    %c0_i32_0 = arith.constant 0 : i32
    return %arg0, %c0_i32 : i32, i32
  }
  func.func @transform_4(%arg0: i32) -> (i32, i32) {
    %c0_i32 = arith.constant 0 : i32
    %c0_i32_0 = arith.constant 0 : i32
    return %arg0, %c0_i32 : i32, i32
  }
}

module attributes {stable_mosaic.version = 11 : i64} {
  func.func @_norm_ffn_kernel(%arg0: i32, %arg1: memref<16x32xf32, #tpu.memory_space<vmem>>, %arg2: memref<1x32xf32, #tpu.memory_space<vmem>>, %arg3: memref<32x64xf32, #tpu.memory_space<vmem>>, %arg4: memref<1x64xf32, #tpu.memory_space<vmem>>, %arg5: memref<64x32xf32, #tpu.memory_space<vmem>>, %arg6: memref<1x32xf32, #tpu.memory_space<vmem>>, %arg7: memref<16x32xf32, #tpu.memory_space<vmem>>) attributes {dimension_semantics = [#tpu.dimension_semantics<parallel>], iteration_bounds = array<i64: 1>, scalar_prefetch = 0 : i64, scratch_operands = 0 : i64, tpu.core_type = #tpu.core_type<tc>, window_params = [{transform_indices = @transform_0, window_bounds = array<i64: 16, 32>}, {pipeline_mode = #tpu.pipeline_mode<synchronous>, transform_indices = @transform_1, window_bounds = array<i64: 1, 32>}, {pipeline_mode = #tpu.pipeline_mode<synchronous>, transform_indices = @transform_2, window_bounds = array<i64: 32, 64>}, {pipeline_mode = #tpu.pipeline_mode<synchronous>, transform_indices = @transform_3, window_bounds = array<i64: 1, 64>}, {pipeline_mode = #tpu.pipeline_mode<synchronous>, transform_indices = @transform_4, window_bounds = array<i64: 64, 32>}, {pipeline_mode = #tpu.pipeline_mode<synchronous>, transform_indices = @transform_5, window_bounds = array<i64: 1, 32>}, {transform_indices = @transform_6, window_bounds = array<i64: 16, 32>}]} {
    %c0 = arith.constant 0 : index
    %c0_0 = arith.constant 0 : index
    %0 = vector.load %arg1[%c0, %c0_0] : memref<16x32xf32, #tpu.memory_space<vmem>>, vector<16x32xf32>
    %1 = arith.mulf %0, %0 : vector<16x32xf32>
    %cst = arith.constant dense<0.000000e+00> : vector<16xf32>
    %2 = vector.multi_reduction <add>, %1, %cst [1] : vector<16x32xf32> to vector<16xf32>
    %3 = vector.shape_cast %2 : vector<16xf32> to vector<16x1xf32>
    %cst_1 = arith.constant 3.200000e+01 : f32
    %4 = vector.broadcast %cst_1 : f32 to vector<16x1xf32>
    %5 = arith.divf %3, %4 : vector<16x1xf32>
    %cst_2 = arith.constant 9.99999997E-7 : f32
    %6 = vector.broadcast %cst_2 : f32 to vector<16x1xf32>
    %7 = arith.addf %5, %6 : vector<16x1xf32>
    %8 = math.rsqrt %7 : vector<16x1xf32>
    %9 = vector.broadcast %8 : vector<16x1xf32> to vector<16x32xf32>
    %10 = arith.mulf %0, %9 : vector<16x32xf32>
    %c0_3 = arith.constant 0 : index
    %c0_4 = arith.constant 0 : index
    %11 = vector.load %arg2[%c0_3, %c0_4] : memref<1x32xf32, #tpu.memory_space<vmem>>, vector<1x32xf32>
    %12 = vector.broadcast %11 : vector<1x32xf32> to vector<16x32xf32>
    %13 = arith.mulf %10, %12 : vector<16x32xf32>
    %14 = arith.truncf %13 : vector<16x32xf32> to vector<16x32xbf16>
    %c0_5 = arith.constant 0 : index
    %c0_6 = arith.constant 0 : index
    %15 = vector.load %arg3[%c0_5, %c0_6] : memref<32x64xf32, #tpu.memory_space<vmem>>, vector<32x64xf32>
    %16 = arith.truncf %15 : vector<32x64xf32> to vector<32x64xbf16>
    %cst_7 = arith.constant dense<0.000000e+00> : vector<16x64xf32>
    %17 = tpu.matmul %14, %16, %cst_7 {dimension_numbers = #tpu.dot_dimension_numbers<[1], [0], [0], [1], [0, 0, 1, 1], [], []>} : vector<16x32xbf16>, vector<32x64xbf16>, vector<16x64xf32> -> vector<16x64xf32>
    %c0_8 = arith.constant 0 : index
    %c0_9 = arith.constant 0 : index
    %18 = vector.load %arg4[%c0_8, %c0_9] : memref<1x64xf32, #tpu.memory_space<vmem>>, vector<1x64xf32>
    %19 = vector.broadcast %18 : vector<1x64xf32> to vector<16x64xf32>
    %20 = arith.addf %17, %19 : vector<16x64xf32>
    %cst_10 = arith.constant 0.000000e+00 : f32
    %21 = vector.broadcast %cst_10 : f32 to vector<16x64xf32>
    %22 = arith.maximumf %20, %21 : vector<16x64xf32>
    %23 = arith.truncf %22 : vector<16x64xf32> to vector<16x64xbf16>
    %c0_11 = arith.constant 0 : index
    %c0_12 = arith.constant 0 : index
    %24 = vector.load %arg5[%c0_11, %c0_12] : memref<64x32xf32, #tpu.memory_space<vmem>>, vector<64x32xf32>
    %25 = arith.truncf %24 : vector<64x32xf32> to vector<64x32xbf16>
    %cst_13 = arith.constant dense<0.000000e+00> : vector<16x32xf32>
    %26 = tpu.matmul %23, %25, %cst_13 {dimension_numbers = #tpu.dot_dimension_numbers<[1], [0], [0], [1], [0, 0, 1, 1], [], []>} : vector<16x64xbf16>, vector<64x32xbf16>, vector<16x32xf32> -> vector<16x32xf32>
    %c0_14 = arith.constant 0 : index
    %c0_15 = arith.constant 0 : index
    %27 = vector.load %arg6[%c0_14, %c0_15] : memref<1x32xf32, #tpu.memory_space<vmem>>, vector<1x32xf32>
    %28 = vector.broadcast %27 : vector<1x32xf32> to vector<16x32xf32>
    %29 = arith.addf %26, %28 : vector<16x32xf32>
    %30 = arith.addf %0, %29 : vector<16x32xf32>
    %c0_16 = arith.constant 0 : index
    %c0_17 = arith.constant 0 : index
    %31 = vector.load %arg7[%c0_16, %c0_17] : memref<16x32xf32, #tpu.memory_space<vmem>>, vector<16x32xf32>
    tpu.vector_store %arg7[%c0_16, %c0_17], %30 {strides = array<i32>} : memref<16x32xf32, #tpu.memory_space<vmem>>, vector<16x32xf32>,
    return
  }
  func.func @transform_0(%arg0: i32) -> (i32, i32) {
    %c0_i32 = arith.constant 0 : i32
    %c0_i32_0 = arith.constant 0 : i32
    return %arg0, %c0_i32 : i32, i32
  }
  func.func @transform_1(%arg0: i32) -> (i32, i32) {
    %c0_i32 = arith.constant 0 : i32
    %c0_i32_0 = arith.constant 0 : i32
    %c0_i32_1 = arith.constant 0 : i32
    return %c0_i32, %c0_i32_0 : i32, i32
  }
  func.func @transform_2(%arg0: i32) -> (i32, i32) {
    %c0_i32 = arith.constant 0 : i32
    %c0_i32_0 = arith.constant 0 : i32
    %c0_i32_1 = arith.constant 0 : i32
    return %c0_i32, %c0_i32_0 : i32, i32
  }
  func.func @transform_3(%arg0: i32) -> (i32, i32) {
    %c0_i32 = arith.constant 0 : i32
    %c0_i32_0 = arith.constant 0 : i32
    %c0_i32_1 = arith.constant 0 : i32
    return %c0_i32, %c0_i32_0 : i32, i32
  }
  func.func @transform_4(%arg0: i32) -> (i32, i32) {
    %c0_i32 = arith.constant 0 : i32
    %c0_i32_0 = arith.constant 0 : i32
    %c0_i32_1 = arith.constant 0 : i32
    return %c0_i32, %c0_i32_0 : i32, i32
  }
  func.func @transform_5(%arg0: i32) -> (i32, i32) {
    %c0_i32 = arith.constant 0 : i32
    %c0_i32_0 = arith.constant 0 : i32
    %c0_i32_1 = arith.constant 0 : i32
    return %c0_i32, %c0_i32_0 : i32, i32
  }
  func.func @transform_6(%arg0: i32) -> (i32, i32) {
    %c0_i32 = arith.constant 0 : i32
    %c0_i32_0 = arith.constant 0 : i32
    return %arg0, %c0_i32 : i32, i32
  }
}

module attributes {stable_mosaic.version = 11 : i64} {
  func.func @_attention_kernel(%arg0: i32, %arg1: memref<1x4x8x8xf32, #tpu.memory_space<vmem>>, %arg2: memref<1x4x8x8xf32, #tpu.memory_space<vmem>>, %arg3: memref<1x4x8x8xf32, #tpu.memory_space<vmem>>, %arg4: memref<1x1x8xf32, #tpu.memory_space<vmem>>, %arg5: memref<1x8x32xf32, #tpu.memory_space<vmem>>) attributes {dimension_semantics = [#tpu.dimension_semantics<parallel>], iteration_bounds = array<i64: 2>, scalar_prefetch = 0 : i64, scratch_operands = 0 : i64, tpu.core_type = #tpu.core_type<tc>, window_params = [{transform_indices = @transform_0, window_bounds = array<i64: 1, 4, 8, 8>}, {transform_indices = @transform_1, window_bounds = array<i64: 1, 4, 8, 8>}, {transform_indices = @transform_2, window_bounds = array<i64: 1, 4, 8, 8>}, {transform_indices = @transform_3, window_bounds = array<i64: 1, 1, 8>}, {transform_indices = @transform_4, window_bounds = array<i64: 1, 8, 32>}]} {
    %c0 = arith.constant 0 : index
    %c0_0 = arith.constant 0 : index
    %c0_1 = arith.constant 0 : index
    %c0_2 = arith.constant 0 : index
    %0 = vector.load %arg1[%c0, %c0_0, %c0_1, %c0_2] : memref<1x4x8x8xf32, #tpu.memory_space<vmem>>, vector<1x4x8x8xf32>
    %1 = vector.shape_cast %0 : vector<1x4x8x8xf32> to vector<4x8x8xf32>
    %c0_3 = arith.constant 0 : index
    %c0_4 = arith.constant 0 : index
    %c0_5 = arith.constant 0 : index
    %c0_6 = arith.constant 0 : index
    %2 = vector.load %arg2[%c0_3, %c0_4, %c0_5, %c0_6] : memref<1x4x8x8xf32, #tpu.memory_space<vmem>>, vector<1x4x8x8xf32>
    %3 = vector.shape_cast %2 : vector<1x4x8x8xf32> to vector<4x8x8xf32>
    %c0_7 = arith.constant 0 : index
    %c0_8 = arith.constant 0 : index
    %c0_9 = arith.constant 0 : index
    %c0_10 = arith.constant 0 : index
    %4 = vector.load %arg3[%c0_7, %c0_8, %c0_9, %c0_10] : memref<1x4x8x8xf32, #tpu.memory_space<vmem>>, vector<1x4x8x8xf32>
    %5 = vector.shape_cast %4 : vector<1x4x8x8xf32> to vector<4x8x8xf32>
    %c0_11 = arith.constant 0 : index
    %c0_12 = arith.constant 0 : index
    %c0_13 = arith.constant 0 : index
    %6 = vector.load %arg4[%c0_11, %c0_12, %c0_13] : memref<1x1x8xf32, #tpu.memory_space<vmem>>, vector<1x1x8xf32>
    %7 = vector.shape_cast %6 : vector<1x1x8xf32> to vector<1x8xf32>
    %cst = arith.constant 1.000000e+00 : f32
    %8 = vector.broadcast %cst : f32 to vector<1x8xf32>
    %9 = arith.subf %8, %7 : vector<1x8xf32>
    %cst_14 = arith.constant -1.000000e+09 : f32
    %10 = vector.broadcast %cst_14 : f32 to vector<1x8xf32>
    %11 = arith.mulf %9, %10 : vector<1x8xf32>
    %12 = tpu.iota {dimensions = array<i32: 0>} : vector<8x8xi32>
    %13 = tpu.iota {dimensions = array<i32: 1>} : vector<8x8xi32>
    %14 = arith.cmpi sle, %13, %12 : vector<8x8xi32>
    %cst_15 = arith.constant 0.000000e+00 : f32
    %cst_16 = arith.constant -1.000000e+09 : f32
    %15 = vector.broadcast %cst_15 : f32 to vector<8x8xf32>
    %16 = vector.broadcast %cst_16 : f32 to vector<8x8xf32>
    %17 = arith.select %14, %15, %16 : vector<8x8xi1>, vector<8x8xf32>
    %18 = vector.broadcast %11 : vector<1x8xf32> to vector<8x8xf32>
    %19 = arith.addf %18, %17 : vector<8x8xf32>
    %20 = vector.extract_strided_slice %1 {offsets = [0, 0, 0], sizes = [1, 8, 8], strides = [1, 1, 1]} : vector<4x8x8xf32> to vector<1x8x8xf32>
    %21 = vector.shape_cast %20 : vector<1x8x8xf32> to vector<8x8xf32>
    %22 = arith.truncf %21 : vector<8x8xf32> to vector<8x8xbf16>
    %23 = vector.extract_strided_slice %3 {offsets = [0, 0, 0], sizes = [1, 8, 8], strides = [1, 1, 1]} : vector<4x8x8xf32> to vector<1x8x8xf32>
    %24 = vector.shape_cast %23 : vector<1x8x8xf32> to vector<8x8xf32>
    %25 = arith.truncf %24 : vector<8x8xf32> to vector<8x8xbf16>
    %cst_17 = arith.constant dense<0.000000e+00> : vector<8x8xf32>
    %26 = tpu.matmul %22, %25, %cst_17 {dimension_numbers = #tpu.dot_dimension_numbers<[1], [1], [0], [0], [0, 0, 1, 0], [], []>} : vector<8x8xbf16>, vector<8x8xbf16>, vector<8x8xf32> -> vector<8x8xf32>
    %cst_18 = arith.constant 0.353553385 : f32
    %27 = vector.broadcast %cst_18 : f32 to vector<8x8xf32>
    %28 = arith.mulf %26, %27 : vector<8x8xf32>
    %29 = arith.addf %28, %19 : vector<8x8xf32>
    %cst_19 = arith.constant dense<0xFF800000> : vector<8xf32>
    %30 = vector.multi_reduction <maximumf>, %29, %cst_19 [1] : vector<8x8xf32> to vector<8xf32>
    %31 = vector.shape_cast %30 : vector<8xf32> to vector<8x1xf32>
    %32 = vector.broadcast %31 : vector<8x1xf32> to vector<8x8xf32>
    %33 = arith.subf %29, %32 : vector<8x8xf32>
    %34 = math.exp %33 : vector<8x8xf32>
    %cst_20 = arith.constant dense<0.000000e+00> : vector<8xf32>
    %35 = vector.multi_reduction <add>, %34, %cst_20 [1] : vector<8x8xf32> to vector<8xf32>
    %36 = vector.shape_cast %35 : vector<8xf32> to vector<8x1xf32>
    %37 = tpu.reciprocal %36 {approx = true} : vector<8x1xf32> -> vector<8x1xf32>
    %38 = vector.broadcast %37 : vector<8x1xf32> to vector<8x8xf32>
    %39 = arith.mulf %34, %38 : vector<8x8xf32>
    %40 = arith.truncf %39 : vector<8x8xf32> to vector<8x8xbf16>
    %41 = vector.extract_strided_slice %5 {offsets = [0, 0, 0], sizes = [1, 8, 8], strides = [1, 1, 1]} : vector<4x8x8xf32> to vector<1x8x8xf32>
    %42 = vector.shape_cast %41 : vector<1x8x8xf32> to vector<8x8xf32>
    %43 = arith.truncf %42 : vector<8x8xf32> to vector<8x8xbf16>
    %cst_21 = arith.constant dense<0.000000e+00> : vector<8x8xf32>
    %44 = tpu.matmul %40, %43, %cst_21 {dimension_numbers = #tpu.dot_dimension_numbers<[1], [0], [0], [1], [0, 0, 1, 1], [], []>} : vector<8x8xbf16>, vector<8x8xbf16>, vector<8x8xf32> -> vector<8x8xf32>
    %45 = vector.extract_strided_slice %1 {offsets = [1, 0, 0], sizes = [1, 8, 8], strides = [1, 1, 1]} : vector<4x8x8xf32> to vector<1x8x8xf32>
    %46 = vector.shape_cast %45 : vector<1x8x8xf32> to vector<8x8xf32>
    %47 = arith.truncf %46 : vector<8x8xf32> to vector<8x8xbf16>
    %48 = vector.extract_strided_slice %3 {offsets = [1, 0, 0], sizes = [1, 8, 8], strides = [1, 1, 1]} : vector<4x8x8xf32> to vector<1x8x8xf32>
    %49 = vector.shape_cast %48 : vector<1x8x8xf32> to vector<8x8xf32>
    %50 = arith.truncf %49 : vector<8x8xf32> to vector<8x8xbf16>
    %cst_22 = arith.constant dense<0.000000e+00> : vector<8x8xf32>
    %51 = tpu.matmul %47, %50, %cst_22 {dimension_numbers = #tpu.dot_dimension_numbers<[1], [1], [0], [0], [0, 0, 1, 0], [], []>} : vector<8x8xbf16>, vector<8x8xbf16>, vector<8x8xf32> -> vector<8x8xf32>
    %cst_23 = arith.constant 0.353553385 : f32
    %52 = vector.broadcast %cst_23 : f32 to vector<8x8xf32>
    %53 = arith.mulf %51, %52 : vector<8x8xf32>
    %54 = arith.addf %53, %19 : vector<8x8xf32>
    %cst_24 = arith.constant dense<0xFF800000> : vector<8xf32>
    %55 = vector.multi_reduction <maximumf>, %54, %cst_24 [1] : vector<8x8xf32> to vector<8xf32>
    %56 = vector.shape_cast %55 : vector<8xf32> to vector<8x1xf32>
    %57 = vector.broadcast %56 : vector<8x1xf32> to vector<8x8xf32>
    %58 = arith.subf %54, %57 : vector<8x8xf32>
    %59 = math.exp %58 : vector<8x8xf32>
    %cst_25 = arith.constant dense<0.000000e+00> : vector<8xf32>
    %60 = vector.multi_reduction <add>, %59, %cst_25 [1] : vector<8x8xf32> to vector<8xf32>
    %61 = vector.shape_cast %60 : vector<8xf32> to vector<8x1xf32>
    %62 = tpu.reciprocal %61 {approx = true} : vector<8x1xf32> -> vector<8x1xf32>
    %63 = vector.broadcast %62 : vector<8x1xf32> to vector<8x8xf32>
    %64 = arith.mulf %59, %63 : vector<8x8xf32>
    %65 = arith.truncf %64 : vector<8x8xf32> to vector<8x8xbf16>
    %66 = vector.extract_strided_slice %5 {offsets = [1, 0, 0], sizes = [1, 8, 8], strides = [1, 1, 1]} : vector<4x8x8xf32> to vector<1x8x8xf32>
    %67 = vector.shape_cast %66 : vector<1x8x8xf32> to vector<8x8xf32>
    %68 = arith.truncf %67 : vector<8x8xf32> to vector<8x8xbf16>
    %cst_26 = arith.constant dense<0.000000e+00> : vector<8x8xf32>
    %69 = tpu.matmul %65, %68, %cst_26 {dimension_numbers = #tpu.dot_dimension_numbers<[1], [0], [0], [1], [0, 0, 1, 1], [], []>} : vector<8x8xbf16>, vector<8x8xbf16>, vector<8x8xf32> -> vector<8x8xf32>
    %70 = vector.extract_strided_slice %1 {offsets = [2, 0, 0], sizes = [1, 8, 8], strides = [1, 1, 1]} : vector<4x8x8xf32> to vector<1x8x8xf32>
    %71 = vector.shape_cast %70 : vector<1x8x8xf32> to vector<8x8xf32>
    %72 = arith.truncf %71 : vector<8x8xf32> to vector<8x8xbf16>
    %73 = vector.extract_strided_slice %3 {offsets = [2, 0, 0], sizes = [1, 8, 8], strides = [1, 1, 1]} : vector<4x8x8xf32> to vector<1x8x8xf32>
    %74 = vector.shape_cast %73 : vector<1x8x8xf32> to vector<8x8xf32>
    %75 = arith.truncf %74 : vector<8x8xf32> to vector<8x8xbf16>
    %cst_27 = arith.constant dense<0.000000e+00> : vector<8x8xf32>
    %76 = tpu.matmul %72, %75, %cst_27 {dimension_numbers = #tpu.dot_dimension_numbers<[1], [1], [0], [0], [0, 0, 1, 0], [], []>} : vector<8x8xbf16>, vector<8x8xbf16>, vector<8x8xf32> -> vector<8x8xf32>
    %cst_28 = arith.constant 0.353553385 : f32
    %77 = vector.broadcast %cst_28 : f32 to vector<8x8xf32>
    %78 = arith.mulf %76, %77 : vector<8x8xf32>
    %79 = arith.addf %78, %19 : vector<8x8xf32>
    %cst_29 = arith.constant dense<0xFF800000> : vector<8xf32>
    %80 = vector.multi_reduction <maximumf>, %79, %cst_29 [1] : vector<8x8xf32> to vector<8xf32>
    %81 = vector.shape_cast %80 : vector<8xf32> to vector<8x1xf32>
    %82 = vector.broadcast %81 : vector<8x1xf32> to vector<8x8xf32>
    %83 = arith.subf %79, %82 : vector<8x8xf32>
    %84 = math.exp %83 : vector<8x8xf32>
    %cst_30 = arith.constant dense<0.000000e+00> : vector<8xf32>
    %85 = vector.multi_reduction <add>, %84, %cst_30 [1] : vector<8x8xf32> to vector<8xf32>
    %86 = vector.shape_cast %85 : vector<8xf32> to vector<8x1xf32>
    %87 = tpu.reciprocal %86 {approx = true} : vector<8x1xf32> -> vector<8x1xf32>
    %88 = vector.broadcast %87 : vector<8x1xf32> to vector<8x8xf32>
    %89 = arith.mulf %84, %88 : vector<8x8xf32>
    %90 = arith.truncf %89 : vector<8x8xf32> to vector<8x8xbf16>
    %91 = vector.extract_strided_slice %5 {offsets = [2, 0, 0], sizes = [1, 8, 8], strides = [1, 1, 1]} : vector<4x8x8xf32> to vector<1x8x8xf32>
    %92 = vector.shape_cast %91 : vector<1x8x8xf32> to vector<8x8xf32>
    %93 = arith.truncf %92 : vector<8x8xf32> to vector<8x8xbf16>
    %cst_31 = arith.constant dense<0.000000e+00> : vector<8x8xf32>
    %94 = tpu.matmul %90, %93, %cst_31 {dimension_numbers = #tpu.dot_dimension_numbers<[1], [0], [0], [1], [0, 0, 1, 1], [], []>} : vector<8x8xbf16>, vector<8x8xbf16>, vector<8x8xf32> -> vector<8x8xf32>
    %95 = vector.extract_strided_slice %1 {offsets = [3, 0, 0], sizes = [1, 8, 8], strides = [1, 1, 1]} : vector<4x8x8xf32> to vector<1x8x8xf32>
    %96 = vector.shape_cast %95 : vector<1x8x8xf32> to vector<8x8xf32>
    %97 = arith.truncf %96 : vector<8x8xf32> to vector<8x8xbf16>
    %98 = vector.extract_strided_slice %3 {offsets = [3, 0, 0], sizes = [1, 8, 8], strides = [1, 1, 1]} : vector<4x8x8xf32> to vector<1x8x8xf32>
    %99 = vector.shape_cast %98 : vector<1x8x8xf32> to vector<8x8xf32>
    %100 = arith.truncf %99 : vector<8x8xf32> to vector<8x8xbf16>
    %cst_32 = arith.constant dense<0.000000e+00> : vector<8x8xf32>
    %101 = tpu.matmul %97, %100, %cst_32 {dimension_numbers = #tpu.dot_dimension_numbers<[1], [1], [0], [0], [0, 0, 1, 0], [], []>} : vector<8x8xbf16>, vector<8x8xbf16>, vector<8x8xf32> -> vector<8x8xf32>
    %cst_33 = arith.constant 0.353553385 : f32
    %102 = vector.broadcast %cst_33 : f32 to vector<8x8xf32>
    %103 = arith.mulf %101, %102 : vector<8x8xf32>
    %104 = arith.addf %103, %19 : vector<8x8xf32>
    %cst_34 = arith.constant dense<0xFF800000> : vector<8xf32>
    %105 = vector.multi_reduction <maximumf>, %104, %cst_34 [1] : vector<8x8xf32> to vector<8xf32>
    %106 = vector.shape_cast %105 : vector<8xf32> to vector<8x1xf32>
    %107 = vector.broadcast %106 : vector<8x1xf32> to vector<8x8xf32>
    %108 = arith.subf %104, %107 : vector<8x8xf32>
    %109 = math.exp %108 : vector<8x8xf32>
    %cst_35 = arith.constant dense<0.000000e+00> : vector<8xf32>
    %110 = vector.multi_reduction <add>, %109, %cst_35 [1] : vector<8x8xf32> to vector<8xf32>
    %111 = vector.shape_cast %110 : vector<8xf32> to vector<8x1xf32>
    %112 = tpu.reciprocal %111 {approx = true} : vector<8x1xf32> -> vector<8x1xf32>
    %113 = vector.broadcast %112 : vector<8x1xf32> to vector<8x8xf32>
    %114 = arith.mulf %109, %113 : vector<8x8xf32>
    %115 = arith.truncf %114 : vector<8x8xf32> to vector<8x8xbf16>
    %116 = vector.extract_strided_slice %5 {offsets = [3, 0, 0], sizes = [1, 8, 8], strides = [1, 1, 1]} : vector<4x8x8xf32> to vector<1x8x8xf32>
    %117 = vector.shape_cast %116 : vector<1x8x8xf32> to vector<8x8xf32>
    %118 = arith.truncf %117 : vector<8x8xf32> to vector<8x8xbf16>
    %cst_36 = arith.constant dense<0.000000e+00> : vector<8x8xf32>
    %119 = tpu.matmul %115, %118, %cst_36 {dimension_numbers = #tpu.dot_dimension_numbers<[1], [0], [0], [1], [0, 0, 1, 1], [], []>} : vector<8x8xbf16>, vector<8x8xbf16>, vector<8x8xf32> -> vector<8x8xf32>
    %120 = tpu.concatenate %44, %69, %94, %119 in 1 : vector<8x8xf32>, vector<8x8xf32>, vector<8x8xf32>, vector<8x8xf32> -> vector<8x32xf32>
    %c0_37 = arith.constant 0 : index
    %c0_38 = arith.constant 0 : index
    %c0_39 = arith.constant 0 : index
    %121 = vector.load %arg5[%c0_37, %c0_38, %c0_39] : memref<1x8x32xf32, #tpu.memory_space<vmem>>, vector<1x8x32xf32>
    %122 = vector.shape_cast %121 : vector<1x8x32xf32> to vector<8x32xf32>
    %123 = vector.shape_cast %120 : vector<8x32xf32> to vector<1x8x32xf32>
    tpu.vector_store %arg5[%c0_37, %c0_38, %c0_39], %123 {strides = array<i32>} : memref<1x8x32xf32, #tpu.memory_space<vmem>>, vector<1x8x32xf32>,
    return
  }
  func.func @transform_0(%arg0: i32) -> (i32, i32, i32, i32) {
    %c0_i32 = arith.constant 0 : i32
    %c0_i32_0 = arith.constant 0 : i32
    %c0_i32_1 = arith.constant 0 : i32
    %c0_i32_2 = arith.constant 0 : i32
    return %arg0, %c0_i32, %c0_i32_0, %c0_i32_1 : i32, i32, i32, i32
  }
  func.func @transform_1(%arg0: i32) -> (i32, i32, i32, i32) {
    %c0_i32 = arith.constant 0 : i32
    %c0_i32_0 = arith.constant 0 : i32
    %c0_i32_1 = arith.constant 0 : i32
    %c0_i32_2 = arith.constant 0 : i32
    return %arg0, %c0_i32, %c0_i32_0, %c0_i32_1 : i32, i32, i32, i32
  }
  func.func @transform_2(%arg0: i32) -> (i32, i32, i32, i32) {
    %c0_i32 = arith.constant 0 : i32
    %c0_i32_0 = arith.constant 0 : i32
    %c0_i32_1 = arith.constant 0 : i32
    %c0_i32_2 = arith.constant 0 : i32
    return %arg0, %c0_i32, %c0_i32_0, %c0_i32_1 : i32, i32, i32, i32
  }
  func.func @transform_3(%arg0: i32) -> (i32, i32, i32) {
    %c0_i32 = arith.constant 0 : i32
    %c0_i32_0 = arith.constant 0 : i32
    %c0_i32_1 = arith.constant 0 : i32
    return %arg0, %c0_i32, %c0_i32_0 : i32, i32, i32
  }
  func.func @transform_4(%arg0: i32) -> (i32, i32, i32) {
    %c0_i32 = arith.constant 0 : i32
    %c0_i32_0 = arith.constant 0 : i32
    %c0_i32_1 = arith.constant 0 : i32
    return %arg0, %c0_i32, %c0_i32_0 : i32, i32, i32
  }
}

module attributes {stable_mosaic.version = 11 : i64} {
  func.func @_norm_linear_kernel(%arg0: i32, %arg1: memref<16x32xf32, #tpu.memory_space<vmem>>, %arg2: memref<1x32xf32, #tpu.memory_space<vmem>>, %arg3: memref<32x32xf32, #tpu.memory_space<vmem>>, %arg4: memref<1x32xf32, #tpu.memory_space<vmem>>, %arg5: memref<16x32xf32, #tpu.memory_space<vmem>>) attributes {dimension_semantics = [#tpu.dimension_semantics<parallel>], iteration_bounds = array<i64: 1>, scalar_prefetch = 0 : i64, scratch_operands = 0 : i64, tpu.core_type = #tpu.core_type<tc>, window_params = [{transform_indices = @transform_0, window_bounds = array<i64: 16, 32>}, {pipeline_mode = #tpu.pipeline_mode<synchronous>, transform_indices = @transform_1, window_bounds = array<i64: 1, 32>}, {pipeline_mode = #tpu.pipeline_mode<synchronous>, transform_indices = @transform_2, window_bounds = array<i64: 32, 32>}, {pipeline_mode = #tpu.pipeline_mode<synchronous>, transform_indices = @transform_3, window_bounds = array<i64: 1, 32>}, {transform_indices = @transform_4, window_bounds = array<i64: 16, 32>}]} {
    %c0 = arith.constant 0 : index
    %c0_0 = arith.constant 0 : index
    %0 = vector.load %arg1[%c0, %c0_0] : memref<16x32xf32, #tpu.memory_space<vmem>>, vector<16x32xf32>
    %1 = arith.mulf %0, %0 : vector<16x32xf32>
    %cst = arith.constant dense<0.000000e+00> : vector<16xf32>
    %2 = vector.multi_reduction <add>, %1, %cst [1] : vector<16x32xf32> to vector<16xf32>
    %3 = vector.shape_cast %2 : vector<16xf32> to vector<16x1xf32>
    %cst_1 = arith.constant 3.200000e+01 : f32
    %4 = vector.broadcast %cst_1 : f32 to vector<16x1xf32>
    %5 = arith.divf %3, %4 : vector<16x1xf32>
    %cst_2 = arith.constant 9.99999997E-7 : f32
    %6 = vector.broadcast %cst_2 : f32 to vector<16x1xf32>
    %7 = arith.addf %5, %6 : vector<16x1xf32>
    %8 = math.rsqrt %7 : vector<16x1xf32>
    %9 = vector.broadcast %8 : vector<16x1xf32> to vector<16x32xf32>
    %10 = arith.mulf %0, %9 : vector<16x32xf32>
    %c0_3 = arith.constant 0 : index
    %c0_4 = arith.constant 0 : index
    %11 = vector.load %arg2[%c0_3, %c0_4] : memref<1x32xf32, #tpu.memory_space<vmem>>, vector<1x32xf32>
    %12 = vector.broadcast %11 : vector<1x32xf32> to vector<16x32xf32>
    %13 = arith.mulf %10, %12 : vector<16x32xf32>
    %14 = arith.truncf %13 : vector<16x32xf32> to vector<16x32xbf16>
    %c0_5 = arith.constant 0 : index
    %c0_6 = arith.constant 0 : index
    %15 = vector.load %arg3[%c0_5, %c0_6] : memref<32x32xf32, #tpu.memory_space<vmem>>, vector<32x32xf32>
    %16 = arith.truncf %15 : vector<32x32xf32> to vector<32x32xbf16>
    %cst_7 = arith.constant dense<0.000000e+00> : vector<16x32xf32>
    %17 = tpu.matmul %14, %16, %cst_7 {dimension_numbers = #tpu.dot_dimension_numbers<[1], [0], [0], [1], [0, 0, 1, 1], [], []>} : vector<16x32xbf16>, vector<32x32xbf16>, vector<16x32xf32> -> vector<16x32xf32>
    %c0_8 = arith.constant 0 : index
    %c0_9 = arith.constant 0 : index
    %18 = vector.load %arg4[%c0_8, %c0_9] : memref<1x32xf32, #tpu.memory_space<vmem>>, vector<1x32xf32>
    %19 = vector.broadcast %18 : vector<1x32xf32> to vector<16x32xf32>
    %20 = arith.addf %17, %19 : vector<16x32xf32>
    %c0_10 = arith.constant 0 : index
    %c0_11 = arith.constant 0 : index
    %21 = vector.load %arg5[%c0_10, %c0_11] : memref<16x32xf32, #tpu.memory_space<vmem>>, vector<16x32xf32>
    tpu.vector_store %arg5[%c0_10, %c0_11], %20 {strides = array<i32>} : memref<16x32xf32, #tpu.memory_space<vmem>>, vector<16x32xf32>,
    return
  }
  func.func @transform_0(%arg0: i32) -> (i32, i32) {
    %c0_i32 = arith.constant 0 : i32
    %c0_i32_0 = arith.constant 0 : i32
    return %arg0, %c0_i32 : i32, i32
  }
  func.func @transform_1(%arg0: i32) -> (i32, i32) {
    %c0_i32 = arith.constant 0 : i32
    %c0_i32_0 = arith.constant 0 : i32
    %c0_i32_1 = arith.constant 0 : i32
    return %c0_i32, %c0_i32_0 : i32, i32
  }
  func.func @transform_2(%arg0: i32) -> (i32, i32) {
    %c0_i32 = arith.constant 0 : i32
    %c0_i32_0 = arith.constant 0 : i32
    %c0_i32_1 = arith.constant 0 : i32
    return %c0_i32, %c0_i32_0 : i32, i32
  }
  func.func @transform_3(%arg0: i32) -> (i32, i32) {
    %c0_i32 = arith.constant 0 : i32
    %c0_i32_0 = arith.constant 0 : i32
    %c0_i32_1 = arith.constant 0 : i32
    return %c0_i32, %c0_i32_0 : i32, i32
  }
  func.func @transform_4(%arg0: i32) -> (i32, i32) {
    %c0_i32 = arith.constant 0 : i32
    %c0_i32_0 = arith.constant 0 : i32
    return %arg0, %c0_i32 : i32, i32
  }
}

module attributes {stable_mosaic.version = 11 : i64} {
  func.func @_linear_kernel(%arg0: i32, %arg1: memref<16x32xf32, #tpu.memory_space<vmem>>, %arg2: memref<32x64xf32, #tpu.memory_space<vmem>>, %arg3: memref<1x64xf32, #tpu.memory_space<vmem>>, %arg4: memref<16x64xf32, #tpu.memory_space<vmem>>) attributes {dimension_semantics = [#tpu.dimension_semantics<parallel>], iteration_bounds = array<i64: 1>, scalar_prefetch = 0 : i64, scratch_operands = 0 : i64, tpu.core_type = #tpu.core_type<tc>, window_params = [{transform_indices = @transform_0, window_bounds = array<i64: 16, 32>}, {pipeline_mode = #tpu.pipeline_mode<synchronous>, transform_indices = @transform_1, window_bounds = array<i64: 32, 64>}, {pipeline_mode = #tpu.pipeline_mode<synchronous>, transform_indices = @transform_2, window_bounds = array<i64: 1, 64>}, {transform_indices = @transform_3, window_bounds = array<i64: 16, 64>}]} {
    %c0 = arith.constant 0 : index
    %c0_0 = arith.constant 0 : index
    %0 = vector.load %arg1[%c0, %c0_0] : memref<16x32xf32, #tpu.memory_space<vmem>>, vector<16x32xf32>
    %1 = arith.truncf %0 : vector<16x32xf32> to vector<16x32xbf16>
    %c0_1 = arith.constant 0 : index
    %c0_2 = arith.constant 0 : index
    %2 = vector.load %arg2[%c0_1, %c0_2] : memref<32x64xf32, #tpu.memory_space<vmem>>, vector<32x64xf32>
    %3 = arith.truncf %2 : vector<32x64xf32> to vector<32x64xbf16>
    %cst = arith.constant dense<0.000000e+00> : vector<16x64xf32>
    %4 = tpu.matmul %1, %3, %cst {dimension_numbers = #tpu.dot_dimension_numbers<[1], [0], [0], [1], [0, 0, 1, 1], [], []>} : vector<16x32xbf16>, vector<32x64xbf16>, vector<16x64xf32> -> vector<16x64xf32>
    %c0_3 = arith.constant 0 : index
    %c0_4 = arith.constant 0 : index
    %5 = vector.load %arg3[%c0_3, %c0_4] : memref<1x64xf32, #tpu.memory_space<vmem>>, vector<1x64xf32>
    %6 = vector.broadcast %5 : vector<1x64xf32> to vector<16x64xf32>
    %7 = arith.addf %4, %6 : vector<16x64xf32>
    %c0_5 = arith.constant 0 : index
    %c0_6 = arith.constant 0 : index
    %8 = vector.load %arg4[%c0_5, %c0_6] : memref<16x64xf32, #tpu.memory_space<vmem>>, vector<16x64xf32>
    tpu.vector_store %arg4[%c0_5, %c0_6], %7 {strides = array<i32>} : memref<16x64xf32, #tpu.memory_space<vmem>>, vector<16x64xf32>,
    return
  }
  func.func @transform_0(%arg0: i32) -> (i32, i32) {
    %c0_i32 = arith.constant 0 : i32
    %c0_i32_0 = arith.constant 0 : i32
    return %arg0, %c0_i32 : i32, i32
  }
  func.func @transform_1(%arg0: i32) -> (i32, i32) {
    %c0_i32 = arith.constant 0 : i32
    %c0_i32_0 = arith.constant 0 : i32
    %c0_i32_1 = arith.constant 0 : i32
    return %c0_i32, %c0_i32_0 : i32, i32
  }
  func.func @transform_2(%arg0: i32) -> (i32, i32) {
    %c0_i32 = arith.constant 0 : i32
    %c0_i32_0 = arith.constant 0 : i32
    %c0_i32_1 = arith.constant 0 : i32
    return %c0_i32, %c0_i32_0 : i32, i32
  }
  func.func @transform_3(%arg0: i32) -> (i32, i32) {
    %c0_i32 = arith.constant 0 : i32
    %c0_i32_0 = arith.constant 0 : i32
    return %arg0, %c0_i32 : i32, i32
  }
}

module attributes {stable_mosaic.version = 11 : i64} {
  func.func @_rmsnorm_kernel(%arg0: i32, %arg1: memref<16x32xf32, #tpu.memory_space<vmem>>, %arg2: memref<1x32xf32, #tpu.memory_space<vmem>>, %arg3: memref<16x32xf32, #tpu.memory_space<vmem>>) attributes {dimension_semantics = [#tpu.dimension_semantics<parallel>], iteration_bounds = array<i64: 1>, scalar_prefetch = 0 : i64, scratch_operands = 0 : i64, tpu.core_type = #tpu.core_type<tc>, window_params = [{transform_indices = @transform_0, window_bounds = array<i64: 16, 32>}, {pipeline_mode = #tpu.pipeline_mode<synchronous>, transform_indices = @transform_1, window_bounds = array<i64: 1, 32>}, {transform_indices = @transform_2, window_bounds = array<i64: 16, 32>}]} {
    %c0 = arith.constant 0 : index
    %c0_0 = arith.constant 0 : index
    %0 = vector.load %arg1[%c0, %c0_0] : memref<16x32xf32, #tpu.memory_space<vmem>>, vector<16x32xf32>
    %1 = arith.mulf %0, %0 : vector<16x32xf32>
    %cst = arith.constant dense<0.000000e+00> : vector<16xf32>
    %2 = vector.multi_reduction <add>, %1, %cst [1] : vector<16x32xf32> to vector<16xf32>
    %3 = vector.shape_cast %2 : vector<16xf32> to vector<16x1xf32>
    %cst_1 = arith.constant 3.200000e+01 : f32
    %4 = vector.broadcast %cst_1 : f32 to vector<16x1xf32>
    %5 = arith.divf %3, %4 : vector<16x1xf32>
    %cst_2 = arith.constant 9.99999997E-7 : f32
    %6 = vector.broadcast %cst_2 : f32 to vector<16x1xf32>
    %7 = arith.addf %5, %6 : vector<16x1xf32>
    %8 = math.rsqrt %7 : vector<16x1xf32>
    %9 = vector.broadcast %8 : vector<16x1xf32> to vector<16x32xf32>
    %10 = arith.mulf %0, %9 : vector<16x32xf32>
    %c0_3 = arith.constant 0 : index
    %c0_4 = arith.constant 0 : index
    %11 = vector.load %arg2[%c0_3, %c0_4] : memref<1x32xf32, #tpu.memory_space<vmem>>, vector<1x32xf32>
    %12 = vector.broadcast %11 : vector<1x32xf32> to vector<16x32xf32>
    %13 = arith.mulf %10, %12 : vector<16x32xf32>
    %c0_5 = arith.constant 0 : index
    %c0_6 = arith.constant 0 : index
    %14 = vector.load %arg3[%c0_5, %c0_6] : memref<16x32xf32, #tpu.memory_space<vmem>>, vector<16x32xf32>
    tpu.vector_store %arg3[%c0_5, %c0_6], %13 {strides = array<i32>} : memref<16x32xf32, #tpu.memory_space<vmem>>, vector<16x32xf32>,
    return
  }
  func.func @transform_0(%arg0: i32) -> (i32, i32) {
    %c0_i32 = arith.constant 0 : i32
    %c0_i32_0 = arith.constant 0 : i32
    return %arg0, %c0_i32 : i32, i32
  }
  func.func @transform_1(%arg0: i32) -> (i32, i32) {
    %c0_i32 = arith.constant 0 : i32
    %c0_i32_0 = arith.constant 0 : i32
    %c0_i32_1 = arith.constant 0 : i32
    return %c0_i32, %c0_i32_0 : i32, i32
  }
  func.func @transform_2(%arg0: i32) -> (i32, i32) {
    %c0_i32 = arith.constant 0 : i32
    %c0_i32_0 = arith.constant 0 : i32
    return %arg0, %c0_i32 : i32, i32
  }
}

module attributes {stable_mosaic.version = 11 : i64} {
  func.func @_lm_head_kernel(%arg0: i32, %arg1: memref<16x32xf32, #tpu.memory_space<vmem>>, %arg2: memref<128x32xf32, #tpu.memory_space<vmem>>, %arg3: memref<16x128xf32, #tpu.memory_space<vmem>>) attributes {dimension_semantics = [#tpu.dimension_semantics<parallel>], iteration_bounds = array<i64: 2>, scalar_prefetch = 0 : i64, scratch_operands = 0 : i64, tpu.core_type = #tpu.core_type<tc>, window_params = [{pipeline_mode = #tpu.pipeline_mode<synchronous>, transform_indices = @transform_0, window_bounds = array<i64: 16, 32>}, {transform_indices = @transform_1, window_bounds = array<i64: 128, 32>}, {transform_indices = @transform_2, window_bounds = array<i64: 16, 128>}]} {
    %c0 = arith.constant 0 : index
    %c0_0 = arith.constant 0 : index
    %0 = vector.load %arg1[%c0, %c0_0] : memref<16x32xf32, #tpu.memory_space<vmem>>, vector<16x32xf32>
    %1 = arith.truncf %0 : vector<16x32xf32> to vector<16x32xbf16>
    %c0_1 = arith.constant 0 : index
    %c0_2 = arith.constant 0 : index
    %2 = vector.load %arg2[%c0_1, %c0_2] : memref<128x32xf32, #tpu.memory_space<vmem>>, vector<128x32xf32>
    %3 = arith.truncf %2 : vector<128x32xf32> to vector<128x32xbf16>
    %cst = arith.constant dense<0.000000e+00> : vector<16x128xf32>
    %4 = tpu.matmul %1, %3, %cst {dimension_numbers = #tpu.dot_dimension_numbers<[1], [1], [0], [0], [0, 0, 1, 0], [], []>} : vector<16x32xbf16>, vector<128x32xbf16>, vector<16x128xf32> -> vector<16x128xf32>
    %c0_3 = arith.constant 0 : index
    %c0_4 = arith.constant 0 : index
    %5 = vector.load %arg3[%c0_3, %c0_4] : memref<16x128xf32, #tpu.memory_space<vmem>>, vector<16x128xf32>
    tpu.vector_store %arg3[%c0_3, %c0_4], %4 {strides = array<i32>} : memref<16x128xf32, #tpu.memory_space<vmem>>, vector<16x128xf32>,
    return
  }
  func.func @transform_0(%arg0: i32) -> (i32, i32) {
    %c0_i32 = arith.constant 0 : i32
    %c0_i32_0 = arith.constant 0 : i32
    %c0_i32_1 = arith.constant 0 : i32
    return %c0_i32, %c0_i32_0 : i32, i32
  }
  func.func @transform_1(%arg0: i32) -> (i32, i32) {
    %c0_i32 = arith.constant 0 : i32
    %c0_i32_0 = arith.constant 0 : i32
    return %arg0, %c0_i32 : i32, i32
  }
  func.func @transform_2(%arg0: i32) -> (i32, i32) {
    %c0_i32 = arith.constant 0 : i32
    %c0_i32_0 = arith.constant 0 : i32
    return %c0_i32, %arg0 : i32, i32
  }
}

</mosaic_0001>

<llo_original>
// kernel: run.28
$region0: #{run.28}
  #allocation0 [shape = 'u32[]', space=smem, size = 0x4, offset = 0x4, fixed_abs, tag = 'smem constant byte address 0x4 - core index']
  #allocation1 [shape = 'u32[144,128]{1,0:T(1,128)}', space=vmem, size = 0x12000, scoped, tag = 'internal scratch']
  %s0 = inlined_call_operand.vmem [shape: f32[16,32], index: 0, kind: input, shape index: {}]
  %s1 = inlined_call_operand.vmem [shape: f32[32,32], index: 1, kind: input, shape index: {}]
  %s2 = inlined_call_operand.vmem [shape: f32[1,32], index: 2, kind: input, shape index: {}]
  %s3 = inlined_call_operand.vmem [shape: f32[16,32], index: 3, kind: input, shape index: {}]
  %s4 = inlined_call_operand.vmem [shape: f32[16,32], index: 4, kind: output, shape index: {}]
  %s5 = sld [smem:[#allocation0]]
  $region26: #{run.28} parent=0
    _
  %s7 = ssub.s32 1, %s5
  %s8 = scalar_select 0, %s7, %s5
  // Predicated region
  $region2: #{run.28} parent=0 // pred_check
    _
  $region3: #{run.28} parent=0 // pred_check_branch
    %10 = sbr.rel (0) target = $region5
  $region4: #{run.28} parent=0 // pred_region
    _
  $region5: #{run.28} parent=0 // pred_fallthru
    _
  // Predicated region
  $region6: #{run.28} parent=0 // pred_check
    _
  $region7: #{run.28} parent=0 // pred_check_branch
    %12 = sbr.rel (0) target = $region9
  $region8: #{run.28} parent=0 // pred_region
    _
  $region9: #{run.28} parent=0 // pred_fallthru
    _
  // Predicated region
  $region10: #{run.28} parent=0 // pred_check
    _
  $region11: #{run.28} parent=0 // pred_check_branch
    %14 = sbr.rel (0) target = $region13
  $region12: #{run.28} parent=0 // pred_region
    _
  $region13: #{run.28} parent=0 // pred_fallthru
    _
  // Predicated region
  $region14: #{run.28} parent=0 // pred_check
    _
  $region15: #{run.28} parent=0 // pred_check_branch
    %16 = sbr.rel (0) target = $region17
  $region16: #{run.28} parent=0 // pred_region
    _
  $region17: #{run.28} parent=0 // pred_fallthru
    _
  %v18 = vld [vmem:[%s0] sm:$0xff]
  %v19 = vld [vmem:[%s0 + $0x8] sm:$0xff]
  %v20 = vpack.c.bf16 %v19, %v18
  %v21 = vld [vmem:[%s1] sm:$0xff]
  %v22 = vld [vmem:[%s1 + $0x8] sm:$0xff]
  %v23 = vld [vmem:[%s1 + $0x10] sm:$0xff]
  %v24 = vld [vmem:[%s1 + $0x18] sm:$0xff]
  %v25 = vpack.c.bf16 %v22, %v21
  %v26 = vpack.c.bf16 %v24, %v23
  %v27 = vld [vmem:[%s2] sm:$0x1]
  %v29 = vlaneseq
  %v30 = vshrl.u32 %v29, 7
  %v31 = vsub.s32 0, %v30
  %v32 = vrot.slane %v27, %v31
  %vm34 = vcmask 261120
  %v36 = vsel %vm34, %v20, 0
  %38 = vmatprep.subr.bf16.mxu0 0
  %39 = vmatpush1.bf16.msra.mxu0 0
  %40 = vmatprep.subr.bf16.mxu0 0
  %41 = vmatpush1.bf16.msra.mxu0 0
  %42 = vmatprep.subr.bf16.mxu0 0
  %43 = vmatpush1.bf16.msra.mxu0 0
  %44 = vmatprep.subr.bf16.mxu0 0
  %45 = vmatpush1.bf16.msra.mxu0 0
  %46 = vmatprep.subr.bf16.mxu0 0
  %47 = vmatpush1.bf16.msra.mxu0 0
  %48 = vmatprep.subr.bf16.mxu0 0
  %49 = vmatpush1.bf16.msra.mxu0 0
  %50 = vmatprep.subr.bf16.mxu0 0
  %51 = vmatpush1.bf16.msra.mxu0 %v26
  %52 = vmatprep.subr.bf16.mxu0 0
  %53 = vmatpush1.bf16.msra.mxu0 %v25
  %54 = vmatprep.subr.bf16.mxu0 0
  %55 = vmatpush2.bf16.msra.mxu0 0
  %56 = vmatprep.subr.bf16.mxu0 0
  %57 = vmatpush2.bf16.msra.mxu0 0
  %58 = vmatprep.subr.bf16.mxu0 0
  %59 = vmatpush2.bf16.msra.mxu0 0
  %60 = vmatprep.subr.bf16.mxu0 0
  %61 = vmatpush2.bf16.msra.mxu0 0
  %62 = vmatprep.subr.bf16.mxu0 0
  %63 = vmatpush2.bf16.msra.mxu0 0
  %64 = vmatprep.subr.bf16.mxu0 0
  %65 = vmatpush2.bf16.msra.mxu0 0
  %66 = vmatprep.subr.bf16.mxu0 0
  %67 = vmatpush2.bf16.msra.mxu0 0
  %68 = vmatprep.subr.bf16.mxu0 0
  %69 = vmatpush2.bf16.msra.mxu0 0
  %70 = vmatprep.mubr.bf16.mxu0 0
  %71 = vmatmul.mubr.bf16.gmra.mxu0 %v36
  %v72 = vpop.f32.mrf.mxu0
  %v73 = vadd.f32 %v32, %v72
  %v74 = vpop.f32.mrf.mxu0
  %v75 = vpop.f32.mrf.mxu0
  %v76 = vadd.f32 %v32, %v75
  %v77 = vpop.f32.mrf.mxu0
  %78 = vdwg.mxu0
  %v79 = vld [vmem:[%s3] sm:$0xff]
  %v80 = vld [vmem:[%s3 + $0x8] sm:$0xff]
  %v81 = vadd.f32 %v79, %v73
  %v82 = vadd.f32 %v80, %v76
  %83 = vst.msk [vmem:[%s4] sm:$0xff] %vm34, %v81
  %84 = vst.msk [vmem:[%s4 + $0x8] sm:$0xff] %vm34, %v82
  // Predicated region
  $region18: #{run.28} parent=0 // pred_check
    _
  $region19: #{run.28} parent=0 // pred_check_branch
    %86 = sbr.rel (0) target = $region21
  $region20: #{run.28} parent=0 // pred_region
    _
  $region21: #{run.28} parent=0 // pred_fallthru
    _
  // Predicated region
  $region22: #{run.28} parent=0 // pred_check
    _
  $region23: #{run.28} parent=0 // pred_check_branch
    %88 = sbr.rel (0) target = $region25
  $region24: #{run.28} parent=0 // pred_region
    _
  $region25: #{run.28} parent=0 // pred_fallthru
    _

// kernel: run.26
$region0: #{run.26}
  #allocation0 [shape = 'u32[]', space=smem, size = 0x4, offset = 0x4, fixed_abs, tag = 'smem constant byte address 0x4 - core index']
  #allocation1 [shape = 'u32[144,128]{1,0:T(1,128)}', space=vmem, size = 0x12000, scoped, tag = 'internal scratch']
  %s0 = inlined_call_operand.vmem [shape: f32[16,32], index: 0, kind: input, shape index: {}]
  %s1 = inlined_call_operand.vmem [shape: f32[1,32], index: 1, kind: input, shape index: {}]
  %s2 = inlined_call_operand.vmem [shape: f32[32,96], index: 2, kind: input, shape index: {}]
  %s3 = inlined_call_operand.vmem [shape: f32[1,96], index: 3, kind: input, shape index: {}]
  %s4 = inlined_call_operand.vmem [shape: f32[16,96], index: 4, kind: output, shape index: {}]
  %s5 = sld [smem:[#allocation0]]
  $region26: #{run.26} parent=0
    _
  %s7 = ssub.s32 1, %s5
  %s8 = scalar_select 0, %s7, %s5
  // Predicated region
  $region2: #{run.26} parent=0 // pred_check
    _
  $region3: #{run.26} parent=0 // pred_check_branch
    %10 = sbr.rel (0) target = $region5
  $region4: #{run.26} parent=0 // pred_region
    _
  $region5: #{run.26} parent=0 // pred_fallthru
    _
  // Predicated region
  $region6: #{run.26} parent=0 // pred_check
    _
  $region7: #{run.26} parent=0 // pred_check_branch
    %12 = sbr.rel (0) target = $region9
  $region8: #{run.26} parent=0 // pred_region
    _
  $region9: #{run.26} parent=0 // pred_fallthru
    _
  // Predicated region
  $region10: #{run.26} parent=0 // pred_check
    _
  $region11: #{run.26} parent=0 // pred_check_branch
    %14 = sbr.rel (0) target = $region13
  $region12: #{run.26} parent=0 // pred_region
    _
  $region13: #{run.26} parent=0 // pred_fallthru
    _
  // Predicated region
  $region14: #{run.26} parent=0 // pred_check
    _
  $region15: #{run.26} parent=0 // pred_check_branch
    %16 = sbr.rel (0) target = $region17
  $region16: #{run.26} parent=0 // pred_region
    _
  $region17: #{run.26} parent=0 // pred_fallthru
    _
  %v18 = vld [vmem:[%s0] sm:$0xff]
  %v19 = vld [vmem:[%s0 + $0x8] sm:$0xff]
  %v20 = vmul.f32 %v18, %v18
  %v21 = vmul.f32 %v19, %v19
  %vm22 = vcmask 261120
  %v23 = vsel %vm22, %v20, 0.0
  %24 = vadd.xlane.f32.xlu0 %v23
  %v25 = vpop.xlane.xlu0 %24
  %v26 = vsel %vm22, %v21, 0.0
  %27 = vadd.xlane.f32.xlu0 %v26
  %v28 = vpop.xlane.xlu0 %27
  %v29 = vrcp.pop 32.0
  %v30 = vmul.f32 %v25, %v29
  %v31 = vmul.f32 %v28, %v29
  %v32 = vadd.f32 %v30, 1e-06
  %v33 = vadd.f32 %v31, 1e-06
  %v34 = vrsqrt.pop %v32
  %v35 = vrsqrt.pop %v33
  %v36 = vmul.f32 %v18, %v34
  %v37 = vmul.f32 %v19, %v35
  %v38 = vld [vmem:[%s1] sm:$0x1]
  %v40 = vlaneseq
  %v41 = vshrl.u32 %v40, 7
  %v42 = vsub.s32 0, %v41
  %v43 = vrot.slane %v38, %v42
  %v45 = vmul.f32 %v36, %v43
  %v46 = vmul.f32 %v37, %v43
  %v47 = vpack.c.bf16 %v46, %v45
  %v48 = vld [vmem:[%s2] sm:$0xff]
  %v49 = vld [vmem:[%s2 + $0x8] sm:$0xff]
  %v50 = vld [vmem:[%s2 + $0x10] sm:$0xff]
  %v51 = vld [vmem:[%s2 + $0x18] sm:$0xff]
  %v52 = vpack.c.bf16 %v49, %v48
  %v53 = vpack.c.bf16 %v51, %v50
  %v54 = vld [vmem:[%s3] sm:$0x1]
  %v56 = vlaneseq
  %v57 = vshrl.u32 %v56, 7
  %v58 = vsub.s32 0, %v57
  %v59 = vrot.slane %v54, %v58
  %v62 = vsel %vm22, %v47, 0
  %64 = vmatprep.subr.bf16.mxu0 0
  %65 = vmatpush1.bf16.msra.mxu0 0
  %66 = vmatprep.subr.bf16.mxu0 0
  %67 = vmatpush1.bf16.msra.mxu0 0
  %68 = vmatprep.subr.bf16.mxu0 0
  %69 = vmatpush1.bf16.msra.mxu0 0
  %70 = vmatprep.subr.bf16.mxu0 0
  %71 = vmatpush1.bf16.msra.mxu0 0
  %72 = vmatprep.subr.bf16.mxu0 0
  %73 = vmatpush1.bf16.msra.mxu0 0
  %74 = vmatprep.subr.bf16.mxu0 0
  %75 = vmatpush1.bf16.msra.mxu0 0
  %76 = vmatprep.subr.bf16.mxu0 0
  %77 = vmatpush1.bf16.msra.mxu0 %v53
  %78 = vmatprep.subr.bf16.mxu0 0
  %79 = vmatpush1.bf16.msra.mxu0 %v52
  %80 = vmatprep.subr.bf16.mxu0 0
  %81 = vmatpush2.bf16.msra.mxu0 0
  %82 = vmatprep.subr.bf16.mxu0 0
  %83 = vmatpush2.bf16.msra.mxu0 0
  %84 = vmatprep.subr.bf16.mxu0 0
  %85 = vmatpush2.bf16.msra.mxu0 0
  %86 = vmatprep.subr.bf16.mxu0 0
  %87 = vmatpush2.bf16.msra.mxu0 0
  %88 = vmatprep.subr.bf16.mxu0 0
  %89 = vmatpush2.bf16.msra.mxu0 0
  %90 = vmatprep.subr.bf16.mxu0 0
  %91 = vmatpush2.bf16.msra.mxu0 0
  %92 = vmatprep.subr.bf16.mxu0 0
  %93 = vmatpush2.bf16.msra.mxu0 0
  %94 = vmatprep.subr.bf16.mxu0 0
  %95 = vmatpush2.bf16.msra.mxu0 0
  %96 = vmatprep.mubr.bf16.mxu0 0
  %97 = vmatmul.mubr.bf16.gmra.mxu0 %v62
  %v98 = vpop.f32.mrf.mxu0
  %v99 = vadd.f32 %v59, %v98
  %v100 = vpop.f32.mrf.mxu0
  %v101 = vpop.f32.mrf.mxu0
  %v102 = vadd.f32 %v59, %v101
  %v103 = vpop.f32.mrf.mxu0
  %104 = vdwg.mxu0
  %vm105 = vcmask 785408
  %106 = vst.msk [vmem:[%s4] sm:$0xff] %vm105, %v99
  %107 = vst.msk [vmem:[%s4 + $0x8] sm:$0xff] %vm105, %v102
  // Predicated region
  $region18: #{run.26} parent=0 // pred_check
    _
  $region19: #{run.26} parent=0 // pred_check_branch
    %109 = sbr.rel (0) target = $region21
  $region20: #{run.26} parent=0 // pred_region
    _
  $region21: #{run.26} parent=0 // pred_fallthru
    _
  // Predicated region
  $region22: #{run.26} parent=0 // pred_check
    _
  $region23: #{run.26} parent=0 // pred_check_branch
    %111 = sbr.rel (0) target = $region25
  $region24: #{run.26} parent=0 // pred_region
    _
  $region25: #{run.26} parent=0 // pred_fallthru
    _

// kernel: run.27
$region0: #{run.27}
  #allocation0 [shape = 'u32[]', space=smem, size = 0x4, offset = 0x4, fixed_abs, tag = 'smem constant byte address 0x4 - core index']
  #allocation1 [shape = 'u32[144,128]{1,0:T(1,128)}', space=vmem, size = 0x12000, scoped, tag = 'internal scratch']
  %s0 = inlined_call_operand.vmem [shape: f32[2,4,8,8], index: 0, kind: input, shape index: {}]
  %s1 = inlined_call_operand.vmem [shape: f32[2,4,8,8], index: 1, kind: input, shape index: {}]
  %s2 = inlined_call_operand.vmem [shape: f32[2,4,8,8], index: 2, kind: input, shape index: {}]
  %s3 = inlined_call_operand.vmem [shape: f32[2,1,8], index: 3, kind: input, shape index: {}]
  %s4 = inlined_call_operand.vmem [shape: f32[2,8,32], index: 4, kind: output, shape index: {}]
  %s5 = sld [smem:[#allocation0]]
  $region49: #{run.27} parent=0
    _
  %s7 = ssub.s32 1, %s5
  %s8 = scalar_select 0, %s7, %s5
  loop: start=0, step=1, limit=4
  $region2: #{run.27} parent=0 // loop_pre_header
    _
  $region3: #{run.27} parent=0 // loop_header
    %s10 = sphi 0, %s14
    %p11 = scmp.ge.s32.totalorder %s10, 4
    %s20 = sphi 0, %s22
    %s23 = sphi 0, %s20
    %s24 = sphi 0, %s23
    %s40 = sphi 0, %s24
    %s46 = sphi 0, %s48
    %s49 = sphi 0, %s46
    %s50 = sphi 0, %s49
    %s66 = sphi 0, %s50
    %s72 = sphi 0, %s74
    %s75 = sphi 0, %s72
    %s76 = sphi 0, %s75
    %s92 = sphi 0, %s76
    %s98 = sphi 0, %s100
    %s101 = sphi 0, %s98
    %s102 = sphi 0, %s101
    %s118 = sphi 0, %s102
    %s124 = sphi 0, %s126
    %s127 = sphi 0, %s124
    %s128 = sphi 0, %s127
    %s144 = sphi 0, %s128
  $region4: #{run.27} parent=0 // loop_header_branch
    %13 = sbr.rel (%p11) target = $region8
  $region5: #{run.27} parent=0 // loop_body
    %s15 = ssub.s32 %s10, 1
    %s16 = ssub.s32 %s10, 2
    %s17 = sadd.s32 %s10, 1
    %s18 = ssub.s32 %s10, %s17
    %p19 = scmp.eq.s32.totalorder %s18, 0
    %s21 = sadd.s32 %s20, 1
    %s22 = scalar_select %p19, %s20, %s21
    %p25 = pneg %p19
    %p26 = scmp.eq.s32.totalorder %s10, 1
    %p27 = por %p25, %p26
    %p28 = scmp.ne.s32.totalorder %s20, %s23
    %p29 = scmp.eq.s32.totalorder %s10, 0
    %p30 = por %p28, %p29
    %p31 = scmp.ne.s32.totalorder %s20, %s23
    %p32 = scmp.eq.s32.totalorder %s15, 1
    %p33 = por %p31, %p32
    %p34 = scmp.ne.s32.totalorder %s23, %s24
    %p35 = scmp.eq.s32.totalorder %s15, 0
    %p36 = por %p34, %p35
    %p37 = scmp.ne.s32.totalorder %s23, %s24
    %p38 = scmp.eq.s32.totalorder %s16, 1
    %p39 = por %p37, %p38
    %p41 = scmp.ne.s32.totalorder %s24, %s40
    %p42 = scmp.eq.s32.totalorder %s16, 0
    %p43 = por %p41, %p42
    %s44 = ssub.s32 %s10, %s17
    %p45 = scmp.eq.s32.totalorder %s44, 0
    %s47 = sadd.s32 %s46, 1
    %s48 = scalar_select %p45, %s46, %s47
    %p51 = pneg %p45
    %p52 = scmp.eq.s32.totalorder %s10, 1
    %p53 = por %p51, %p52
    %p54 = scmp.ne.s32.totalorder %s46, %s49
    %p55 = scmp.eq.s32.totalorder %s10, 0
    %p56 = por %p54, %p55
    %p57 = scmp.ne.s32.totalorder %s46, %s49
    %p58 = scmp.eq.s32.totalorder %s15, 1
    %p59 = por %p57, %p58
    %p60 = scmp.ne.s32.totalorder %s49, %s50
    %p61 = scmp.eq.s32.totalorder %s15, 0
    %p62 = por %p60, %p61
    %p63 = scmp.ne.s32.totalorder %s49, %s50
    %p64 = scmp.eq.s32.totalorder %s16, 1
    %p65 = por %p63, %p64
    %p67 = scmp.ne.s32.totalorder %s50, %s66
    %p68 = scmp.eq.s32.totalorder %s16, 0
    %p69 = por %p67, %p68
    %s70 = ssub.s32 %s10, %s17
    %p71 = scmp.eq.s32.totalorder %s70, 0
    %s73 = sadd.s32 %s72, 1
    %s74 = scalar_select %p71, %s72, %s73
    %p77 = pneg %p71
    %p78 = scmp.eq.s32.totalorder %s10, 1
    %p79 = por %p77, %p78
    %p80 = scmp.ne.s32.totalorder %s72, %s75
    %p81 = scmp.eq.s32.totalorder %s10, 0
    %p82 = por %p80, %p81
    %p83 = scmp.ne.s32.totalorder %s72, %s75
    %p84 = scmp.eq.s32.totalorder %s15, 1
    %p85 = por %p83, %p84
    %p86 = scmp.ne.s32.totalorder %s75, %s76
    %p87 = scmp.eq.s32.totalorder %s15, 0
    %p88 = por %p86, %p87
    %p89 = scmp.ne.s32.totalorder %s75, %s76
    %p90 = scmp.eq.s32.totalorder %s16, 1
    %p91 = por %p89, %p90
    %p93 = scmp.ne.s32.totalorder %s76, %s92
    %p94 = scmp.eq.s32.totalorder %s16, 0
    %p95 = por %p93, %p94
    %s96 = ssub.s32 %s10, %s17
    %p97 = scmp.eq.s32.totalorder %s96, 0
    %s99 = sadd.s32 %s98, 1
    %s100 = scalar_select %p97, %s98, %s99
    %p103 = pneg %p97
    %p104 = scmp.eq.s32.totalorder %s10, 1
    %p105 = por %p103, %p104
    %p106 = scmp.ne.s32.totalorder %s98, %s101
    %p107 = scmp.eq.s32.totalorder %s10, 0
    %p108 = por %p106, %p107
    %p109 = scmp.ne.s32.totalorder %s98, %s101
    %p110 = scmp.eq.s32.totalorder %s15, 1
    %p111 = por %p109, %p110
    %p112 = scmp.ne.s32.totalorder %s101, %s102
    %p113 = scmp.eq.s32.totalorder %s15, 0
    %p114 = por %p112, %p113
    %p115 = scmp.ne.s32.totalorder %s101, %s102
    %p116 = scmp.eq.s32.totalorder %s16, 1
    %p117 = por %p115, %p116
    %p119 = scmp.ne.s32.totalorder %s102, %s118
    %p120 = scmp.eq.s32.totalorder %s16, 0
    %p121 = por %p119, %p120
    %s122 = ssub.s32 %s10, %s17
    %p123 = scmp.eq.s32.totalorder %s122, 0
    %s125 = sadd.s32 %s124, 1
    %s126 = scalar_select %p123, %s124, %s125
    %p129 = pneg %p123
    %p130 = scmp.eq.s32.totalorder %s10, 1
    %p131 = por %p129, %p130
    %p132 = scmp.ne.s32.totalorder %s124, %s127
    %p133 = scmp.eq.s32.totalorder %s10, 0
    %p134 = por %p132, %p133
    %p135 = scmp.ne.s32.totalorder %s124, %s127
    %p136 = scmp.eq.s32.totalorder %s15, 1
    %p137 = por %p135, %p136
    %p138 = scmp.ne.s32.totalorder %s127, %s128
    %p139 = scmp.eq.s32.totalorder %s15, 0
    %p140 = por %p138, %p139
    %p141 = scmp.ne.s32.totalorder %s127, %s128
    %p142 = scmp.eq.s32.totalorder %s16, 1
    %p143 = por %p141, %p142
    %p145 = scmp.ne.s32.totalorder %s128, %s144
    %p146 = scmp.eq.s32.totalorder %s16, 0
    %p147 = por %p145, %p146
    %p148 = scmp.le.s32.totalorder 1, %s10
    %p149 = scmp.lt.s32.totalorder %s10, 3
    %p150 = pnand %p148, %p149
    %p151 = pneg %p150
    // Predicated region
    $region9: #{run.27} parent=5 // pred_check
      _
    $region10: #{run.27} parent=5 // pred_check_branch
      %153 = sbr.rel (%p150) target = $region12
    $region11: #{run.27} parent=5 // pred_region
      %s154 = ssub.s32 %s10, 1
    $region12: #{run.27} parent=5 // pred_fallthru
      _
    %p155 = scmp.lt.s32.totalorder %s10, 2
    // Predicated region
    $region13: #{run.27} parent=5 // pred_check
      %p156 = pneg %p155
    $region14: #{run.27} parent=5 // pred_check_branch
      %158 = sbr.rel (%p156) target = $region16
    $region15: #{run.27} parent=5 // pred_region
      // Predicated region
      $region17: #{run.27} parent=15 // pred_check
        %p159 = pneg %p30
      $region18: #{run.27} parent=15 // pred_check_branch
        %161 = sbr.rel (%p159) target = $region20
      $region19: #{run.27} parent=15 // pred_region
        %p162 = scmp.lt.s32.totalorder %s10, 1
        %s163 = scalar_select %p162, %s10, 1
        %s164 = smul.addr %s163, 4
        %s165 = smul.addr %s164, 8
        %s166 = scalar_lea.vmem %s0, %s165
      $region20: #{run.27} parent=15 // pred_fallthru
        _
      // Predicated region
      $region21: #{run.27} parent=15 // pred_check
        %p167 = pneg %p56
      $region22: #{run.27} parent=15 // pred_check_branch
        %169 = sbr.rel (%p167) target = $region24
      $region23: #{run.27} parent=15 // pred_region
        %p170 = scmp.lt.s32.totalorder %s10, 1
        %s171 = scalar_select %p170, %s10, 1
        %s172 = smul.addr %s171, 4
        %s173 = smul.addr %s172, 8
        %s174 = scalar_lea.vmem %s1, %s173
      $region24: #{run.27} parent=15 // pred_fallthru
        _
      // Predicated region
      $region25: #{run.27} parent=15 // pred_check
        %p175 = pneg %p82
      $region26: #{run.27} parent=15 // pred_check_branch
        %177 = sbr.rel (%p175) target = $region28
      $region27: #{run.27} parent=15 // pred_region
        %p178 = scmp.lt.s32.totalorder %s10, 1
        %s179 = scalar_select %p178, %s10, 1
        %s180 = smul.addr %s179, 4
        %s181 = smul.addr %s180, 8
        %s182 = scalar_lea.vmem %s2, %s181
      $region28: #{run.27} parent=15 // pred_fallthru
        _
      // Predicated region
      $region29: #{run.27} parent=15 // pred_check
        %p183 = pneg %p108
      $region30: #{run.27} parent=15 // pred_check_branch
        %185 = sbr.rel (%p183) target = $region32
      $region31: #{run.27} parent=15 // pred_region
        %p186 = scmp.lt.s32.totalorder %s10, 1
        %s187 = scalar_select %p186, %s10, 1
        %s188 = scalar_lea.vmem %s3, %s187
      $region32: #{run.27} parent=15 // pred_fallthru
        _
    $region16: #{run.27} parent=5 // pred_fallthru
      _
    %p189 = scmp.le.s32.totalorder 1, %s10
    %p190 = scmp.lt.s32.totalorder %s10, 3
    %p191 = pnand %p189, %p190
    %p192 = pneg %p191
    // Predicated region
    $region33: #{run.27} parent=5 // pred_check
      _
    $region34: #{run.27} parent=5 // pred_check_branch
      %194 = sbr.rel (%p191) target = $region36
    $region35: #{run.27} parent=5 // pred_region
      %s195 = ssub.s32 %s10, 1
      %p196 = scmp.lt.s32.totalorder %s15, 1
      %s197 = scalar_select %p196, %s15, 1
      %s198 = smul.addr %s197, 4
      %s199 = smul.addr %s198, 8
      %s200 = scalar_lea.vmem %s0, %s199
      %p201 = pneg %p36
      %p202 = pneg %p33
      %p203 = scmp.lt.s32.totalorder %s15, 1
      %s204 = scalar_select %p203, %s15, 1
      %s205 = smul.addr %s204, 4
      %s206 = smul.addr %s205, 8
      %s207 = scalar_lea.vmem %s1, %s206
      %p208 = pneg %p62
      %p209 = pneg %p59
      %p210 = scmp.lt.s32.totalorder %s15, 1
      %s211 = scalar_select %p210, %s15, 1
      %s212 = smul.addr %s211, 4
      %s213 = smul.addr %s212, 8
      %s214 = scalar_lea.vmem %s2, %s213
      %p215 = pneg %p88
      %p216 = pneg %p85
      %p217 = scmp.lt.s32.totalorder %s15, 1
      %s218 = scalar_select %p217, %s15, 1
      %s219 = scalar_lea.vmem %s3, %s218
      %p220 = pneg %p114
      %p221 = pneg %p111
      %p222 = pneg %p140
      %p223 = pneg %p137
      %p224 = scmp.lt.s32.totalorder %s15, 1
      %s225 = scalar_select %p224, %s15, 1
      %s226 = smul.addr %s225, 8
      %s227 = scalar_lea.vmem %s4, %s226
      %p228 = scmp.lt.s32.totalorder %s15, 1
      %s229 = scalar_select %p228, %s15, 1
      %s230 = smul.addr %s229, 4
      %s231 = smul.addr %s230, 8
      %s232 = scalar_lea.vmem %s0, %s231
      %p233 = scmp.lt.s32.totalorder %s15, 1
      %s234 = scalar_select %p233, %s15, 1
      %s235 = smul.addr %s234, 4
      %s236 = smul.addr %s235, 8
      %s237 = scalar_lea.vmem %s1, %s236
      %p238 = scmp.lt.s32.totalorder %s15, 1
      %s239 = scalar_select %p238, %s15, 1
      %s240 = smul.addr %s239, 4
      %s241 = smul.addr %s240, 8
      %s242 = scalar_lea.vmem %s2, %s241
      %p243 = scmp.lt.s32.totalorder %s15, 1
      %s244 = scalar_select %p243, %s15, 1
      %s245 = scalar_lea.vmem %s3, %s244
      %p246 = scmp.lt.s32.totalorder %s15, 1
      %s247 = scalar_select %p246, %s15, 1
      %s248 = smul.addr %s247, 8
      %s249 = scalar_lea.vmem %s4, %s248
      %v251 = vld [vmem:[%s232] sm:$0xff]
      %v252 = vld [vmem:[%s232 + $0x8] sm:$0xff]
      %v253 = vld [vmem:[%s232 + $0x10] sm:$0xff]
      %v254 = vld [vmem:[%s232 + $0x18] sm:$0xff]
      %v255 = vld [vmem:[%s237] sm:$0xff]
      %v256 = vld [vmem:[%s237 + $0x8] sm:$0xff]
      %v257 = vld [vmem:[%s237 + $0x10] sm:$0xff]
      %v258 = vld [vmem:[%s237 + $0x18] sm:$0xff]
      %v259 = vld [vmem:[%s242] sm:$0xff]
      %v260 = vld [vmem:[%s242 + $0x8] sm:$0xff]
      %v261 = vld [vmem:[%s242 + $0x10] sm:$0xff]
      %v262 = vld [vmem:[%s242 + $0x18] sm:$0xff]
      %v263 = vld [vmem:[%s245] sm:$0x1]
      %v264 = vsub.f32 1.0, %v263
      %v265 = vmul.f32 %v264, -1e+09
      %v266 = vpack.c.bf16 %v251, %v251
      %v267 = vpack.c.bf16 %v255, %v255
      %vm268 = vcmask 64512
      %v270 = vsel %vm268, %v266, 0
      %v273 = vsel %vm268, %v267, 0
      %275 = vmatprep.subr.bf16.mxu0 0
      %276 = vmatpush1.bf16.xpose.msra.mxu0 0
      %277 = vmatprep.subr.bf16.mxu0 0
      %278 = vmatpush1.bf16.xpose.msra.mxu0 0
      %279 = vmatprep.subr.bf16.mxu0 0
      %280 = vmatpush1.bf16.xpose.msra.mxu0 0
      %281 = vmatprep.subr.bf16.mxu0 0
      %282 = vmatpush1.bf16.xpose.msra.mxu0 0
      %283 = vmatprep.subr.bf16.mxu0 0
      %284 = vmatpush1.bf16.xpose.msra.mxu0 0
      %285 = vmatprep.subr.bf16.mxu0 0
      %286 = vmatpush1.bf16.xpose.msra.mxu0 0
      %287 = vmatprep.subr.bf16.mxu0 0
      %288 = vmatpush1.bf16.xpose.msra.mxu0 0
      %289 = vmatprep.subr.bf16.mxu0 0
      %290 = vmatpush1.bf16.xpose.msra.mxu0 %v273
      %291 = vmatprep.subr.bf16.mxu0 0
      %292 = vmatpush2.bf16.xpose.msra.mxu0 0
      %293 = vmatprep.subr.bf16.mxu0 0
      %294 = vmatpush2.bf16.xpose.msra.mxu0 0
      %295 = vmatprep.subr.bf16.mxu0 0
      %296 = vmatpush2.bf16.xpose.msra.mxu0 0
      %297 = vmatprep.subr.bf16.mxu0 0
      %298 = vmatpush2.bf16.xpose.msra.mxu0 0
      %299 = vmatprep.subr.bf16.mxu0 0
      %300 = vmatpush2.bf16.xpose.msra.mxu0 0
      %301 = vmatprep.subr.bf16.mxu0 0
      %302 = vmatpush2.bf16.xpose.msra.mxu0 0
      %303 = vmatprep.subr.bf16.mxu0 0
      %304 = vmatpush2.bf16.xpose.msra.mxu0 0
      %305 = vmatprep.subr.bf16.mxu0 0
      %306 = vmatpush2.bf16.xpose.msra.mxu0 0
      %307 = vmatprep.mubr.bf16.mxu0 0
      %308 = vmatmul.mubr.bf16.gmra.mxu0 %v270
      %v309 = vpop.f32.mrf.mxu0
      %v310 = vadd.f32 0.0, %v309
      %v311 = vpop.f32.mrf.mxu0
      %v312 = vpop.f32.mrf.mxu0
      %v313 = vpop.f32.mrf.mxu0
      %314 = vdwg.mxu0
      %v315 = vmul.f32 %v310, 0.35355338
      %v317 = vlaneseq
      %v318 = vshrl.u32 %v317, 7
      %v319 = vsub.s32 0, %v318
      %v320 = vrot.slane %v265, %v319
      %v322 = vadd.f32 %v315, %v320
      %v323 = vsel %vm268, %v322, -inf
      %324 = vmax.xlane.f32.xlu0 %v323
      %v325 = vpop.xlane.xlu0 %324
      %v326 = vsub.f32 %v322, %v325
      %v327 = vmul.f32 %v326, 1.442695
      %v328 = vpow.pop %v327
      %v329 = vsel %vm268, %v328, 0.0
      %330 = vadd.xlane.f32.xlu0 %v329
      %v331 = vpop.xlane.xlu0 %330
      %v332 = vrcp.pop %v331
      %v333 = vmul.f32 %v328, %v332
      %v334 = vpack.c.bf16 %v333, %v333
      %v335 = vpack.c.bf16 %v259, %v259
      %v337 = vsel %vm268, %v334, 0
      %vm339 = vcmask 1043456
      %v341 = vsel %vm339, %v335, 0
      %343 = vmatprep.subr.bf16.mxu0 0
      %344 = vmatpush1.bf16.msra.mxu0 0
      %345 = vmatprep.subr.bf16.mxu0 0
      %346 = vmatpush1.bf16.msra.mxu0 0
      %347 = vmatprep.subr.bf16.mxu0 0
      %348 = vmatpush1.bf16.msra.mxu0 0
      %349 = vmatprep.subr.bf16.mxu0 0
      %350 = vmatpush1.bf16.msra.mxu0 0
      %351 = vmatprep.subr.bf16.mxu0 0
      %352 = vmatpush1.bf16.msra.mxu0 0
      %353 = vmatprep.subr.bf16.mxu0 0
      %354 = vmatpush1.bf16.msra.mxu0 0
      %355 = vmatprep.subr.bf16.mxu0 0
      %356 = vmatpush1.bf16.msra.mxu0 0
      %357 = vmatprep.subr.bf16.mxu0 0
      %358 = vmatpush1.bf16.msra.mxu0 %v341
      %359 = vmatprep.subr.bf16.mxu0 0
      %360 = vmatpush2.bf16.msra.mxu0 0
      %361 = vmatprep.subr.bf16.mxu0 0
      %362 = vmatpush2.bf16.msra.mxu0 0
      %363 = vmatprep.subr.bf16.mxu0 0
      %364 = vmatpush2.bf16.msra.mxu0 0
      %365 = vmatprep.subr.bf16.mxu0 0
      %366 = vmatpush2.bf16.msra.mxu0 0
      %367 = vmatprep.subr.bf16.mxu0 0
      %368 = vmatpush2.bf16.msra.mxu0 0
      %369 = vmatprep.subr.bf16.mxu0 0
      %370 = vmatpush2.bf16.msra.mxu0 0
      %371 = vmatprep.subr.bf16.mxu0 0
      %372 = vmatpush2.bf16.msra.mxu0 0
      %373 = vmatprep.subr.bf16.mxu0 0
      %374 = vmatpush2.bf16.msra.mxu0 0
      %375 = vmatprep.mubr.bf16.mxu0 0
      %376 = vmatmul.mubr.bf16.gmra.mxu0 %v337
      %v377 = vpop.f32.mrf.mxu0
      %v378 = vadd.f32 0.0, %v377
      %v379 = vpop.f32.mrf.mxu0
      %v380 = vpop.f32.mrf.mxu0
      %v381 = vpop.f32.mrf.mxu0
      %382 = vdwg.mxu0
      %v383 = vpack.c.bf16 %v252, %v252
      %v384 = vpack.c.bf16 %v256, %v256
      %v386 = vsel %vm268, %v383, 0
      %v389 = vsel %vm268, %v384, 0
      %391 = vmatprep.subr.bf16.mxu0 0
      %392 = vmatpush1.bf16.xpose.msra.mxu0 0
      %393 = vmatprep.subr.bf16.mxu0 0
      %394 = vmatpush1.bf16.xpose.msra.mxu0 0
      %395 = vmatprep.subr.bf16.mxu0 0
      %396 = vmatpush1.bf16.xpose.msra.mxu0 0
      %397 = vmatprep.subr.bf16.mxu0 0
      %398 = vmatpush1.bf16.xpose.msra.mxu0 0
      %399 = vmatprep.subr.bf16.mxu0 0
      %400 = vmatpush1.bf16.xpose.msra.mxu0 0
      %401 = vmatprep.subr.bf16.mxu0 0
      %402 = vmatpush1.bf16.xpose.msra.mxu0 0
      %403 = vmatprep.subr.bf16.mxu0 0
      %404 = vmatpush1.bf16.xpose.msra.mxu0 0
      %405 = vmatprep.subr.bf16.mxu0 0
      %406 = vmatpush1.bf16.xpose.msra.mxu0 %v389
      %407 = vmatprep.subr.bf16.mxu0 0
      %408 = vmatpush2.bf16.xpose.msra.mxu0 0
      %409 = vmatprep.subr.bf16.mxu0 0
      %410 = vmatpush2.bf16.xpose.msra.mxu0 0
      %411 = vmatprep.subr.bf16.mxu0 0
      %412 = vmatpush2.bf16.xpose.msra.mxu0 0
      %413 = vmatprep.subr.bf16.mxu0 0
      %414 = vmatpush2.bf16.xpose.msra.mxu0 0
      %415 = vmatprep.subr.bf16.mxu0 0
      %416 = vmatpush2.bf16.xpose.msra.mxu0 0
      %417 = vmatprep.subr.bf16.mxu0 0
      %418 = vmatpush2.bf16.xpose.msra.mxu0 0
      %419 = vmatprep.subr.bf16.mxu0 0
      %420 = vmatpush2.bf16.xpose.msra.mxu0 0
      %421 = vmatprep.subr.bf16.mxu0 0
      %422 = vmatpush2.bf16.xpose.msra.mxu0 0
      %423 = vmatprep.mubr.bf16.mxu0 0
      %424 = vmatmul.mubr.bf16.gmra.mxu0 %v386
      %v425 = vpop.f32.mrf.mxu0
      %v426 = vadd.f32 0.0, %v425
      %v427 = vpop.f32.mrf.mxu0
      %v428 = vpop.f32.mrf.mxu0
      %v429 = vpop.f32.mrf.mxu0
      %430 = vdwg.mxu0
      %v431 = vmul.f32 %v426, 0.35355338
      %v432 = vadd.f32 %v431, %v320
      %v433 = vsel %vm268, %v432, -inf
      %434 = vmax.xlane.f32.xlu0 %v433
      %v435 = vpop.xlane.xlu0 %434
      %v436 = vsub.f32 %v432, %v435
      %v437 = vmul.f32 %v436, 1.442695
      %v438 = vpow.pop %v437
      %v439 = vsel %vm268, %v438, 0.0
      %440 = vadd.xlane.f32.xlu0 %v439
      %v441 = vpop.xlane.xlu0 %440
      %v442 = vrcp.pop %v441
      %v443 = vmul.f32 %v438, %v442
      %v444 = vpack.c.bf16 %v443, %v443
      %v445 = vpack.c.bf16 %v260, %v260
      %v447 = vsel %vm268, %v444, 0
      %v450 = vsel %vm339, %v445, 0
      %452 = vmatprep.subr.bf16.mxu0 0
      %453 = vmatpush1.bf16.msra.mxu0 0
      %454 = vmatprep.subr.bf16.mxu0 0
      %455 = vmatpush1.bf16.msra.mxu0 0
      %456 = vmatprep.subr.bf16.mxu0 0
      %457 = vmatpush1.bf16.msra.mxu0 0
      %458 = vmatprep.subr.bf16.mxu0 0
      %459 = vmatpush1.bf16.msra.mxu0 0
      %460 = vmatprep.subr.bf16.mxu0 0
      %461 = vmatpush1.bf16.msra.mxu0 0
      %462 = vmatprep.subr.bf16.mxu0 0
      %463 = vmatpush1.bf16.msra.mxu0 0
      %464 = vmatprep.subr.bf16.mxu0 0
      %465 = vmatpush1.bf16.msra.mxu0 0
      %466 = vmatprep.subr.bf16.mxu0 0
      %467 = vmatpush1.bf16.msra.mxu0 %v450
      %468 = vmatprep.subr.bf16.mxu0 0
      %469 = vmatpush2.bf16.msra.mxu0 0
      %470 = vmatprep.subr.bf16.mxu0 0
      %471 = vmatpush2.bf16.msra.mxu0 0
      %472 = vmatprep.subr.bf16.mxu0 0
      %473 = vmatpush2.bf16.msra.mxu0 0
      %474 = vmatprep.subr.bf16.mxu0 0
      %475 = vmatpush2.bf16.msra.mxu0 0
      %476 = vmatprep.subr.bf16.mxu0 0
      %477 = vmatpush2.bf16.msra.mxu0 0
      %478 = vmatprep.subr.bf16.mxu0 0
      %479 = vmatpush2.bf16.msra.mxu0 0
      %480 = vmatprep.subr.bf16.mxu0 0
      %481 = vmatpush2.bf16.msra.mxu0 0
      %482 = vmatprep.subr.bf16.mxu0 0
      %483 = vmatpush2.bf16.msra.mxu0 0
      %484 = vmatprep.mubr.bf16.mxu0 0
      %485 = vmatmul.mubr.bf16.gmra.mxu0 %v447
      %v486 = vpop.f32.mrf.mxu0
      %v487 = vadd.f32 0.0, %v486
      %v488 = vpop.f32.mrf.mxu0
      %v489 = vpop.f32.mrf.mxu0
      %v490 = vpop.f32.mrf.mxu0
      %491 = vdwg.mxu0
      %v492 = vpack.c.bf16 %v253, %v253
      %v493 = vpack.c.bf16 %v257, %v257
      %v495 = vsel %vm268, %v492, 0
      %v498 = vsel %vm268, %v493, 0
      %500 = vmatprep.subr.bf16.mxu0 0
      %501 = vmatpush1.bf16.xpose.msra.mxu0 0
      %502 = vmatprep.subr.bf16.mxu0 0
      %503 = vmatpush1.bf16.xpose.msra.mxu0 0
      %504 = vmatprep.subr.bf16.mxu0 0
      %505 = vmatpush1.bf16.xpose.msra.mxu0 0
      %506 = vmatprep.subr.bf16.mxu0 0
      %507 = vmatpush1.bf16.xpose.msra.mxu0 0
      %508 = vmatprep.subr.bf16.mxu0 0
      %509 = vmatpush1.bf16.xpose.msra.mxu0 0
      %510 = vmatprep.subr.bf16.mxu0 0
      %511 = vmatpush1.bf16.xpose.msra.mxu0 0
      %512 = vmatprep.subr.bf16.mxu0 0
      %513 = vmatpush1.bf16.xpose.msra.mxu0 0
      %514 = vmatprep.subr.bf16.mxu0 0
      %515 = vmatpush1.bf16.xpose.msra.mxu0 %v498
      %516 = vmatprep.subr.bf16.mxu0 0
      %517 = vmatpush2.bf16.xpose.msra.mxu0 0
      %518 = vmatprep.subr.bf16.mxu0 0
      %519 = vmatpush2.bf16.xpose.msra.mxu0 0
      %520 = vmatprep.subr.bf16.mxu0 0
      %521 = vmatpush2.bf16.xpose.msra.mxu0 0
      %522 = vmatprep.subr.bf16.mxu0 0
      %523 = vmatpush2.bf16.xpose.msra.mxu0 0
      %524 = vmatprep.subr.bf16.mxu0 0
      %525 = vmatpush2.bf16.xpose.msra.mxu0 0
      %526 = vmatprep.subr.bf16.mxu0 0
      %527 = vmatpush2.bf16.xpose.msra.mxu0 0
      %528 = vmatprep.subr.bf16.mxu0 0
      %529 = vmatpush2.bf16.xpose.msra.mxu0 0
      %530 = vmatprep.subr.bf16.mxu0 0
      %531 = vmatpush2.bf16.xpose.msra.mxu0 0
      %532 = vmatprep.mubr.bf16.mxu0 0
      %533 = vmatmul.mubr.bf16.gmra.mxu0 %v495
      %v534 = vpop.f32.mrf.mxu0
      %v535 = vadd.f32 0.0, %v534
      %v536 = vpop.f32.mrf.mxu0
      %v537 = vpop.f32.mrf.mxu0
      %v538 = vpop.f32.mrf.mxu0
      %539 = vdwg.mxu0
      %v540 = vmul.f32 %v535, 0.35355338
      %v541 = vadd.f32 %v540, %v320
      %v542 = vsel %vm268, %v541, -inf
      %543 = vmax.xlane.f32.xlu0 %v542
      %v544 = vpop.xlane.xlu0 %543
      %v545 = vsub.f32 %v541, %v544
      %v546 = vmul.f32 %v545, 1.442695
      %v547 = vpow.pop %v546
      %v548 = vsel %vm268, %v547, 0.0
      %549 = vadd.xlane.f32.xlu0 %v548
      %v550 = vpop.xlane.xlu0 %549
      %v551 = vrcp.pop %v550
      %v552 = vmul.f32 %v547, %v551
      %v553 = vpack.c.bf16 %v552, %v552
      %v554 = vpack.c.bf16 %v261, %v261
      %v556 = vsel %vm268, %v553, 0
      %v559 = vsel %vm339, %v554, 0
      %561 = vmatprep.subr.bf16.mxu0 0
      %562 = vmatpush1.bf16.msra.mxu0 0
      %563 = vmatprep.subr.bf16.mxu0 0
      %564 = vmatpush1.bf16.msra.mxu0 0
      %565 = vmatprep.subr.bf16.mxu0 0
      %566 = vmatpush1.bf16.msra.mxu0 0
      %567 = vmatprep.subr.bf16.mxu0 0
      %568 = vmatpush1.bf16.msra.mxu0 0
      %569 = vmatprep.subr.bf16.mxu0 0
      %570 = vmatpush1.bf16.msra.mxu0 0
      %571 = vmatprep.subr.bf16.mxu0 0
      %572 = vmatpush1.bf16.msra.mxu0 0
      %573 = vmatprep.subr.bf16.mxu0 0
      %574 = vmatpush1.bf16.msra.mxu0 0
      %575 = vmatprep.subr.bf16.mxu0 0
      %576 = vmatpush1.bf16.msra.mxu0 %v559
      %577 = vmatprep.subr.bf16.mxu0 0
      %578 = vmatpush2.bf16.msra.mxu0 0
      %579 = vmatprep.subr.bf16.mxu0 0
      %580 = vmatpush2.bf16.msra.mxu0 0
      %581 = vmatprep.subr.bf16.mxu0 0
      %582 = vmatpush2.bf16.msra.mxu0 0
      %583 = vmatprep.subr.bf16.mxu0 0
      %584 = vmatpush2.bf16.msra.mxu0 0
      %585 = vmatprep.subr.bf16.mxu0 0
      %586 = vmatpush2.bf16.msra.mxu0 0
      %587 = vmatprep.subr.bf16.mxu0 0
      %588 = vmatpush2.bf16.msra.mxu0 0
      %589 = vmatprep.subr.bf16.mxu0 0
      %590 = vmatpush2.bf16.msra.mxu0 0
      %591 = vmatprep.subr.bf16.mxu0 0
      %592 = vmatpush2.bf16.msra.mxu0 0
      %593 = vmatprep.mubr.bf16.mxu0 0
      %594 = vmatmul.mubr.bf16.gmra.mxu0 %v556
      %v595 = vpop.f32.mrf.mxu0
      %v596 = vadd.f32 0.0, %v595
      %v597 = vpop.f32.mrf.mxu0
      %v598 = vpop.f32.mrf.mxu0
      %v599 = vpop.f32.mrf.mxu0
      %600 = vdwg.mxu0
      %v601 = vpack.c.bf16 %v254, %v254
      %v602 = vpack.c.bf16 %v258, %v258
      %v604 = vsel %vm268, %v601, 0
      %v607 = vsel %vm268, %v602, 0
      %609 = vmatprep.subr.bf16.mxu0 0
      %610 = vmatpush1.bf16.xpose.msra.mxu0 0
      %611 = vmatprep.subr.bf16.mxu0 0
      %612 = vmatpush1.bf16.xpose.msra.mxu0 0
      %613 = vmatprep.subr.bf16.mxu0 0
      %614 = vmatpush1.bf16.xpose.msra.mxu0 0
      %615 = vmatprep.subr.bf16.mxu0 0
      %616 = vmatpush1.bf16.xpose.msra.mxu0 0
      %617 = vmatprep.subr.bf16.mxu0 0
      %618 = vmatpush1.bf16.xpose.msra.mxu0 0
      %619 = vmatprep.subr.bf16.mxu0 0
      %620 = vmatpush1.bf16.xpose.msra.mxu0 0
      %621 = vmatprep.subr.bf16.mxu0 0
      %622 = vmatpush1.bf16.xpose.msra.mxu0 0
      %623 = vmatprep.subr.bf16.mxu0 0
      %624 = vmatpush1.bf16.xpose.msra.mxu0 %v607
      %625 = vmatprep.subr.bf16.mxu0 0
      %626 = vmatpush2.bf16.xpose.msra.mxu0 0
      %627 = vmatprep.subr.bf16.mxu0 0
      %628 = vmatpush2.bf16.xpose.msra.mxu0 0
      %629 = vmatprep.subr.bf16.mxu0 0
      %630 = vmatpush2.bf16.xpose.msra.mxu0 0
      %631 = vmatprep.subr.bf16.mxu0 0
      %632 = vmatpush2.bf16.xpose.msra.mxu0 0
      %633 = vmatprep.subr.bf16.mxu0 0
      %634 = vmatpush2.bf16.xpose.msra.mxu0 0
      %635 = vmatprep.subr.bf16.mxu0 0
      %636 = vmatpush2.bf16.xpose.msra.mxu0 0
      %637 = vmatprep.subr.bf16.mxu0 0
      %638 = vmatpush2.bf16.xpose.msra.mxu0 0
      %639 = vmatprep.subr.bf16.mxu0 0
      %640 = vmatpush2.bf16.xpose.msra.mxu0 0
      %641 = vmatprep.mubr.bf16.mxu0 0
      %642 = vmatmul.mubr.bf16.gmra.mxu0 %v604
      %v643 = vpop.f32.mrf.mxu0
      %v644 = vadd.f32 0.0, %v643
      %v645 = vpop.f32.mrf.mxu0
      %v646 = vpop.f32.mrf.mxu0
      %v647 = vpop.f32.mrf.mxu0
      %648 = vdwg.mxu0
      %v649 = vmul.f32 %v644, 0.35355338
      %v650 = vadd.f32 %v649, %v320
      %v651 = vsel %vm268, %v650, -inf
      %652 = vmax.xlane.f32.xlu0 %v651
      %v653 = vpop.xlane.xlu0 %652
      %v654 = vsub.f32 %v650, %v653
      %v655 = vmul.f32 %v654, 1.442695
      %v656 = vpow.pop %v655
      %v657 = vsel %vm268, %v656, 0.0
      %658 = vadd.xlane.f32.xlu0 %v657
      %v659 = vpop.xlane.xlu0 %658
      %v660 = vrcp.pop %v659
      %v661 = vmul.f32 %v656, %v660
      %v662 = vpack.c.bf16 %v661, %v661
      %v663 = vpack.c.bf16 %v262, %v262
      %v665 = vsel %vm268, %v662, 0
      %v668 = vsel %vm339, %v663, 0
      %670 = vmatprep.subr.bf16.mxu0 0
      %671 = vmatpush1.bf16.msra.mxu0 0
      %672 = vmatprep.subr.bf16.mxu0 0
      %673 = vmatpush1.bf16.msra.mxu0 0
      %674 = vmatprep.subr.bf16.mxu0 0
      %675 = vmatpush1.bf16.msra.mxu0 0
      %676 = vmatprep.subr.bf16.mxu0 0
      %677 = vmatpush1.bf16.msra.mxu0 0
      %678 = vmatprep.subr.bf16.mxu0 0
      %679 = vmatpush1.bf16.msra.mxu0 0
      %680 = vmatprep.subr.bf16.mxu0 0
      %681 = vmatpush1.bf16.msra.mxu0 0
      %682 = vmatprep.subr.bf16.mxu0 0
      %683 = vmatpush1.bf16.msra.mxu0 0
      %684 = vmatprep.subr.bf16.mxu0 0
      %685 = vmatpush1.bf16.msra.mxu0 %v668
      %686 = vmatprep.subr.bf16.mxu0 0
      %687 = vmatpush2.bf16.msra.mxu0 0
      %688 = vmatprep.subr.bf16.mxu0 0
      %689 = vmatpush2.bf16.msra.mxu0 0
      %690 = vmatprep.subr.bf16.mxu0 0
      %691 = vmatpush2.bf16.msra.mxu0 0
      %692 = vmatprep.subr.bf16.mxu0 0
      %693 = vmatpush2.bf16.msra.mxu0 0
      %694 = vmatprep.subr.bf16.mxu0 0
      %695 = vmatpush2.bf16.msra.mxu0 0
      %696 = vmatprep.subr.bf16.mxu0 0
      %697 = vmatpush2.bf16.msra.mxu0 0
      %698 = vmatprep.subr.bf16.mxu0 0
      %699 = vmatpush2.bf16.msra.mxu0 0
      %700 = vmatprep.subr.bf16.mxu0 0
      %701 = vmatpush2.bf16.msra.mxu0 0
      %702 = vmatprep.mubr.bf16.mxu0 0
      %703 = vmatmul.mubr.bf16.gmra.mxu0 %v665
      %v704 = vpop.f32.mrf.mxu0
      %v705 = vadd.f32 0.0, %v704
      %v706 = vpop.f32.mrf.mxu0
      %v707 = vpop.f32.mrf.mxu0
      %v708 = vpop.f32.mrf.mxu0
      %709 = vdwg.mxu0
      %711 = vrot.lane.b32.xlu0 %v487, 8
      %v712 = vpop.permute.xlu0 %711
      %715 = vrot.lane.b32.xlu0 %v596, 16
      %v716 = vpop.permute.xlu0 %715
      %719 = vrot.lane.b32.xlu0 %v705, 24
      %v720 = vpop.permute.xlu0 %719
      %v722 = vsel %vm268, %v378, %v712
      %vm723 = vcmask 130048
      %v724 = vsel %vm723, %v722, %v716
      %vm725 = vcmask 195584
      %v726 = vsel %vm725, %v724, %v720
      %vm727 = vcmask 261120
      %728 = vst.msk [vmem:[%s249] sm:$0xff] %vm727, %v726
      %p729 = scmp.lt.s32.totalorder %s15, 1
      %s730 = scalar_select %p729, %s15, 1
      %s731 = smul.addr %s730, 8
      %s732 = scalar_lea.vmem %s4, %s731
      // Predicated region
      $region37: #{run.27} parent=35 // pred_check
        %p733 = pneg %p137
      $region38: #{run.27} parent=35 // pred_check_branch
        %735 = sbr.rel (%p733) target = $region40
      $region39: #{run.27} parent=35 // pred_region
        _
      $region40: #{run.27} parent=35 // pred_fallthru
        _
    $region36: #{run.27} parent=5 // pred_fallthru
      _
    %p736 = scmp.le.s32.totalorder 2, %s10
    // Predicated region
    $region41: #{run.27} parent=5 // pred_check
      %p737 = pneg %p736
    $region42: #{run.27} parent=5 // pred_check_branch
      %739 = sbr.rel (%p737) target = $region44
    $region43: #{run.27} parent=5 // pred_region
      %s740 = ssub.s32 %s10, 2
      // Predicated region
      $region45: #{run.27} parent=43 // pred_check
        %p741 = pneg %p143
      $region46: #{run.27} parent=43 // pred_check_branch
        %743 = sbr.rel (%p741) target = $region48
      $region47: #{run.27} parent=43 // pred_region
        %p744 = scmp.lt.s32.totalorder %s16, 1
        %s745 = scalar_select %p744, %s16, 1
        %s746 = smul.addr %s745, 8
        %s747 = scalar_lea.vmem %s4, %s746
      $region48: #{run.27} parent=43 // pred_fallthru
        _
    $region44: #{run.27} parent=5 // pred_fallthru
      _
  $region6: #{run.27} parent=0 // loop_footer
    %s14 = sadd.s32 1, %s10
  $region7: #{run.27} parent=0 // loop_footer_branch
    %9 = sbr.rel target = $region3
  $region8: #{run.27} parent=0 // loop_exit
    _

// kernel: run.29
$region0: #{run.29}
  #allocation0 [shape = 'u32[]', space=smem, size = 0x4, offset = 0x4, fixed_abs, tag = 'smem constant byte address 0x4 - core index']
  #allocation1 [shape = 'u32[144,128]{1,0:T(1,128)}', space=vmem, size = 0x12000, scoped, tag = 'internal scratch']
  %s0 = inlined_call_operand.vmem [shape: f32[16,32], index: 0, kind: input, shape index: {}]
  %s1 = inlined_call_operand.vmem [shape: f32[1,32], index: 1, kind: input, shape index: {}]
  %s2 = inlined_call_operand.vmem [shape: f32[32,64], index: 2, kind: input, shape index: {}]
  %s3 = inlined_call_operand.vmem [shape: f32[1,64], index: 3, kind: input, shape index: {}]
  %s4 = inlined_call_operand.vmem [shape: f32[64,32], index: 4, kind: input, shape index: {}]
  %s5 = inlined_call_operand.vmem [shape: f32[1,32], index: 5, kind: input, shape index: {}]
  %s6 = inlined_call_operand.vmem [shape: f32[16,32], index: 6, kind: output, shape index: {}]
  %s7 = sld [smem:[#allocation0]]
  $region34: #{run.29} parent=0
    _
  %s9 = ssub.s32 1, %s7
  %s10 = scalar_select 0, %s9, %s7
  // Predicated region
  $region2: #{run.29} parent=0 // pred_check
    _
  $region3: #{run.29} parent=0 // pred_check_branch
    %12 = sbr.rel (0) target = $region5
  $region4: #{run.29} parent=0 // pred_region
    _
  $region5: #{run.29} parent=0 // pred_fallthru
    _
  // Predicated region
  $region6: #{run.29} parent=0 // pred_check
    _
  $region7: #{run.29} parent=0 // pred_check_branch
    %14 = sbr.rel (0) target = $region9
  $region8: #{run.29} parent=0 // pred_region
    _
  $region9: #{run.29} parent=0 // pred_fallthru
    _
  // Predicated region
  $region10: #{run.29} parent=0 // pred_check
    _
  $region11: #{run.29} parent=0 // pred_check_branch
    %16 = sbr.rel (0) target = $region13
  $region12: #{run.29} parent=0 // pred_region
    _
  $region13: #{run.29} parent=0 // pred_fallthru
    _
  // Predicated region
  $region14: #{run.29} parent=0 // pred_check
    _
  $region15: #{run.29} parent=0 // pred_check_branch
    %18 = sbr.rel (0) target = $region17
  $region16: #{run.29} parent=0 // pred_region
    _
  $region17: #{run.29} parent=0 // pred_fallthru
    _
  // Predicated region
  $region18: #{run.29} parent=0 // pred_check
    _
  $region19: #{run.29} parent=0 // pred_check_branch
    %20 = sbr.rel (0) target = $region21
  $region20: #{run.29} parent=0 // pred_region
    _
  $region21: #{run.29} parent=0 // pred_fallthru
    _
  // Predicated region
  $region22: #{run.29} parent=0 // pred_check
    _
  $region23: #{run.29} parent=0 // pred_check_branch
    %22 = sbr.rel (0) target = $region25
  $region24: #{run.29} parent=0 // pred_region
    _
  $region25: #{run.29} parent=0 // pred_fallthru
    _
  %v24 = vld [vmem:[%s0] sm:$0xff]
  %v25 = vld [vmem:[%s0 + $0x8] sm:$0xff]
  %v26 = vmul.f32 %v24, %v24
  %v27 = vmul.f32 %v25, %v25
  %vm28 = vcmask 261120
  %v29 = vsel %vm28, %v26, 0.0
  %30 = vadd.xlane.f32.xlu0 %v29
  %v31 = vpop.xlane.xlu0 %30
  %v32 = vsel %vm28, %v27, 0.0
  %33 = vadd.xlane.f32.xlu0 %v32
  %v34 = vpop.xlane.xlu0 %33
  %v35 = vrcp.pop 32.0
  %v36 = vmul.f32 %v31, %v35
  %v37 = vmul.f32 %v34, %v35
  %v38 = vadd.f32 %v36, 1e-06
  %v39 = vadd.f32 %v37, 1e-06
  %v40 = vrsqrt.pop %v38
  %v41 = vrsqrt.pop %v39
  %v42 = vmul.f32 %v24, %v40
  %v43 = vmul.f32 %v25, %v41
  %v44 = vld [vmem:[%s1] sm:$0x1]
  %v46 = vlaneseq
  %v47 = vshrl.u32 %v46, 7
  %v48 = vsub.s32 0, %v47
  %v49 = vrot.slane %v44, %v48
  %v51 = vmul.f32 %v42, %v49
  %v52 = vmul.f32 %v43, %v49
  %v53 = vpack.c.bf16 %v52, %v51
  %v54 = vld [vmem:[%s2] sm:$0xff]
  %v55 = vld [vmem:[%s2 + $0x8] sm:$0xff]
  %v56 = vld [vmem:[%s2 + $0x10] sm:$0xff]
  %v57 = vld [vmem:[%s2 + $0x18] sm:$0xff]
  %v58 = vpack.c.bf16 %v55, %v54
  %v59 = vpack.c.bf16 %v57, %v56
  %v60 = vld [vmem:[%s3] sm:$0x1]
  %v62 = vlaneseq
  %v63 = vshrl.u32 %v62, 7
  %v64 = vsub.s32 0, %v63
  %v65 = vrot.slane %v60, %v64
  %v68 = vsel %vm28, %v53, 0
  %70 = vmatprep.subr.bf16.mxu0 0
  %71 = vmatpush1.bf16.msra.mxu0 0
  %72 = vmatprep.subr.bf16.mxu0 0
  %73 = vmatpush1.bf16.msra.mxu0 0
  %74 = vmatprep.subr.bf16.mxu0 0
  %75 = vmatpush1.bf16.msra.mxu0 0
  %76 = vmatprep.subr.bf16.mxu0 0
  %77 = vmatpush1.bf16.msra.mxu0 0
  %78 = vmatprep.subr.bf16.mxu0 0
  %79 = vmatpush1.bf16.msra.mxu0 0
  %80 = vmatprep.subr.bf16.mxu0 0
  %81 = vmatpush1.bf16.msra.mxu0 0
  %82 = vmatprep.subr.bf16.mxu0 0
  %83 = vmatpush1.bf16.msra.mxu0 %v59
  %84 = vmatprep.subr.bf16.mxu0 0
  %85 = vmatpush1.bf16.msra.mxu0 %v58
  %86 = vmatprep.subr.bf16.mxu0 0
  %87 = vmatpush2.bf16.msra.mxu0 0
  %88 = vmatprep.subr.bf16.mxu0 0
  %89 = vmatpush2.bf16.msra.mxu0 0
  %90 = vmatprep.subr.bf16.mxu0 0
  %91 = vmatpush2.bf16.msra.mxu0 0
  %92 = vmatprep.subr.bf16.mxu0 0
  %93 = vmatpush2.bf16.msra.mxu0 0
  %94 = vmatprep.subr.bf16.mxu0 0
  %95 = vmatpush2.bf16.msra.mxu0 0
  %96 = vmatprep.subr.bf16.mxu0 0
  %97 = vmatpush2.bf16.msra.mxu0 0
  %98 = vmatprep.subr.bf16.mxu0 0
  %99 = vmatpush2.bf16.msra.mxu0 0
  %100 = vmatprep.subr.bf16.mxu0 0
  %101 = vmatpush2.bf16.msra.mxu0 0
  %102 = vmatprep.mubr.bf16.mxu0 0
  %103 = vmatmul.mubr.bf16.gmra.mxu0 %v68
  %v104 = vpop.f32.mrf.mxu0
  %v105 = vadd.f32 %v65, %v104
  %v106 = vpop.f32.mrf.mxu0
  %v107 = vpop.f32.mrf.mxu0
  %v108 = vadd.f32 %v65, %v107
  %v109 = vpop.f32.mrf.mxu0
  %110 = vdwg.mxu0
  %v111 = vmax.f32 %v105, 0.0
  %v112 = vmax.f32 %v108, 0.0
  %v113 = vpack.c.bf16 %v112, %v111
  %v114 = vld [vmem:[%s4] sm:$0xff]
  %v115 = vld [vmem:[%s4 + $0x8] sm:$0xff]
  %v116 = vld [vmem:[%s4 + $0x10] sm:$0xff]
  %v117 = vld [vmem:[%s4 + $0x18] sm:$0xff]
  %v118 = vld [vmem:[%s4 + $0x20] sm:$0xff]
  %v119 = vld [vmem:[%s4 + $0x28] sm:$0xff]
  %v120 = vld [vmem:[%s4 + $0x30] sm:$0xff]
  %v121 = vld [vmem:[%s4 + $0x38] sm:$0xff]
  %v122 = vpack.c.bf16 %v115, %v114
  %v123 = vpack.c.bf16 %v117, %v116
  %v124 = vpack.c.bf16 %v119, %v118
  %v125 = vpack.c.bf16 %v121, %v120
  %v126 = vld [vmem:[%s5] sm:$0x1]
  %v128 = vlaneseq
  %v129 = vshrl.u32 %v128, 7
  %v130 = vsub.s32 0, %v129
  %v131 = vrot.slane %v126, %v130
  %vm133 = vcmask 523264
  %v135 = vsel %vm133, %v113, 0
  %137 = vmatprep.subr.bf16.mxu0 0
  %138 = vmatpush1.bf16.msra.mxu0 0
  %139 = vmatprep.subr.bf16.mxu0 0
  %140 = vmatpush1.bf16.msra.mxu0 0
  %141 = vmatprep.subr.bf16.mxu0 0
  %142 = vmatpush1.bf16.msra.mxu0 0
  %143 = vmatprep.subr.bf16.mxu0 0
  %144 = vmatpush1.bf16.msra.mxu0 0
  %145 = vmatprep.subr.bf16.mxu0 0
  %146 = vmatpush1.bf16.msra.mxu0 %v125
  %147 = vmatprep.subr.bf16.mxu0 0
  %148 = vmatpush1.bf16.msra.mxu0 %v124
  %149 = vmatprep.subr.bf16.mxu0 0
  %150 = vmatpush1.bf16.msra.mxu0 %v123
  %151 = vmatprep.subr.bf16.mxu0 0
  %152 = vmatpush1.bf16.msra.mxu0 %v122
  %153 = vmatprep.subr.bf16.mxu0 0
  %154 = vmatpush2.bf16.msra.mxu0 0
  %155 = vmatprep.subr.bf16.mxu0 0
  %156 = vmatpush2.bf16.msra.mxu0 0
  %157 = vmatprep.subr.bf16.mxu0 0
  %158 = vmatpush2.bf16.msra.mxu0 0
  %159 = vmatprep.subr.bf16.mxu0 0
  %160 = vmatpush2.bf16.msra.mxu0 0
  %161 = vmatprep.subr.bf16.mxu0 0
  %162 = vmatpush2.bf16.msra.mxu0 0
  %163 = vmatprep.subr.bf16.mxu0 0
  %164 = vmatpush2.bf16.msra.mxu0 0
  %165 = vmatprep.subr.bf16.mxu0 0
  %166 = vmatpush2.bf16.msra.mxu0 0
  %167 = vmatprep.subr.bf16.mxu0 0
  %168 = vmatpush2.bf16.msra.mxu0 0
  %169 = vmatprep.mubr.bf16.mxu0 0
  %170 = vmatmul.mubr.bf16.gmra.mxu0 %v135
  %v171 = vpop.f32.mrf.mxu0
  %v172 = vadd.f32 %v131, %v171
  %v173 = vpop.f32.mrf.mxu0
  %v174 = vpop.f32.mrf.mxu0
  %v175 = vadd.f32 %v131, %v174
  %v176 = vpop.f32.mrf.mxu0
  %177 = vdwg.mxu0
  %v178 = vadd.f32 %v24, %v172
  %v179 = vadd.f32 %v25, %v175
  %180 = vst.msk [vmem:[%s6] sm:$0xff] %vm28, %v178
  %181 = vst.msk [vmem:[%s6 + $0x8] sm:$0xff] %vm28, %v179
  // Predicated region
  $region26: #{run.29} parent=0 // pred_check
    _
  $region27: #{run.29} parent=0 // pred_check_branch
    %183 = sbr.rel (0) target = $region29
  $region28: #{run.29} parent=0 // pred_region
    _
  $region29: #{run.29} parent=0 // pred_fallthru
    _
  // Predicated region
  $region30: #{run.29} parent=0 // pred_check
    _
  $region31: #{run.29} parent=0 // pred_check_branch
    %185 = sbr.rel (0) target = $region33
  $region32: #{run.29} parent=0 // pred_region
    _
  $region33: #{run.29} parent=0 // pred_fallthru
    _

// kernel: run.37
$region0: #{run.37}
  #allocation0 [shape = 'u32[]', space=smem, size = 0x4, offset = 0x4, fixed_abs, tag = 'smem constant byte address 0x4 - core index']
  #allocation1 [shape = 'u32[144,128]{1,0:T(1,128)}', space=vmem, size = 0x12000, scoped, tag = 'internal scratch']
  %s0 = inlined_call_operand.vmem [shape: f32[16,32], index: 0, kind: input, shape index: {}]
  %s1 = inlined_call_operand.vmem [shape: f32[1,32], index: 1, kind: input, shape index: {}]
  %s2 = inlined_call_operand.vmem [shape: f32[32,32], index: 2, kind: input, shape index: {}]
  %s3 = inlined_call_operand.vmem [shape: f32[1,32], index: 3, kind: input, shape index: {}]
  %s4 = inlined_call_operand.vmem [shape: f32[16,32], index: 4, kind: output, shape index: {}]
  %s5 = sld [smem:[#allocation0]]
  $region26: #{run.37} parent=0
    _
  %s7 = ssub.s32 1, %s5
  %s8 = scalar_select 0, %s7, %s5
  // Predicated region
  $region2: #{run.37} parent=0 // pred_check
    _
  $region3: #{run.37} parent=0 // pred_check_branch
    %10 = sbr.rel (0) target = $region5
  $region4: #{run.37} parent=0 // pred_region
    _
  $region5: #{run.37} parent=0 // pred_fallthru
    _
  // Predicated region
  $region6: #{run.37} parent=0 // pred_check
    _
  $region7: #{run.37} parent=0 // pred_check_branch
    %12 = sbr.rel (0) target = $region9
  $region8: #{run.37} parent=0 // pred_region
    _
  $region9: #{run.37} parent=0 // pred_fallthru
    _
  // Predicated region
  $region10: #{run.37} parent=0 // pred_check
    _
  $region11: #{run.37} parent=0 // pred_check_branch
    %14 = sbr.rel (0) target = $region13
  $region12: #{run.37} parent=0 // pred_region
    _
  $region13: #{run.37} parent=0 // pred_fallthru
    _
  // Predicated region
  $region14: #{run.37} parent=0 // pred_check
    _
  $region15: #{run.37} parent=0 // pred_check_branch
    %16 = sbr.rel (0) target = $region17
  $region16: #{run.37} parent=0 // pred_region
    _
  $region17: #{run.37} parent=0 // pred_fallthru
    _
  %v18 = vld [vmem:[%s0] sm:$0xff]
  %v19 = vld [vmem:[%s0 + $0x8] sm:$0xff]
  %v20 = vmul.f32 %v18, %v18
  %v21 = vmul.f32 %v19, %v19
  %vm22 = vcmask 261120
  %v23 = vsel %vm22, %v20, 0.0
  %24 = vadd.xlane.f32.xlu0 %v23
  %v25 = vpop.xlane.xlu0 %24
  %v26 = vsel %vm22, %v21, 0.0
  %27 = vadd.xlane.f32.xlu0 %v26
  %v28 = vpop.xlane.xlu0 %27
  %v29 = vrcp.pop 32.0
  %v30 = vmul.f32 %v25, %v29
  %v31 = vmul.f32 %v28, %v29
  %v32 = vadd.f32 %v30, 1e-06
  %v33 = vadd.f32 %v31, 1e-06
  %v34 = vrsqrt.pop %v32
  %v35 = vrsqrt.pop %v33
  %v36 = vmul.f32 %v18, %v34
  %v37 = vmul.f32 %v19, %v35
  %v38 = vld [vmem:[%s1] sm:$0x1]
  %v40 = vlaneseq
  %v41 = vshrl.u32 %v40, 7
  %v42 = vsub.s32 0, %v41
  %v43 = vrot.slane %v38, %v42
  %v45 = vmul.f32 %v36, %v43
  %v46 = vmul.f32 %v37, %v43
  %v47 = vpack.c.bf16 %v46, %v45
  %v48 = vld [vmem:[%s2] sm:$0xff]
  %v49 = vld [vmem:[%s2 + $0x8] sm:$0xff]
  %v50 = vld [vmem:[%s2 + $0x10] sm:$0xff]
  %v51 = vld [vmem:[%s2 + $0x18] sm:$0xff]
  %v52 = vpack.c.bf16 %v49, %v48
  %v53 = vpack.c.bf16 %v51, %v50
  %v54 = vld [vmem:[%s3] sm:$0x1]
  %v56 = vlaneseq
  %v57 = vshrl.u32 %v56, 7
  %v58 = vsub.s32 0, %v57
  %v59 = vrot.slane %v54, %v58
  %v62 = vsel %vm22, %v47, 0
  %64 = vmatprep.subr.bf16.mxu0 0
  %65 = vmatpush1.bf16.msra.mxu0 0
  %66 = vmatprep.subr.bf16.mxu0 0
  %67 = vmatpush1.bf16.msra.mxu0 0
  %68 = vmatprep.subr.bf16.mxu0 0
  %69 = vmatpush1.bf16.msra.mxu0 0
  %70 = vmatprep.subr.bf16.mxu0 0
  %71 = vmatpush1.bf16.msra.mxu0 0
  %72 = vmatprep.subr.bf16.mxu0 0
  %73 = vmatpush1.bf16.msra.mxu0 0
  %74 = vmatprep.subr.bf16.mxu0 0
  %75 = vmatpush1.bf16.msra.mxu0 0
  %76 = vmatprep.subr.bf16.mxu0 0
  %77 = vmatpush1.bf16.msra.mxu0 %v53
  %78 = vmatprep.subr.bf16.mxu0 0
  %79 = vmatpush1.bf16.msra.mxu0 %v52
  %80 = vmatprep.subr.bf16.mxu0 0
  %81 = vmatpush2.bf16.msra.mxu0 0
  %82 = vmatprep.subr.bf16.mxu0 0
  %83 = vmatpush2.bf16.msra.mxu0 0
  %84 = vmatprep.subr.bf16.mxu0 0
  %85 = vmatpush2.bf16.msra.mxu0 0
  %86 = vmatprep.subr.bf16.mxu0 0
  %87 = vmatpush2.bf16.msra.mxu0 0
  %88 = vmatprep.subr.bf16.mxu0 0
  %89 = vmatpush2.bf16.msra.mxu0 0
  %90 = vmatprep.subr.bf16.mxu0 0
  %91 = vmatpush2.bf16.msra.mxu0 0
  %92 = vmatprep.subr.bf16.mxu0 0
  %93 = vmatpush2.bf16.msra.mxu0 0
  %94 = vmatprep.subr.bf16.mxu0 0
  %95 = vmatpush2.bf16.msra.mxu0 0
  %96 = vmatprep.mubr.bf16.mxu0 0
  %97 = vmatmul.mubr.bf16.gmra.mxu0 %v62
  %v98 = vpop.f32.mrf.mxu0
  %v99 = vadd.f32 %v59, %v98
  %v100 = vpop.f32.mrf.mxu0
  %v101 = vpop.f32.mrf.mxu0
  %v102 = vadd.f32 %v59, %v101
  %v103 = vpop.f32.mrf.mxu0
  %104 = vdwg.mxu0
  %105 = vst.msk [vmem:[%s4] sm:$0xff] %vm22, %v99
  %106 = vst.msk [vmem:[%s4 + $0x8] sm:$0xff] %vm22, %v102
  // Predicated region
  $region18: #{run.37} parent=0 // pred_check
    _
  $region19: #{run.37} parent=0 // pred_check_branch
    %108 = sbr.rel (0) target = $region21
  $region20: #{run.37} parent=0 // pred_region
    _
  $region21: #{run.37} parent=0 // pred_fallthru
    _
  // Predicated region
  $region22: #{run.37} parent=0 // pred_check
    _
  $region23: #{run.37} parent=0 // pred_check_branch
    %110 = sbr.rel (0) target = $region25
  $region24: #{run.37} parent=0 // pred_region
    _
  $region25: #{run.37} parent=0 // pred_fallthru
    _

// kernel: run.35
$region0: #{run.35}
  #allocation0 [shape = 'u32[]', space=smem, size = 0x4, offset = 0x4, fixed_abs, tag = 'smem constant byte address 0x4 - core index']
  #allocation1 [shape = 'u32[144,128]{1,0:T(1,128)}', space=vmem, size = 0x12000, scoped, tag = 'internal scratch']
  %s0 = inlined_call_operand.vmem [shape: f32[2,4,8,8], index: 0, kind: input, shape index: {}]
  %s1 = inlined_call_operand.vmem [shape: f32[2,4,8,8], index: 1, kind: input, shape index: {}]
  %s2 = inlined_call_operand.vmem [shape: f32[2,4,8,8], index: 2, kind: input, shape index: {}]
  %s3 = inlined_call_operand.vmem [shape: f32[2,1,8], index: 3, kind: input, shape index: {}]
  %s4 = inlined_call_operand.vmem [shape: f32[2,8,32], index: 4, kind: output, shape index: {}]
  %s5 = sld [smem:[#allocation0]]
  $region49: #{run.35} parent=0
    _
  %s7 = ssub.s32 1, %s5
  %s8 = scalar_select 0, %s7, %s5
  loop: start=0, step=1, limit=4
  $region2: #{run.35} parent=0 // loop_pre_header
    _
  $region3: #{run.35} parent=0 // loop_header
    %s10 = sphi 0, %s14
    %p11 = scmp.ge.s32.totalorder %s10, 4
    %s20 = sphi 0, %s22
    %s23 = sphi 0, %s20
    %s24 = sphi 0, %s23
    %s40 = sphi 0, %s24
    %s46 = sphi 0, %s48
    %s49 = sphi 0, %s46
    %s50 = sphi 0, %s49
    %s66 = sphi 0, %s50
    %s72 = sphi 0, %s74
    %s75 = sphi 0, %s72
    %s76 = sphi 0, %s75
    %s92 = sphi 0, %s76
    %s98 = sphi 0, %s100
    %s101 = sphi 0, %s98
    %s102 = sphi 0, %s101
    %s118 = sphi 0, %s102
    %s124 = sphi 0, %s126
    %s127 = sphi 0, %s124
    %s128 = sphi 0, %s127
    %s144 = sphi 0, %s128
  $region4: #{run.35} parent=0 // loop_header_branch
    %13 = sbr.rel (%p11) target = $region8
  $region5: #{run.35} parent=0 // loop_body
    %s15 = ssub.s32 %s10, 1
    %s16 = ssub.s32 %s10, 2
    %s17 = sadd.s32 %s10, 1
    %s18 = ssub.s32 %s10, %s17
    %p19 = scmp.eq.s32.totalorder %s18, 0
    %s21 = sadd.s32 %s20, 1
    %s22 = scalar_select %p19, %s20, %s21
    %p25 = pneg %p19
    %p26 = scmp.eq.s32.totalorder %s10, 1
    %p27 = por %p25, %p26
    %p28 = scmp.ne.s32.totalorder %s20, %s23
    %p29 = scmp.eq.s32.totalorder %s10, 0
    %p30 = por %p28, %p29
    %p31 = scmp.ne.s32.totalorder %s20, %s23
    %p32 = scmp.eq.s32.totalorder %s15, 1
    %p33 = por %p31, %p32
    %p34 = scmp.ne.s32.totalorder %s23, %s24
    %p35 = scmp.eq.s32.totalorder %s15, 0
    %p36 = por %p34, %p35
    %p37 = scmp.ne.s32.totalorder %s23, %s24
    %p38 = scmp.eq.s32.totalorder %s16, 1
    %p39 = por %p37, %p38
    %p41 = scmp.ne.s32.totalorder %s24, %s40
    %p42 = scmp.eq.s32.totalorder %s16, 0
    %p43 = por %p41, %p42
    %s44 = ssub.s32 %s10, %s17
    %p45 = scmp.eq.s32.totalorder %s44, 0
    %s47 = sadd.s32 %s46, 1
    %s48 = scalar_select %p45, %s46, %s47
    %p51 = pneg %p45
    %p52 = scmp.eq.s32.totalorder %s10, 1
    %p53 = por %p51, %p52
    %p54 = scmp.ne.s32.totalorder %s46, %s49
    %p55 = scmp.eq.s32.totalorder %s10, 0
    %p56 = por %p54, %p55
    %p57 = scmp.ne.s32.totalorder %s46, %s49
    %p58 = scmp.eq.s32.totalorder %s15, 1
    %p59 = por %p57, %p58
    %p60 = scmp.ne.s32.totalorder %s49, %s50
    %p61 = scmp.eq.s32.totalorder %s15, 0
    %p62 = por %p60, %p61
    %p63 = scmp.ne.s32.totalorder %s49, %s50
    %p64 = scmp.eq.s32.totalorder %s16, 1
    %p65 = por %p63, %p64
    %p67 = scmp.ne.s32.totalorder %s50, %s66
    %p68 = scmp.eq.s32.totalorder %s16, 0
    %p69 = por %p67, %p68
    %s70 = ssub.s32 %s10, %s17
    %p71 = scmp.eq.s32.totalorder %s70, 0
    %s73 = sadd.s32 %s72, 1
    %s74 = scalar_select %p71, %s72, %s73
    %p77 = pneg %p71
    %p78 = scmp.eq.s32.totalorder %s10, 1
    %p79 = por %p77, %p78
    %p80 = scmp.ne.s32.totalorder %s72, %s75
    %p81 = scmp.eq.s32.totalorder %s10, 0
    %p82 = por %p80, %p81
    %p83 = scmp.ne.s32.totalorder %s72, %s75
    %p84 = scmp.eq.s32.totalorder %s15, 1
    %p85 = por %p83, %p84
    %p86 = scmp.ne.s32.totalorder %s75, %s76
    %p87 = scmp.eq.s32.totalorder %s15, 0
    %p88 = por %p86, %p87
    %p89 = scmp.ne.s32.totalorder %s75, %s76
    %p90 = scmp.eq.s32.totalorder %s16, 1
    %p91 = por %p89, %p90
    %p93 = scmp.ne.s32.totalorder %s76, %s92
    %p94 = scmp.eq.s32.totalorder %s16, 0
    %p95 = por %p93, %p94
    %s96 = ssub.s32 %s10, %s17
    %p97 = scmp.eq.s32.totalorder %s96, 0
    %s99 = sadd.s32 %s98, 1
    %s100 = scalar_select %p97, %s98, %s99
    %p103 = pneg %p97
    %p104 = scmp.eq.s32.totalorder %s10, 1
    %p105 = por %p103, %p104
    %p106 = scmp.ne.s32.totalorder %s98, %s101
    %p107 = scmp.eq.s32.totalorder %s10, 0
    %p108 = por %p106, %p107
    %p109 = scmp.ne.s32.totalorder %s98, %s101
    %p110 = scmp.eq.s32.totalorder %s15, 1
    %p111 = por %p109, %p110
    %p112 = scmp.ne.s32.totalorder %s101, %s102
    %p113 = scmp.eq.s32.totalorder %s15, 0
    %p114 = por %p112, %p113
    %p115 = scmp.ne.s32.totalorder %s101, %s102
    %p116 = scmp.eq.s32.totalorder %s16, 1
    %p117 = por %p115, %p116
    %p119 = scmp.ne.s32.totalorder %s102, %s118
    %p120 = scmp.eq.s32.totalorder %s16, 0
    %p121 = por %p119, %p120
    %s122 = ssub.s32 %s10, %s17
    %p123 = scmp.eq.s32.totalorder %s122, 0
    %s125 = sadd.s32 %s124, 1
    %s126 = scalar_select %p123, %s124, %s125
    %p129 = pneg %p123
    %p130 = scmp.eq.s32.totalorder %s10, 1
    %p131 = por %p129, %p130
    %p132 = scmp.ne.s32.totalorder %s124, %s127
    %p133 = scmp.eq.s32.totalorder %s10, 0
    %p134 = por %p132, %p133
    %p135 = scmp.ne.s32.totalorder %s124, %s127
    %p136 = scmp.eq.s32.totalorder %s15, 1
    %p137 = por %p135, %p136
    %p138 = scmp.ne.s32.totalorder %s127, %s128
    %p139 = scmp.eq.s32.totalorder %s15, 0
    %p140 = por %p138, %p139
    %p141 = scmp.ne.s32.totalorder %s127, %s128
    %p142 = scmp.eq.s32.totalorder %s16, 1
    %p143 = por %p141, %p142
    %p145 = scmp.ne.s32.totalorder %s128, %s144
    %p146 = scmp.eq.s32.totalorder %s16, 0
    %p147 = por %p145, %p146
    %p148 = scmp.le.s32.totalorder 1, %s10
    %p149 = scmp.lt.s32.totalorder %s10, 3
    %p150 = pnand %p148, %p149
    %p151 = pneg %p150
    // Predicated region
    $region9: #{run.35} parent=5 // pred_check
      _
    $region10: #{run.35} parent=5 // pred_check_branch
      %153 = sbr.rel (%p150) target = $region12
    $region11: #{run.35} parent=5 // pred_region
      %s154 = ssub.s32 %s10, 1
    $region12: #{run.35} parent=5 // pred_fallthru
      _
    %p155 = scmp.lt.s32.totalorder %s10, 2
    // Predicated region
    $region13: #{run.35} parent=5 // pred_check
      %p156 = pneg %p155
    $region14: #{run.35} parent=5 // pred_check_branch
      %158 = sbr.rel (%p156) target = $region16
    $region15: #{run.35} parent=5 // pred_region
      // Predicated region
      $region17: #{run.35} parent=15 // pred_check
        %p159 = pneg %p30
      $region18: #{run.35} parent=15 // pred_check_branch
        %161 = sbr.rel (%p159) target = $region20
      $region19: #{run.35} parent=15 // pred_region
        %p162 = scmp.lt.s32.totalorder %s10, 1
        %s163 = scalar_select %p162, %s10, 1
        %s164 = smul.addr %s163, 4
        %s165 = smul.addr %s164, 8
        %s166 = scalar_lea.vmem %s0, %s165
      $region20: #{run.35} parent=15 // pred_fallthru
        _
      // Predicated region
      $region21: #{run.35} parent=15 // pred_check
        %p167 = pneg %p56
      $region22: #{run.35} parent=15 // pred_check_branch
        %169 = sbr.rel (%p167) target = $region24
      $region23: #{run.35} parent=15 // pred_region
        %p170 = scmp.lt.s32.totalorder %s10, 1
        %s171 = scalar_select %p170, %s10, 1
        %s172 = smul.addr %s171, 4
        %s173 = smul.addr %s172, 8
        %s174 = scalar_lea.vmem %s1, %s173
      $region24: #{run.35} parent=15 // pred_fallthru
        _
      // Predicated region
      $region25: #{run.35} parent=15 // pred_check
        %p175 = pneg %p82
      $region26: #{run.35} parent=15 // pred_check_branch
        %177 = sbr.rel (%p175) target = $region28
      $region27: #{run.35} parent=15 // pred_region
        %p178 = scmp.lt.s32.totalorder %s10, 1
        %s179 = scalar_select %p178, %s10, 1
        %s180 = smul.addr %s179, 4
        %s181 = smul.addr %s180, 8
        %s182 = scalar_lea.vmem %s2, %s181
      $region28: #{run.35} parent=15 // pred_fallthru
        _
      // Predicated region
      $region29: #{run.35} parent=15 // pred_check
        %p183 = pneg %p108
      $region30: #{run.35} parent=15 // pred_check_branch
        %185 = sbr.rel (%p183) target = $region32
      $region31: #{run.35} parent=15 // pred_region
        %p186 = scmp.lt.s32.totalorder %s10, 1
        %s187 = scalar_select %p186, %s10, 1
        %s188 = scalar_lea.vmem %s3, %s187
      $region32: #{run.35} parent=15 // pred_fallthru
        _
    $region16: #{run.35} parent=5 // pred_fallthru
      _
    %p189 = scmp.le.s32.totalorder 1, %s10
    %p190 = scmp.lt.s32.totalorder %s10, 3
    %p191 = pnand %p189, %p190
    %p192 = pneg %p191
    // Predicated region
    $region33: #{run.35} parent=5 // pred_check
      _
    $region34: #{run.35} parent=5 // pred_check_branch
      %194 = sbr.rel (%p191) target = $region36
    $region35: #{run.35} parent=5 // pred_region
      %s195 = ssub.s32 %s10, 1
      %p196 = scmp.lt.s32.totalorder %s15, 1
      %s197 = scalar_select %p196, %s15, 1
      %s198 = smul.addr %s197, 4
      %s199 = smul.addr %s198, 8
      %s200 = scalar_lea.vmem %s0, %s199
      %p201 = pneg %p36
      %p202 = pneg %p33
      %p203 = scmp.lt.s32.totalorder %s15, 1
      %s204 = scalar_select %p203, %s15, 1
      %s205 = smul.addr %s204, 4
      %s206 = smul.addr %s205, 8
      %s207 = scalar_lea.vmem %s1, %s206
      %p208 = pneg %p62
      %p209 = pneg %p59
      %p210 = scmp.lt.s32.totalorder %s15, 1
      %s211 = scalar_select %p210, %s15, 1
      %s212 = smul.addr %s211, 4
      %s213 = smul.addr %s212, 8
      %s214 = scalar_lea.vmem %s2, %s213
      %p215 = pneg %p88
      %p216 = pneg %p85
      %p217 = scmp.lt.s32.totalorder %s15, 1
      %s218 = scalar_select %p217, %s15, 1
      %s219 = scalar_lea.vmem %s3, %s218
      %p220 = pneg %p114
      %p221 = pneg %p111
      %p222 = pneg %p140
      %p223 = pneg %p137
      %p224 = scmp.lt.s32.totalorder %s15, 1
      %s225 = scalar_select %p224, %s15, 1
      %s226 = smul.addr %s225, 8
      %s227 = scalar_lea.vmem %s4, %s226
      %p228 = scmp.lt.s32.totalorder %s15, 1
      %s229 = scalar_select %p228, %s15, 1
      %s230 = smul.addr %s229, 4
      %s231 = smul.addr %s230, 8
      %s232 = scalar_lea.vmem %s0, %s231
      %p233 = scmp.lt.s32.totalorder %s15, 1
      %s234 = scalar_select %p233, %s15, 1
      %s235 = smul.addr %s234, 4
      %s236 = smul.addr %s235, 8
      %s237 = scalar_lea.vmem %s1, %s236
      %p238 = scmp.lt.s32.totalorder %s15, 1
      %s239 = scalar_select %p238, %s15, 1
      %s240 = smul.addr %s239, 4
      %s241 = smul.addr %s240, 8
      %s242 = scalar_lea.vmem %s2, %s241
      %p243 = scmp.lt.s32.totalorder %s15, 1
      %s244 = scalar_select %p243, %s15, 1
      %s245 = scalar_lea.vmem %s3, %s244
      %p246 = scmp.lt.s32.totalorder %s15, 1
      %s247 = scalar_select %p246, %s15, 1
      %s248 = smul.addr %s247, 8
      %s249 = scalar_lea.vmem %s4, %s248
      %v251 = vld [vmem:[%s232] sm:$0xff]
      %v252 = vld [vmem:[%s232 + $0x8] sm:$0xff]
      %v253 = vld [vmem:[%s232 + $0x10] sm:$0xff]
      %v254 = vld [vmem:[%s232 + $0x18] sm:$0xff]
      %v255 = vld [vmem:[%s237] sm:$0xff]
      %v256 = vld [vmem:[%s237 + $0x8] sm:$0xff]
      %v257 = vld [vmem:[%s237 + $0x10] sm:$0xff]
      %v258 = vld [vmem:[%s237 + $0x18] sm:$0xff]
      %v259 = vld [vmem:[%s242] sm:$0xff]
      %v260 = vld [vmem:[%s242 + $0x8] sm:$0xff]
      %v261 = vld [vmem:[%s242 + $0x10] sm:$0xff]
      %v262 = vld [vmem:[%s242 + $0x18] sm:$0xff]
      %v263 = vld [vmem:[%s245] sm:$0x1]
      %v264 = vsub.f32 1.0, %v263
      %v265 = vmul.f32 %v264, -1e+09
      %v266 = vlaneseq
      %v267 = vshrl.u32 %v266, 7
      %v268 = vlaneseq
      %v269 = vand.u32 %v268, 127
      %vm270 = vcmp.le.s32.totalorder %v269, %v267
      %v271 = vsel %vm270, 0.0, -1e+09
      %v273 = vlaneseq
      %v274 = vshrl.u32 %v273, 7
      %v275 = vsub.s32 0, %v274
      %v276 = vrot.slane %v265, %v275
      %v278 = vadd.f32 %v276, %v271
      %v279 = vpack.c.bf16 %v251, %v251
      %v280 = vpack.c.bf16 %v255, %v255
      %vm281 = vcmask 64512
      %v283 = vsel %vm281, %v279, 0
      %v286 = vsel %vm281, %v280, 0
      %288 = vmatprep.subr.bf16.mxu0 0
      %289 = vmatpush1.bf16.xpose.msra.mxu0 0
      %290 = vmatprep.subr.bf16.mxu0 0
      %291 = vmatpush1.bf16.xpose.msra.mxu0 0
      %292 = vmatprep.subr.bf16.mxu0 0
      %293 = vmatpush1.bf16.xpose.msra.mxu0 0
      %294 = vmatprep.subr.bf16.mxu0 0
      %295 = vmatpush1.bf16.xpose.msra.mxu0 0
      %296 = vmatprep.subr.bf16.mxu0 0
      %297 = vmatpush1.bf16.xpose.msra.mxu0 0
      %298 = vmatprep.subr.bf16.mxu0 0
      %299 = vmatpush1.bf16.xpose.msra.mxu0 0
      %300 = vmatprep.subr.bf16.mxu0 0
      %301 = vmatpush1.bf16.xpose.msra.mxu0 0
      %302 = vmatprep.subr.bf16.mxu0 0
      %303 = vmatpush1.bf16.xpose.msra.mxu0 %v286
      %304 = vmatprep.subr.bf16.mxu0 0
      %305 = vmatpush2.bf16.xpose.msra.mxu0 0
      %306 = vmatprep.subr.bf16.mxu0 0
      %307 = vmatpush2.bf16.xpose.msra.mxu0 0
      %308 = vmatprep.subr.bf16.mxu0 0
      %309 = vmatpush2.bf16.xpose.msra.mxu0 0
      %310 = vmatprep.subr.bf16.mxu0 0
      %311 = vmatpush2.bf16.xpose.msra.mxu0 0
      %312 = vmatprep.subr.bf16.mxu0 0
      %313 = vmatpush2.bf16.xpose.msra.mxu0 0
      %314 = vmatprep.subr.bf16.mxu0 0
      %315 = vmatpush2.bf16.xpose.msra.mxu0 0
      %316 = vmatprep.subr.bf16.mxu0 0
      %317 = vmatpush2.bf16.xpose.msra.mxu0 0
      %318 = vmatprep.subr.bf16.mxu0 0
      %319 = vmatpush2.bf16.xpose.msra.mxu0 0
      %320 = vmatprep.mubr.bf16.mxu0 0
      %321 = vmatmul.mubr.bf16.gmra.mxu0 %v283
      %v322 = vpop.f32.mrf.mxu0
      %v323 = vadd.f32 0.0, %v322
      %v324 = vpop.f32.mrf.mxu0
      %v325 = vpop.f32.mrf.mxu0
      %v326 = vpop.f32.mrf.mxu0
      %327 = vdwg.mxu0
      %v328 = vmul.f32 %v323, 0.35355338
      %v329 = vadd.f32 %v328, %v278
      %v330 = vsel %vm281, %v329, -inf
      %331 = vmax.xlane.f32.xlu0 %v330
      %v332 = vpop.xlane.xlu0 %331
      %v333 = vsub.f32 %v329, %v332
      %v334 = vmul.f32 %v333, 1.442695
      %v335 = vpow.pop %v334
      %v336 = vsel %vm281, %v335, 0.0
      %337 = vadd.xlane.f32.xlu0 %v336
      %v338 = vpop.xlane.xlu0 %337
      %v339 = vrcp.pop %v338
      %v340 = vmul.f32 %v335, %v339
      %v341 = vpack.c.bf16 %v340, %v340
      %v342 = vpack.c.bf16 %v259, %v259
      %v344 = vsel %vm281, %v341, 0
      %vm346 = vcmask 1043456
      %v348 = vsel %vm346, %v342, 0
      %350 = vmatprep.subr.bf16.mxu0 0
      %351 = vmatpush1.bf16.msra.mxu0 0
      %352 = vmatprep.subr.bf16.mxu0 0
      %353 = vmatpush1.bf16.msra.mxu0 0
      %354 = vmatprep.subr.bf16.mxu0 0
      %355 = vmatpush1.bf16.msra.mxu0 0
      %356 = vmatprep.subr.bf16.mxu0 0
      %357 = vmatpush1.bf16.msra.mxu0 0
      %358 = vmatprep.subr.bf16.mxu0 0
      %359 = vmatpush1.bf16.msra.mxu0 0
      %360 = vmatprep.subr.bf16.mxu0 0
      %361 = vmatpush1.bf16.msra.mxu0 0
      %362 = vmatprep.subr.bf16.mxu0 0
      %363 = vmatpush1.bf16.msra.mxu0 0
      %364 = vmatprep.subr.bf16.mxu0 0
      %365 = vmatpush1.bf16.msra.mxu0 %v348
      %366 = vmatprep.subr.bf16.mxu0 0
      %367 = vmatpush2.bf16.msra.mxu0 0
      %368 = vmatprep.subr.bf16.mxu0 0
      %369 = vmatpush2.bf16.msra.mxu0 0
      %370 = vmatprep.subr.bf16.mxu0 0
      %371 = vmatpush2.bf16.msra.mxu0 0
      %372 = vmatprep.subr.bf16.mxu0 0
      %373 = vmatpush2.bf16.msra.mxu0 0
      %374 = vmatprep.subr.bf16.mxu0 0
      %375 = vmatpush2.bf16.msra.mxu0 0
      %376 = vmatprep.subr.bf16.mxu0 0
      %377 = vmatpush2.bf16.msra.mxu0 0
      %378 = vmatprep.subr.bf16.mxu0 0
      %379 = vmatpush2.bf16.msra.mxu0 0
      %380 = vmatprep.subr.bf16.mxu0 0
      %381 = vmatpush2.bf16.msra.mxu0 0
      %382 = vmatprep.mubr.bf16.mxu0 0
      %383 = vmatmul.mubr.bf16.gmra.mxu0 %v344
      %v384 = vpop.f32.mrf.mxu0
      %v385 = vadd.f32 0.0, %v384
      %v386 = vpop.f32.mrf.mxu0
      %v387 = vpop.f32.mrf.mxu0
      %v388 = vpop.f32.mrf.mxu0
      %389 = vdwg.mxu0
      %v390 = vpack.c.bf16 %v252, %v252
      %v391 = vpack.c.bf16 %v256, %v256
      %v393 = vsel %vm281, %v390, 0
      %v396 = vsel %vm281, %v391, 0
      %398 = vmatprep.subr.bf16.mxu0 0
      %399 = vmatpush1.bf16.xpose.msra.mxu0 0
      %400 = vmatprep.subr.bf16.mxu0 0
      %401 = vmatpush1.bf16.xpose.msra.mxu0 0
      %402 = vmatprep.subr.bf16.mxu0 0
      %403 = vmatpush1.bf16.xpose.msra.mxu0 0
      %404 = vmatprep.subr.bf16.mxu0 0
      %405 = vmatpush1.bf16.xpose.msra.mxu0 0
      %406 = vmatprep.subr.bf16.mxu0 0
      %407 = vmatpush1.bf16.xpose.msra.mxu0 0
      %408 = vmatprep.subr.bf16.mxu0 0
      %409 = vmatpush1.bf16.xpose.msra.mxu0 0
      %410 = vmatprep.subr.bf16.mxu0 0
      %411 = vmatpush1.bf16.xpose.msra.mxu0 0
      %412 = vmatprep.subr.bf16.mxu0 0
      %413 = vmatpush1.bf16.xpose.msra.mxu0 %v396
      %414 = vmatprep.subr.bf16.mxu0 0
      %415 = vmatpush2.bf16.xpose.msra.mxu0 0
      %416 = vmatprep.subr.bf16.mxu0 0
      %417 = vmatpush2.bf16.xpose.msra.mxu0 0
      %418 = vmatprep.subr.bf16.mxu0 0
      %419 = vmatpush2.bf16.xpose.msra.mxu0 0
      %420 = vmatprep.subr.bf16.mxu0 0
      %421 = vmatpush2.bf16.xpose.msra.mxu0 0
      %422 = vmatprep.subr.bf16.mxu0 0
      %423 = vmatpush2.bf16.xpose.msra.mxu0 0
      %424 = vmatprep.subr.bf16.mxu0 0
      %425 = vmatpush2.bf16.xpose.msra.mxu0 0
      %426 = vmatprep.subr.bf16.mxu0 0
      %427 = vmatpush2.bf16.xpose.msra.mxu0 0
      %428 = vmatprep.subr.bf16.mxu0 0
      %429 = vmatpush2.bf16.xpose.msra.mxu0 0
      %430 = vmatprep.mubr.bf16.mxu0 0
      %431 = vmatmul.mubr.bf16.gmra.mxu0 %v393
      %v432 = vpop.f32.mrf.mxu0
      %v433 = vadd.f32 0.0, %v432
      %v434 = vpop.f32.mrf.mxu0
      %v435 = vpop.f32.mrf.mxu0
      %v436 = vpop.f32.mrf.mxu0
      %437 = vdwg.mxu0
      %v438 = vmul.f32 %v433, 0.35355338
      %v439 = vadd.f32 %v438, %v278
      %v440 = vsel %vm281, %v439, -inf
      %441 = vmax.xlane.f32.xlu0 %v440
      %v442 = vpop.xlane.xlu0 %441
      %v443 = vsub.f32 %v439, %v442
      %v444 = vmul.f32 %v443, 1.442695
      %v445 = vpow.pop %v444
      %v446 = vsel %vm281, %v445, 0.0
      %447 = vadd.xlane.f32.xlu0 %v446
      %v448 = vpop.xlane.xlu0 %447
      %v449 = vrcp.pop %v448
      %v450 = vmul.f32 %v445, %v449
      %v451 = vpack.c.bf16 %v450, %v450
      %v452 = vpack.c.bf16 %v260, %v260
      %v454 = vsel %vm281, %v451, 0
      %v457 = vsel %vm346, %v452, 0
      %459 = vmatprep.subr.bf16.mxu0 0
      %460 = vmatpush1.bf16.msra.mxu0 0
      %461 = vmatprep.subr.bf16.mxu0 0
      %462 = vmatpush1.bf16.msra.mxu0 0
      %463 = vmatprep.subr.bf16.mxu0 0
      %464 = vmatpush1.bf16.msra.mxu0 0
      %465 = vmatprep.subr.bf16.mxu0 0
      %466 = vmatpush1.bf16.msra.mxu0 0
      %467 = vmatprep.subr.bf16.mxu0 0
      %468 = vmatpush1.bf16.msra.mxu0 0
      %469 = vmatprep.subr.bf16.mxu0 0
      %470 = vmatpush1.bf16.msra.mxu0 0
      %471 = vmatprep.subr.bf16.mxu0 0
      %472 = vmatpush1.bf16.msra.mxu0 0
      %473 = vmatprep.subr.bf16.mxu0 0
      %474 = vmatpush1.bf16.msra.mxu0 %v457
      %475 = vmatprep.subr.bf16.mxu0 0
      %476 = vmatpush2.bf16.msra.mxu0 0
      %477 = vmatprep.subr.bf16.mxu0 0
      %478 = vmatpush2.bf16.msra.mxu0 0
      %479 = vmatprep.subr.bf16.mxu0 0
      %480 = vmatpush2.bf16.msra.mxu0 0
      %481 = vmatprep.subr.bf16.mxu0 0
      %482 = vmatpush2.bf16.msra.mxu0 0
      %483 = vmatprep.subr.bf16.mxu0 0
      %484 = vmatpush2.bf16.msra.mxu0 0
      %485 = vmatprep.subr.bf16.mxu0 0
      %486 = vmatpush2.bf16.msra.mxu0 0
      %487 = vmatprep.subr.bf16.mxu0 0
      %488 = vmatpush2.bf16.msra.mxu0 0
      %489 = vmatprep.subr.bf16.mxu0 0
      %490 = vmatpush2.bf16.msra.mxu0 0
      %491 = vmatprep.mubr.bf16.mxu0 0
      %492 = vmatmul.mubr.bf16.gmra.mxu0 %v454
      %v493 = vpop.f32.mrf.mxu0
      %v494 = vadd.f32 0.0, %v493
      %v495 = vpop.f32.mrf.mxu0
      %v496 = vpop.f32.mrf.mxu0
      %v497 = vpop.f32.mrf.mxu0
      %498 = vdwg.mxu0
      %v499 = vpack.c.bf16 %v253, %v253
      %v500 = vpack.c.bf16 %v257, %v257
      %v502 = vsel %vm281, %v499, 0
      %v505 = vsel %vm281, %v500, 0
      %507 = vmatprep.subr.bf16.mxu0 0
      %508 = vmatpush1.bf16.xpose.msra.mxu0 0
      %509 = vmatprep.subr.bf16.mxu0 0
      %510 = vmatpush1.bf16.xpose.msra.mxu0 0
      %511 = vmatprep.subr.bf16.mxu0 0
      %512 = vmatpush1.bf16.xpose.msra.mxu0 0
      %513 = vmatprep.subr.bf16.mxu0 0
      %514 = vmatpush1.bf16.xpose.msra.mxu0 0
      %515 = vmatprep.subr.bf16.mxu0 0
      %516 = vmatpush1.bf16.xpose.msra.mxu0 0
      %517 = vmatprep.subr.bf16.mxu0 0
      %518 = vmatpush1.bf16.xpose.msra.mxu0 0
      %519 = vmatprep.subr.bf16.mxu0 0
      %520 = vmatpush1.bf16.xpose.msra.mxu0 0
      %521 = vmatprep.subr.bf16.mxu0 0
      %522 = vmatpush1.bf16.xpose.msra.mxu0 %v505
      %523 = vmatprep.subr.bf16.mxu0 0
      %524 = vmatpush2.bf16.xpose.msra.mxu0 0
      %525 = vmatprep.subr.bf16.mxu0 0
      %526 = vmatpush2.bf16.xpose.msra.mxu0 0
      %527 = vmatprep.subr.bf16.mxu0 0
      %528 = vmatpush2.bf16.xpose.msra.mxu0 0
      %529 = vmatprep.subr.bf16.mxu0 0
      %530 = vmatpush2.bf16.xpose.msra.mxu0 0
      %531 = vmatprep.subr.bf16.mxu0 0
      %532 = vmatpush2.bf16.xpose.msra.mxu0 0
      %533 = vmatprep.subr.bf16.mxu0 0
      %534 = vmatpush2.bf16.xpose.msra.mxu0 0
      %535 = vmatprep.subr.bf16.mxu0 0
      %536 = vmatpush2.bf16.xpose.msra.mxu0 0
      %537 = vmatprep.subr.bf16.mxu0 0
      %538 = vmatpush2.bf16.xpose.msra.mxu0 0
      %539 = vmatprep.mubr.bf16.mxu0 0
      %540 = vmatmul.mubr.bf16.gmra.mxu0 %v502
      %v541 = vpop.f32.mrf.mxu0
      %v542 = vadd.f32 0.0, %v541
      %v543 = vpop.f32.mrf.mxu0
      %v544 = vpop.f32.mrf.mxu0
      %v545 = vpop.f32.mrf.mxu0
      %546 = vdwg.mxu0
      %v547 = vmul.f32 %v542, 0.35355338
      %v548 = vadd.f32 %v547, %v278
      %v549 = vsel %vm281, %v548, -inf
      %550 = vmax.xlane.f32.xlu0 %v549
      %v551 = vpop.xlane.xlu0 %550
      %v552 = vsub.f32 %v548, %v551
      %v553 = vmul.f32 %v552, 1.442695
      %v554 = vpow.pop %v553
      %v555 = vsel %vm281, %v554, 0.0
      %556 = vadd.xlane.f32.xlu0 %v555
      %v557 = vpop.xlane.xlu0 %556
      %v558 = vrcp.pop %v557
      %v559 = vmul.f32 %v554, %v558
      %v560 = vpack.c.bf16 %v559, %v559
      %v561 = vpack.c.bf16 %v261, %v261
      %v563 = vsel %vm281, %v560, 0
      %v566 = vsel %vm346, %v561, 0
      %568 = vmatprep.subr.bf16.mxu0 0
      %569 = vmatpush1.bf16.msra.mxu0 0
      %570 = vmatprep.subr.bf16.mxu0 0
      %571 = vmatpush1.bf16.msra.mxu0 0
      %572 = vmatprep.subr.bf16.mxu0 0
      %573 = vmatpush1.bf16.msra.mxu0 0
      %574 = vmatprep.subr.bf16.mxu0 0
      %575 = vmatpush1.bf16.msra.mxu0 0
      %576 = vmatprep.subr.bf16.mxu0 0
      %577 = vmatpush1.bf16.msra.mxu0 0
      %578 = vmatprep.subr.bf16.mxu0 0
      %579 = vmatpush1.bf16.msra.mxu0 0
      %580 = vmatprep.subr.bf16.mxu0 0
      %581 = vmatpush1.bf16.msra.mxu0 0
      %582 = vmatprep.subr.bf16.mxu0 0
      %583 = vmatpush1.bf16.msra.mxu0 %v566
      %584 = vmatprep.subr.bf16.mxu0 0
      %585 = vmatpush2.bf16.msra.mxu0 0
      %586 = vmatprep.subr.bf16.mxu0 0
      %587 = vmatpush2.bf16.msra.mxu0 0
      %588 = vmatprep.subr.bf16.mxu0 0
      %589 = vmatpush2.bf16.msra.mxu0 0
      %590 = vmatprep.subr.bf16.mxu0 0
      %591 = vmatpush2.bf16.msra.mxu0 0
      %592 = vmatprep.subr.bf16.mxu0 0
      %593 = vmatpush2.bf16.msra.mxu0 0
      %594 = vmatprep.subr.bf16.mxu0 0
      %595 = vmatpush2.bf16.msra.mxu0 0
      %596 = vmatprep.subr.bf16.mxu0 0
      %597 = vmatpush2.bf16.msra.mxu0 0
      %598 = vmatprep.subr.bf16.mxu0 0
      %599 = vmatpush2.bf16.msra.mxu0 0
      %600 = vmatprep.mubr.bf16.mxu0 0
      %601 = vmatmul.mubr.bf16.gmra.mxu0 %v563
      %v602 = vpop.f32.mrf.mxu0
      %v603 = vadd.f32 0.0, %v602
      %v604 = vpop.f32.mrf.mxu0
      %v605 = vpop.f32.mrf.mxu0
      %v606 = vpop.f32.mrf.mxu0
      %607 = vdwg.mxu0
      %v608 = vpack.c.bf16 %v254, %v254
      %v609 = vpack.c.bf16 %v258, %v258
      %v611 = vsel %vm281, %v608, 0
      %v614 = vsel %vm281, %v609, 0
      %616 = vmatprep.subr.bf16.mxu0 0
      %617 = vmatpush1.bf16.xpose.msra.mxu0 0
      %618 = vmatprep.subr.bf16.mxu0 0
      %619 = vmatpush1.bf16.xpose.msra.mxu0 0
      %620 = vmatprep.subr.bf16.mxu0 0
      %621 = vmatpush1.bf16.xpose.msra.mxu0 0
      %622 = vmatprep.subr.bf16.mxu0 0
      %623 = vmatpush1.bf16.xpose.msra.mxu0 0
      %624 = vmatprep.subr.bf16.mxu0 0
      %625 = vmatpush1.bf16.xpose.msra.mxu0 0
      %626 = vmatprep.subr.bf16.mxu0 0
      %627 = vmatpush1.bf16.xpose.msra.mxu0 0
      %628 = vmatprep.subr.bf16.mxu0 0
      %629 = vmatpush1.bf16.xpose.msra.mxu0 0
      %630 = vmatprep.subr.bf16.mxu0 0
      %631 = vmatpush1.bf16.xpose.msra.mxu0 %v614
      %632 = vmatprep.subr.bf16.mxu0 0
      %633 = vmatpush2.bf16.xpose.msra.mxu0 0
      %634 = vmatprep.subr.bf16.mxu0 0
      %635 = vmatpush2.bf16.xpose.msra.mxu0 0
      %636 = vmatprep.subr.bf16.mxu0 0
      %637 = vmatpush2.bf16.xpose.msra.mxu0 0
      %638 = vmatprep.subr.bf16.mxu0 0
      %639 = vmatpush2.bf16.xpose.msra.mxu0 0
      %640 = vmatprep.subr.bf16.mxu0 0
      %641 = vmatpush2.bf16.xpose.msra.mxu0 0
      %642 = vmatprep.subr.bf16.mxu0 0
      %643 = vmatpush2.bf16.xpose.msra.mxu0 0
      %644 = vmatprep.subr.bf16.mxu0 0
      %645 = vmatpush2.bf16.xpose.msra.mxu0 0
      %646 = vmatprep.subr.bf16.mxu0 0
      %647 = vmatpush2.bf16.xpose.msra.mxu0 0
      %648 = vmatprep.mubr.bf16.mxu0 0
      %649 = vmatmul.mubr.bf16.gmra.mxu0 %v611
      %v650 = vpop.f32.mrf.mxu0
      %v651 = vadd.f32 0.0, %v650
      %v652 = vpop.f32.mrf.mxu0
      %v653 = vpop.f32.mrf.mxu0
      %v654 = vpop.f32.mrf.mxu0
      %655 = vdwg.mxu0
      %v656 = vmul.f32 %v651, 0.35355338
      %v657 = vadd.f32 %v656, %v278
      %v658 = vsel %vm281, %v657, -inf
      %659 = vmax.xlane.f32.xlu0 %v658
      %v660 = vpop.xlane.xlu0 %659
      %v661 = vsub.f32 %v657, %v660
      %v662 = vmul.f32 %v661, 1.442695
      %v663 = vpow.pop %v662
      %v664 = vsel %vm281, %v663, 0.0
      %665 = vadd.xlane.f32.xlu0 %v664
      %v666 = vpop.xlane.xlu0 %665
      %v667 = vrcp.pop %v666
      %v668 = vmul.f32 %v663, %v667
      %v669 = vpack.c.bf16 %v668, %v668
      %v670 = vpack.c.bf16 %v262, %v262
      %v672 = vsel %vm281, %v669, 0
      %v675 = vsel %vm346, %v670, 0
      %677 = vmatprep.subr.bf16.mxu0 0
      %678 = vmatpush1.bf16.msra.mxu0 0
      %679 = vmatprep.subr.bf16.mxu0 0
      %680 = vmatpush1.bf16.msra.mxu0 0
      %681 = vmatprep.subr.bf16.mxu0 0
      %682 = vmatpush1.bf16.msra.mxu0 0
      %683 = vmatprep.subr.bf16.mxu0 0
      %684 = vmatpush1.bf16.msra.mxu0 0
      %685 = vmatprep.subr.bf16.mxu0 0
      %686 = vmatpush1.bf16.msra.mxu0 0
      %687 = vmatprep.subr.bf16.mxu0 0
      %688 = vmatpush1.bf16.msra.mxu0 0
      %689 = vmatprep.subr.bf16.mxu0 0
      %690 = vmatpush1.bf16.msra.mxu0 0
      %691 = vmatprep.subr.bf16.mxu0 0
      %692 = vmatpush1.bf16.msra.mxu0 %v675
      %693 = vmatprep.subr.bf16.mxu0 0
      %694 = vmatpush2.bf16.msra.mxu0 0
      %695 = vmatprep.subr.bf16.mxu0 0
      %696 = vmatpush2.bf16.msra.mxu0 0
      %697 = vmatprep.subr.bf16.mxu0 0
      %698 = vmatpush2.bf16.msra.mxu0 0
      %699 = vmatprep.subr.bf16.mxu0 0
      %700 = vmatpush2.bf16.msra.mxu0 0
      %701 = vmatprep.subr.bf16.mxu0 0
      %702 = vmatpush2.bf16.msra.mxu0 0
      %703 = vmatprep.subr.bf16.mxu0 0
      %704 = vmatpush2.bf16.msra.mxu0 0
      %705 = vmatprep.subr.bf16.mxu0 0
      %706 = vmatpush2.bf16.msra.mxu0 0
      %707 = vmatprep.subr.bf16.mxu0 0
      %708 = vmatpush2.bf16.msra.mxu0 0
      %709 = vmatprep.mubr.bf16.mxu0 0
      %710 = vmatmul.mubr.bf16.gmra.mxu0 %v672
      %v711 = vpop.f32.mrf.mxu0
      %v712 = vadd.f32 0.0, %v711
      %v713 = vpop.f32.mrf.mxu0
      %v714 = vpop.f32.mrf.mxu0
      %v715 = vpop.f32.mrf.mxu0
      %716 = vdwg.mxu0
      %718 = vrot.lane.b32.xlu0 %v494, 8
      %v719 = vpop.permute.xlu0 %718
      %722 = vrot.lane.b32.xlu0 %v603, 16
      %v723 = vpop.permute.xlu0 %722
      %726 = vrot.lane.b32.xlu0 %v712, 24
      %v727 = vpop.permute.xlu0 %726
      %v729 = vsel %vm281, %v385, %v719
      %vm730 = vcmask 130048
      %v731 = vsel %vm730, %v729, %v723
      %vm732 = vcmask 195584
      %v733 = vsel %vm732, %v731, %v727
      %vm734 = vcmask 261120
      %735 = vst.msk [vmem:[%s249] sm:$0xff] %vm734, %v733
      %p736 = scmp.lt.s32.totalorder %s15, 1
      %s737 = scalar_select %p736, %s15, 1
      %s738 = smul.addr %s737, 8
      %s739 = scalar_lea.vmem %s4, %s738
      // Predicated region
      $region37: #{run.35} parent=35 // pred_check
        %p740 = pneg %p137
      $region38: #{run.35} parent=35 // pred_check_branch
        %742 = sbr.rel (%p740) target = $region40
      $region39: #{run.35} parent=35 // pred_region
        _
      $region40: #{run.35} parent=35 // pred_fallthru
        _
    $region36: #{run.35} parent=5 // pred_fallthru
      _
    %p743 = scmp.le.s32.totalorder 2, %s10
    // Predicated region
    $region41: #{run.35} parent=5 // pred_check
      %p744 = pneg %p743
    $region42: #{run.35} parent=5 // pred_check_branch
      %746 = sbr.rel (%p744) target = $region44
    $region43: #{run.35} parent=5 // pred_region
      %s747 = ssub.s32 %s10, 2
      // Predicated region
      $region45: #{run.35} parent=43 // pred_check
        %p748 = pneg %p143
      $region46: #{run.35} parent=43 // pred_check_branch
        %750 = sbr.rel (%p748) target = $region48
      $region47: #{run.35} parent=43 // pred_region
        %p751 = scmp.lt.s32.totalorder %s16, 1
        %s752 = scalar_select %p751, %s16, 1
        %s753 = smul.addr %s752, 8
        %s754 = scalar_lea.vmem %s4, %s753
      $region48: #{run.35} parent=43 // pred_fallthru
        _
    $region44: #{run.35} parent=5 // pred_fallthru
      _
  $region6: #{run.35} parent=0 // loop_footer
    %s14 = sadd.s32 1, %s10
  $region7: #{run.35} parent=0 // loop_footer_branch
    %9 = sbr.rel target = $region3
  $region8: #{run.35} parent=0 // loop_exit
    _

// kernel: run.38
$region0: #{run.38}
  #allocation0 [shape = 'u32[]', space=smem, size = 0x4, offset = 0x4, fixed_abs, tag = 'smem constant byte address 0x4 - core index']
  #allocation1 [shape = 'u32[144,128]{1,0:T(1,128)}', space=vmem, size = 0x12000, scoped, tag = 'internal scratch']
  %s0 = inlined_call_operand.vmem [shape: f32[16,32], index: 0, kind: input, shape index: {}]
  %s1 = inlined_call_operand.vmem [shape: f32[32,64], index: 1, kind: input, shape index: {}]
  %s2 = inlined_call_operand.vmem [shape: f32[1,64], index: 2, kind: input, shape index: {}]
  %s3 = inlined_call_operand.vmem [shape: f32[16,64], index: 3, kind: output, shape index: {}]
  %s4 = sld [smem:[#allocation0]]
  $region22: #{run.38} parent=0
    _
  %s6 = ssub.s32 1, %s4
  %s7 = scalar_select 0, %s6, %s4
  // Predicated region
  $region2: #{run.38} parent=0 // pred_check
    _
  $region3: #{run.38} parent=0 // pred_check_branch
    %9 = sbr.rel (0) target = $region5
  $region4: #{run.38} parent=0 // pred_region
    _
  $region5: #{run.38} parent=0 // pred_fallthru
    _
  // Predicated region
  $region6: #{run.38} parent=0 // pred_check
    _
  $region7: #{run.38} parent=0 // pred_check_branch
    %11 = sbr.rel (0) target = $region9
  $region8: #{run.38} parent=0 // pred_region
    _
  $region9: #{run.38} parent=0 // pred_fallthru
    _
  // Predicated region
  $region10: #{run.38} parent=0 // pred_check
    _
  $region11: #{run.38} parent=0 // pred_check_branch
    %13 = sbr.rel (0) target = $region13
  $region12: #{run.38} parent=0 // pred_region
    _
  $region13: #{run.38} parent=0 // pred_fallthru
    _
  %v15 = vld [vmem:[%s0] sm:$0xff]
  %v16 = vld [vmem:[%s0 + $0x8] sm:$0xff]
  %v17 = vpack.c.bf16 %v16, %v15
  %v18 = vld [vmem:[%s1] sm:$0xff]
  %v19 = vld [vmem:[%s1 + $0x8] sm:$0xff]
  %v20 = vld [vmem:[%s1 + $0x10] sm:$0xff]
  %v21 = vld [vmem:[%s1 + $0x18] sm:$0xff]
  %v22 = vpack.c.bf16 %v19, %v18
  %v23 = vpack.c.bf16 %v21, %v20
  %v24 = vld [vmem:[%s2] sm:$0x1]
  %v26 = vlaneseq
  %v27 = vshrl.u32 %v26, 7
  %v28 = vsub.s32 0, %v27
  %v29 = vrot.slane %v24, %v28
  %vm31 = vcmask 261120
  %v33 = vsel %vm31, %v17, 0
  %35 = vmatprep.subr.bf16.mxu0 0
  %36 = vmatpush1.bf16.msra.mxu0 0
  %37 = vmatprep.subr.bf16.mxu0 0
  %38 = vmatpush1.bf16.msra.mxu0 0
  %39 = vmatprep.subr.bf16.mxu0 0
  %40 = vmatpush1.bf16.msra.mxu0 0
  %41 = vmatprep.subr.bf16.mxu0 0
  %42 = vmatpush1.bf16.msra.mxu0 0
  %43 = vmatprep.subr.bf16.mxu0 0
  %44 = vmatpush1.bf16.msra.mxu0 0
  %45 = vmatprep.subr.bf16.mxu0 0
  %46 = vmatpush1.bf16.msra.mxu0 0
  %47 = vmatprep.subr.bf16.mxu0 0
  %48 = vmatpush1.bf16.msra.mxu0 %v23
  %49 = vmatprep.subr.bf16.mxu0 0
  %50 = vmatpush1.bf16.msra.mxu0 %v22
  %51 = vmatprep.subr.bf16.mxu0 0
  %52 = vmatpush2.bf16.msra.mxu0 0
  %53 = vmatprep.subr.bf16.mxu0 0
  %54 = vmatpush2.bf16.msra.mxu0 0
  %55 = vmatprep.subr.bf16.mxu0 0
  %56 = vmatpush2.bf16.msra.mxu0 0
  %57 = vmatprep.subr.bf16.mxu0 0
  %58 = vmatpush2.bf16.msra.mxu0 0
  %59 = vmatprep.subr.bf16.mxu0 0
  %60 = vmatpush2.bf16.msra.mxu0 0
  %61 = vmatprep.subr.bf16.mxu0 0
  %62 = vmatpush2.bf16.msra.mxu0 0
  %63 = vmatprep.subr.bf16.mxu0 0
  %64 = vmatpush2.bf16.msra.mxu0 0
  %65 = vmatprep.subr.bf16.mxu0 0
  %66 = vmatpush2.bf16.msra.mxu0 0
  %67 = vmatprep.mubr.bf16.mxu0 0
  %68 = vmatmul.mubr.bf16.gmra.mxu0 %v33
  %v69 = vpop.f32.mrf.mxu0
  %v70 = vadd.f32 %v29, %v69
  %v71 = vpop.f32.mrf.mxu0
  %v72 = vpop.f32.mrf.mxu0
  %v73 = vadd.f32 %v29, %v72
  %v74 = vpop.f32.mrf.mxu0
  %75 = vdwg.mxu0
  %vm76 = vcmask 523264
  %77 = vst.msk [vmem:[%s3] sm:$0xff] %vm76, %v70
  %78 = vst.msk [vmem:[%s3 + $0x8] sm:$0xff] %vm76, %v73
  // Predicated region
  $region14: #{run.38} parent=0 // pred_check
    _
  $region15: #{run.38} parent=0 // pred_check_branch
    %80 = sbr.rel (0) target = $region17
  $region16: #{run.38} parent=0 // pred_region
    _
  $region17: #{run.38} parent=0 // pred_fallthru
    _
  // Predicated region
  $region18: #{run.38} parent=0 // pred_check
    _
  $region19: #{run.38} parent=0 // pred_check_branch
    %82 = sbr.rel (0) target = $region21
  $region20: #{run.38} parent=0 // pred_region
    _
  $region21: #{run.38} parent=0 // pred_fallthru
    _

// kernel: run.50
$region0: #{run.50}
  #allocation0 [shape = 'u32[]', space=smem, size = 0x4, offset = 0x4, fixed_abs, tag = 'smem constant byte address 0x4 - core index']
  #allocation1 [shape = 'u32[144,128]{1,0:T(1,128)}', space=vmem, size = 0x12000, scoped, tag = 'internal scratch']
  %s0 = inlined_call_operand.vmem [shape: f32[16,32], index: 0, kind: input, shape index: {}]
  %s1 = inlined_call_operand.vmem [shape: f32[1,32], index: 1, kind: input, shape index: {}]
  %s2 = inlined_call_operand.vmem [shape: f32[16,32], index: 2, kind: output, shape index: {}]
  %s3 = sld [smem:[#allocation0]]
  $region18: #{run.50} parent=0
    _
  %s5 = ssub.s32 1, %s3
  %s6 = scalar_select 0, %s5, %s3
  // Predicated region
  $region2: #{run.50} parent=0 // pred_check
    _
  $region3: #{run.50} parent=0 // pred_check_branch
    %8 = sbr.rel (0) target = $region5
  $region4: #{run.50} parent=0 // pred_region
    _
  $region5: #{run.50} parent=0 // pred_fallthru
    _
  // Predicated region
  $region6: #{run.50} parent=0 // pred_check
    _
  $region7: #{run.50} parent=0 // pred_check_branch
    %10 = sbr.rel (0) target = $region9
  $region8: #{run.50} parent=0 // pred_region
    _
  $region9: #{run.50} parent=0 // pred_fallthru
    _
  %v11 = vld [vmem:[%s0] sm:$0xff]
  %v12 = vld [vmem:[%s0 + $0x8] sm:$0xff]
  %v13 = vmul.f32 %v11, %v11
  %v14 = vmul.f32 %v12, %v12
  %vm15 = vcmask 261120
  %v16 = vsel %vm15, %v13, 0.0
  %17 = vadd.xlane.f32.xlu0 %v16
  %v18 = vpop.xlane.xlu0 %17
  %v19 = vsel %vm15, %v14, 0.0
  %20 = vadd.xlane.f32.xlu0 %v19
  %v21 = vpop.xlane.xlu0 %20
  %v22 = vrcp.pop 32.0
  %v23 = vmul.f32 %v18, %v22
  %v24 = vmul.f32 %v21, %v22
  %v25 = vadd.f32 %v23, 1e-06
  %v26 = vadd.f32 %v24, 1e-06
  %v27 = vrsqrt.pop %v25
  %v28 = vrsqrt.pop %v26
  %v29 = vmul.f32 %v11, %v27
  %v30 = vmul.f32 %v12, %v28
  %v31 = vld [vmem:[%s1] sm:$0x1]
  %v33 = vlaneseq
  %v34 = vshrl.u32 %v33, 7
  %v35 = vsub.s32 0, %v34
  %v36 = vrot.slane %v31, %v35
  %v38 = vmul.f32 %v29, %v36
  %v39 = vmul.f32 %v30, %v36
  %40 = vst.msk [vmem:[%s2] sm:$0xff] %vm15, %v38
  %41 = vst.msk [vmem:[%s2 + $0x8] sm:$0xff] %vm15, %v39
  // Predicated region
  $region10: #{run.50} parent=0 // pred_check
    _
  $region11: #{run.50} parent=0 // pred_check_branch
    %43 = sbr.rel (0) target = $region13
  $region12: #{run.50} parent=0 // pred_region
    _
  $region13: #{run.50} parent=0 // pred_fallthru
    _
  // Predicated region
  $region14: #{run.50} parent=0 // pred_check
    _
  $region15: #{run.50} parent=0 // pred_check_branch
    %45 = sbr.rel (0) target = $region17
  $region16: #{run.50} parent=0 // pred_region
    _
  $region17: #{run.50} parent=0 // pred_fallthru
    _

// kernel: run.51
$region0: #{run.51}
  #allocation0 [shape = 'u32[]', space=smem, size = 0x4, offset = 0x4, fixed_abs, tag = 'smem constant byte address 0x4 - core index']
  #allocation1 [shape = 'u32[144,128]{1,0:T(1,128)}', space=vmem, size = 0x12000, scoped, tag = 'internal scratch']
  %s0 = inlined_call_operand.vmem [shape: f32[16,32], index: 0, kind: input, shape index: {}]
  %s1 = inlined_call_operand.vmem [shape: f32[256,32], index: 1, kind: input, shape index: {}]
  %s2 = inlined_call_operand.hbm [shape: f32[16,256], index: 2, kind: output, shape index: {}]
  %s3 = sld [smem:[#allocation0]]
  $region41: #{run.51} parent=0
    _
  %s5 = ssub.s32 1, %s3
  %s6 = scalar_select 0, %s5, %s3
  $region1: #{run.51} parent=0
    #allocation2 [shape = 'u8[16384]{0}', space=vmem, size = 0x4000, scoped, tag = 'output window, operand 0']
    #allocation3 [shape = 's32[2]{0}', space=sflag, size = 0x8, scoped, tag = 'scoped memory for run.51']
    %7 = vsyncpa [#allocation3], 0
    %s8 = scalar_lea.sflag [#allocation3], 1
    %9 = vsyncpa %s8, 0
    loop: start=0, step=1, limit=4
    $region2: #{run.51} parent=1 // loop_pre_header
      _
    $region3: #{run.51} parent=1 // loop_header
      %s11 = sphi 0, %s15
      %p12 = scmp.ge.s32.totalorder %s11, 4
      %s19 = sphi 0, %s19
      %s21 = sphi 0, %s19
      %s22 = sphi 0, %s21
      %s36 = sphi 0, %s22
      %s42 = sphi 0, %s44
      %s45 = sphi 0, %s42
      %s46 = sphi 0, %s45
      %s62 = sphi 0, %s46
      %s68 = sphi 0, %s70
      %s71 = sphi 0, %s68
      %s72 = sphi 0, %s71
      %s88 = sphi 0, %s72
    $region4: #{run.51} parent=1 // loop_header_branch
      %14 = sbr.rel (%p12) target = $region8
    $region5: #{run.51} parent=1 // loop_body
      %s16 = ssub.s32 %s11, 1
      %s17 = ssub.s32 %s11, 2
      %s18 = sadd.s32 %s11, 1
      %s20 = sadd.s32 %s19, 1
      %p23 = scmp.eq.s32.totalorder %s11, 1
      %p24 = scmp.ne.s32.totalorder %s19, %s21
      %p25 = scmp.eq.s32.totalorder %s11, 0
      %p26 = por %p24, %p25
      %p27 = scmp.ne.s32.totalorder %s19, %s21
      %p28 = scmp.eq.s32.totalorder %s16, 1
      %p29 = por %p27, %p28
      %p30 = scmp.ne.s32.totalorder %s21, %s22
      %p31 = scmp.eq.s32.totalorder %s16, 0
      %p32 = por %p30, %p31
      %p33 = scmp.ne.s32.totalorder %s21, %s22
      %p34 = scmp.eq.s32.totalorder %s17, 1
      %p35 = por %p33, %p34
      %p37 = scmp.ne.s32.totalorder %s22, %s36
      %p38 = scmp.eq.s32.totalorder %s17, 0
      %p39 = por %p37, %p38
      %s40 = ssub.s32 %s11, %s18
      %p41 = scmp.eq.s32.totalorder %s40, 0
      %s43 = sadd.s32 %s42, 1
      %s44 = scalar_select %p41, %s42, %s43
      %p47 = pneg %p41
      %p48 = scmp.eq.s32.totalorder %s11, 1
      %p49 = por %p47, %p48
      %p50 = scmp.ne.s32.totalorder %s42, %s45
      %p51 = scmp.eq.s32.totalorder %s11, 0
      %p52 = por %p50, %p51
      %p53 = scmp.ne.s32.totalorder %s42, %s45
      %p54 = scmp.eq.s32.totalorder %s16, 1
      %p55 = por %p53, %p54
      %p56 = scmp.ne.s32.totalorder %s45, %s46
      %p57 = scmp.eq.s32.totalorder %s16, 0
      %p58 = por %p56, %p57
      %p59 = scmp.ne.s32.totalorder %s45, %s46
      %p60 = scmp.eq.s32.totalorder %s17, 1
      %p61 = por %p59, %p60
      %p63 = scmp.ne.s32.totalorder %s46, %s62
      %p64 = scmp.eq.s32.totalorder %s17, 0
      %p65 = por %p63, %p64
      %s66 = ssub.s32 %s11, %s18
      %p67 = scmp.eq.s32.totalorder %s66, 0
      %s69 = sadd.s32 %s68, 1
      %s70 = scalar_select %p67, %s68, %s69
      %p73 = pneg %p67
      %p74 = scmp.eq.s32.totalorder %s11, 1
      %p75 = por %p73, %p74
      %p76 = scmp.ne.s32.totalorder %s68, %s71
      %p77 = scmp.eq.s32.totalorder %s11, 0
      %p78 = por %p76, %p77
      %p79 = scmp.ne.s32.totalorder %s68, %s71
      %p80 = scmp.eq.s32.totalorder %s16, 1
      %p81 = por %p79, %p80
      %p82 = scmp.ne.s32.totalorder %s71, %s72
      %p83 = scmp.eq.s32.totalorder %s16, 0
      %p84 = por %p82, %p83
      %p85 = scmp.ne.s32.totalorder %s71, %s72
      %p86 = scmp.eq.s32.totalorder %s17, 1
      %p87 = por %p85, %p86
      %p89 = scmp.ne.s32.totalorder %s72, %s88
      %p90 = scmp.eq.s32.totalorder %s17, 0
      %p91 = por %p89, %p90
      %p92 = scmp.le.s32.totalorder 1, %s11
      %p93 = scmp.lt.s32.totalorder %s11, 3
      %p94 = pnand %p92, %p93
      %p95 = pneg %p94
      // Predicated region
      $region9: #{run.51} parent=5 // pred_check
        _
      $region10: #{run.51} parent=5 // pred_check_branch
        %97 = sbr.rel (%p94) target = $region12
      $region11: #{run.51} parent=5 // pred_region
        %s98 = ssub.s32 %s11, 1
        // Predicated region
        $region13: #{run.51} parent=11 // pred_check
          %p99 = pneg %p32
        $region14: #{run.51} parent=11 // pred_check_branch
          %101 = sbr.rel (%p99) target = $region16
        $region15: #{run.51} parent=11 // pred_region
          _
        $region16: #{run.51} parent=11 // pred_fallthru
          _
      $region12: #{run.51} parent=5 // pred_fallthru
        _
      %p102 = scmp.lt.s32.totalorder %s11, 2
      // Predicated region
      $region17: #{run.51} parent=5 // pred_check
        %p103 = pneg %p102
      $region18: #{run.51} parent=5 // pred_check_branch
        %105 = sbr.rel (%p103) target = $region20
      $region19: #{run.51} parent=5 // pred_region
        // Predicated region
        $region21: #{run.51} parent=19 // pred_check
          %p106 = pneg %p52
        $region22: #{run.51} parent=19 // pred_check_branch
          %108 = sbr.rel (%p106) target = $region24
        $region23: #{run.51} parent=19 // pred_region
          %s109 = smul.u32 16, %s11
          %p110 = scmp.lt.s32.totalorder %s109, 31
          %s111 = scalar_select %p110, %s109, 31
          %s112 = smul.addr %s111, 8
          %s113 = scalar_lea.vmem %s1, %s112
          %s114 = smul.u32 16, %s11
        $region24: #{run.51} parent=19 // pred_fallthru
          _
      $region20: #{run.51} parent=5 // pred_fallthru
        _
      %p115 = scmp.le.s32.totalorder 1, %s11
      %p116 = scmp.lt.s32.totalorder %s11, 3
      %p117 = pnand %p115, %p116
      %p118 = pneg %p117
      // Predicated region
      $region25: #{run.51} parent=5 // pred_check
        _
      $region26: #{run.51} parent=5 // pred_check_branch
        %120 = sbr.rel (%p117) target = $region28
      $region27: #{run.51} parent=5 // pred_region
        %s121 = ssub.s32 %s11, 1
        %p122 = pneg %p32
        %p123 = pneg %p29
        %s124 = smul.u32 16, %s16
        %p125 = scmp.lt.s32.totalorder %s124, 31
        %s126 = scalar_select %p125, %s124, 31
        %s127 = smul.addr %s126, 8
        %s128 = scalar_lea.vmem %s1, %s127
        %p129 = pneg %p58
        %p130 = pneg %p55
        %p131 = pneg %p84
        %p132 = pneg %p81
        %s133 = sand.u32 %s71, 1
        %s134 = scalar_lea.sflag [#allocation3], %s133
        %s135 = sand.u32 %s71, 1
        %s136 = smul.addr %s135, 16
        %s137 = scalar_lea.vmem [#allocation2], %s136
        %s138 = smul.u32 16, %s16
        %p139 = scmp.lt.s32.totalorder %s138, 31
        %s140 = scalar_select %p139, %s138, 31
        %s141 = smul.addr %s140, 8
        %s142 = scalar_lea.vmem %s1, %s141
        %s143 = smul.u32 16, %s16
        %v145 = vld [vmem:[%s0] sm:$0xff]
        %v146 = vld [vmem:[%s0 + $0x8] sm:$0xff]
        %v147 = vpack.c.bf16 %v146, %v145
        %v148 = vld [vmem:[%s142] sm:$0xff]
        %v149 = vld [vmem:[%s142 + $0x8] sm:$0xff]
        %v150 = vld [vmem:[%s142 + $0x10] sm:$0xff]
        %v151 = vld [vmem:[%s142 + $0x18] sm:$0xff]
        %v152 = vld [vmem:[%s142 + $0x20] sm:$0xff]
        %v153 = vld [vmem:[%s142 + $0x28] sm:$0xff]
        %v154 = vld [vmem:[%s142 + $0x30] sm:$0xff]
        %v155 = vld [vmem:[%s142 + $0x38] sm:$0xff]
        %v156 = vld [vmem:[%s142 + $0x40] sm:$0xff]
        %v157 = vld [vmem:[%s142 + $0x48] sm:$0xff]
        %v158 = vld [vmem:[%s142 + $0x50] sm:$0xff]
        %v159 = vld [vmem:[%s142 + $0x58] sm:$0xff]
        %v160 = vld [vmem:[%s142 + $0x60] sm:$0xff]
        %v161 = vld [vmem:[%s142 + $0x68] sm:$0xff]
        %v162 = vld [vmem:[%s142 + $0x70] sm:$0xff]
        %v163 = vld [vmem:[%s142 + $0x78] sm:$0xff]
        %v164 = vpack.c.bf16 %v149, %v148
        %v165 = vpack.c.bf16 %v151, %v150
        %v166 = vpack.c.bf16 %v153, %v152
        %v167 = vpack.c.bf16 %v155, %v154
        %v168 = vpack.c.bf16 %v157, %v156
        %v169 = vpack.c.bf16 %v159, %v158
        %v170 = vpack.c.bf16 %v161, %v160
        %v171 = vpack.c.bf16 %v163, %v162
        %vm172 = vcmask 261120
        %v174 = vsel %vm172, %v147, 0
        %v177 = vsel %vm172, %v164, 0
        %v180 = vsel %vm172, %v165, 0
        %v183 = vsel %vm172, %v166, 0
        %v186 = vsel %vm172, %v167, 0
        %v189 = vsel %vm172, %v168, 0
        %v192 = vsel %vm172, %v169, 0
        %v195 = vsel %vm172, %v170, 0
        %v198 = vsel %vm172, %v171, 0
        %200 = vmatprep.subr.bf16.mxu0 0
        %201 = vmatpush1.bf16.xpose.msra.mxu0 %v198
        %202 = vmatprep.subr.bf16.mxu0 0
        %203 = vmatpush1.bf16.xpose.msra.mxu0 %v195
        %204 = vmatprep.subr.bf16.mxu0 0
        %205 = vmatpush1.bf16.xpose.msra.mxu0 %v192
        %206 = vmatprep.subr.bf16.mxu0 0
        %207 = vmatpush1.bf16.xpose.msra.mxu0 %v189
        %208 = vmatprep.subr.bf16.mxu0 0
        %209 = vmatpush1.bf16.xpose.msra.mxu0 %v186
        %210 = vmatprep.subr.bf16.mxu0 0
        %211 = vmatpush1.bf16.xpose.msra.mxu0 %v183
        %212 = vmatprep.subr.bf16.mxu0 0
        %213 = vmatpush1.bf16.xpose.msra.mxu0 %v180
        %214 = vmatprep.subr.bf16.mxu0 0
        %215 = vmatpush1.bf16.xpose.msra.mxu0 %v177
        %216 = vmatprep.subr.bf16.mxu0 0
        %217 = vmatpush2.bf16.xpose.msra.mxu0 0
        %218 = vmatprep.subr.bf16.mxu0 0
        %219 = vmatpush2.bf16.xpose.msra.mxu0 0
        %220 = vmatprep.subr.bf16.mxu0 0
        %221 = vmatpush2.bf16.xpose.msra.mxu0 0
        %222 = vmatprep.subr.bf16.mxu0 0
        %223 = vmatpush2.bf16.xpose.msra.mxu0 0
        %224 = vmatprep.subr.bf16.mxu0 0
        %225 = vmatpush2.bf16.xpose.msra.mxu0 0
        %226 = vmatprep.subr.bf16.mxu0 0
        %227 = vmatpush2.bf16.xpose.msra.mxu0 0
        %228 = vmatprep.subr.bf16.mxu0 0
        %229 = vmatpush2.bf16.xpose.msra.mxu0 0
        %230 = vmatprep.subr.bf16.mxu0 0
        %231 = vmatpush2.bf16.xpose.msra.mxu0 0
        %232 = vmatprep.mubr.bf16.mxu0 0
        %233 = vmatmul.mubr.bf16.gmra.mxu0 %v174
        %v234 = vpop.f32.mrf.mxu0
        %v235 = vadd.f32 0.0, %v234
        %v236 = vpop.f32.mrf.mxu0
        %v237 = vpop.f32.mrf.mxu0
        %v238 = vadd.f32 0.0, %v237
        %v239 = vpop.f32.mrf.mxu0
        %240 = vdwg.mxu0
        %241 = vst [vmem:[%s137] sm:$0xff] %v235
        %242 = vst [vmem:[%s137 + $0x8] sm:$0xff] %v238
        %s243 = sand.u32 %s71, 1
        %s244 = scalar_lea.sflag [#allocation3], %s243
        %s245 = sand.u32 %s71, 1
        %s246 = smul.addr %s245, 16
        %s247 = scalar_lea.vmem [#allocation2], %s246
        // Predicated region
        $region29: #{run.51} parent=27 // pred_check
          %p248 = pneg %p81
        $region30: #{run.51} parent=27 // pred_check_branch
          %250 = sbr.rel (%p248) target = $region32
        $region31: #{run.51} parent=27 // pred_region
          %s252 = ssub.s32 256, 256
          %253 = vsyncadd %s244, %s252
          %s254 = smul.addr %s16, 128
          %s255 = scalar_lea.hbm %s2, %s254
          %s256 = sshll.u32 %s247, 4
          %s257 = int_to_ptr.vmem [resolvable:$true] %s256
          %262 = dma.vmem_to_hbm [thread:$0]  %s257, 256, %s255, %s244, 128, 256, 8
        $region32: #{run.51} parent=27 // pred_fallthru
          _
      $region28: #{run.51} parent=5 // pred_fallthru
        _
      %p263 = scmp.le.s32.totalorder 2, %s11
      // Predicated region
      $region33: #{run.51} parent=5 // pred_check
        %p264 = pneg %p263
      $region34: #{run.51} parent=5 // pred_check_branch
        %266 = sbr.rel (%p264) target = $region36
      $region35: #{run.51} parent=5 // pred_region
        %s267 = ssub.s32 %s11, 2
        // Predicated region
        $region37: #{run.51} parent=35 // pred_check
          %p268 = pneg %p87
        $region38: #{run.51} parent=35 // pred_check_branch
          %270 = sbr.rel (%p268) target = $region40
        $region39: #{run.51} parent=35 // pred_region
          %s271 = sand.u32 %s72, 1
          %s272 = scalar_lea.sflag [#allocation3], %s271
          %s273 = sand.u32 %s72, 1
          %s274 = smul.addr %s273, 16
          %s275 = scalar_lea.vmem [#allocation2], %s274
          %276 = dma.done %s272, 256
        $region40: #{run.51} parent=35 // pred_fallthru
          _
      $region36: #{run.51} parent=5 // pred_fallthru
        _
    $region6: #{run.51} parent=1 // loop_footer
      %s15 = sadd.s32 1, %s11
    $region7: #{run.51} parent=1 // loop_footer_branch
      %10 = sbr.rel target = $region3
    $region8: #{run.51} parent=1 // loop_exit
      _
    %277 = vsyncpa [#allocation3], 1
    %s278 = scalar_lea.sflag [#allocation3], 1
    %279 = vsyncpa %s278, 1

</llo_original>
